<compile_context>
chip_gen: v7x
topology: tpu7x:2x2x1
jax: 0.10.0
libtpu: 0.0.40
codegen_flags: <defaults>
</compile_context>

<pallas_src>
import jax
import jax.numpy as jnp
from jax.experimental import pallas as pl
from jax.experimental.pallas import tpu as pltpu

LANE = 128


def _round_up(x, m):
    return ((x + m - 1) // m) * m


def decoder_kernel(z_ref,
                   w1_ref, b1_ref,
                   w2_ref, b2_ref,
                   w3_ref, b3_ref,
                   w4_ref, b4_ref,
                   out_ref):
    # Activations stay fp32; only the MXU operands are bf16 (f32 accumulate).
    def linear(x, w_ref, b_ref):
        return jnp.dot(x.astype(jnp.bfloat16), w_ref[...],
                       preferred_element_type=jnp.float32) + b_ref[...]

    def swish(x):
        # sigmoid lowers to the EUP slot, effectively free next to the matmuls.
        return x * jax.nn.sigmoid(x)

    h = swish(linear(z_ref[...], w1_ref, b1_ref))
    h = swish(linear(h, w2_ref, b2_ref))
    h = swish(linear(h, w3_ref, b3_ref))
    out_ref[...] = linear(h, w4_ref, b4_ref)


def decoder_forward(z, params):
    """z: (B, z_dim) fp32. params: dict of (in,out) fp32 weights, (1,out) biases."""
    B, z_dim = z.shape
    out_dim = params["b4"].shape[-1]            # 784
    out_pad = _round_up(out_dim, LANE)          # 896 = 7 * 128

    # Batch tiling: up to 128 rows per grid step, padded to a multiple of 8.
    block_b = min(128, _round_up(B, 8))
    b_pad = _round_up(B, block_b)
    if b_pad != B:
        z = jnp.pad(z, ((0, b_pad - B), (0, 0)))

    # Weights cast to bf16 (halves HBM bytes); layer-4 padded to lane multiple.
    w1 = params["w1"].astype(jnp.bfloat16)
    w2 = params["w2"].astype(jnp.bfloat16)
    w3 = params["w3"].astype(jnp.bfloat16)
    w4 = jnp.pad(params["w4"],
                 ((0, 0), (0, out_pad - out_dim))).astype(jnp.bfloat16)
    b1, b2, b3 = params["b1"], params["b2"], params["b3"]
    b4 = jnp.pad(params["b4"], ((0, 0), (0, out_pad - out_dim)))

    args = (z, w1, b1, w2, b2, w3, b3, w4, b4)

    def resident_spec(a):
        # Same block every grid step -> weights/biases stay resident in VMEM.
        return pl.BlockSpec(a.shape, lambda i, _nd=a.ndim: (0,) * _nd)

    out = pl.pallas_call(
        decoder_kernel,
        out_shape=jax.ShapeDtypeStruct((b_pad, out_pad), jnp.float32),
        grid=(b_pad // block_b,),
        in_specs=[pl.BlockSpec((block_b, z_dim), lambda i: (i, 0))]
                 + [resident_spec(a) for a in args[1:]],
        out_specs=pl.BlockSpec((block_b, out_pad), lambda i: (i, 0)),
        compiler_params=pltpu.CompilerParams(
            dimension_semantics=("parallel",),
            vmem_limit_bytes=16 << 20,
        ),
    )(*args)

    return out[:B, :out_dim]


def init_params(key, z_dim):
    """Deterministic init matching nn.Linear shapes (stored transposed)."""
    dims = [(z_dim, 512), (512, 512), (512, 512), (512, 784)]
    params = {}
    for i, (d_in, d_out) in enumerate(dims, start=1):
        key, kw, kb = jax.random.split(key, 3)
        bound = 1.0 / jnp.sqrt(d_in)
        params[f"w{i}"] = jax.random.uniform(
            kw, (d_in, d_out), jnp.float32, -bound, bound)
        params[f"b{i}"] = jax.random.uniform(
            kb, (1, d_out), jnp.float32, -bound, bound)
    return params


def decoder_reference(z, p):
    """Reference mimicking the kernel's mixed precision (bf16 MXU, f32 acc)."""
    def lin(x, w, b):
        return jnp.dot(x.astype(jnp.bfloat16), w.astype(jnp.bfloat16),
                       preferred_element_type=jnp.float32) + b

    h = lin(z, p["w1"], p["b1"]); h = h * jax.nn.sigmoid(h)
    h = lin(h, p["w2"], p["b2"]); h = h * jax.nn.sigmoid(h)
    h = lin(h, p["w3"], p["b3"]); h = h * jax.nn.sigmoid(h)
    return lin(h, p["w4"], p["b4"])


if __name__ == "__main__":
    key = jax.random.PRNGKey(0)
    k_z, k_p = jax.random.split(key)

    batch, z_dim = 8, 32
    z = jax.random.normal(k_z, (batch, z_dim), jnp.float32)
    params = init_params(k_p, z_dim)

    out = decoder_forward(z, params)
    out = jax.block_until_ready(out)

    ref = decoder_reference(z, params)
    assert out.shape == (batch, 784), out.shape
    assert jnp.allclose(out, ref, atol=1e-2, rtol=1e-2), "mismatch vs reference"

    print("KERNEL_OK")
</pallas_src>

<mosaic_0001>
module attributes {stable_mosaic.version = 11 : i64} {
  func.func @decoder_kernel(%arg0: i32, %arg1: memref<8x32xf32, #tpu.memory_space<vmem>>, %arg2: memref<32x512xbf16, #tpu.memory_space<vmem>>, %arg3: memref<1x512xf32, #tpu.memory_space<vmem>>, %arg4: memref<512x512xbf16, #tpu.memory_space<vmem>>, %arg5: memref<1x512xf32, #tpu.memory_space<vmem>>, %arg6: memref<512x512xbf16, #tpu.memory_space<vmem>>, %arg7: memref<1x512xf32, #tpu.memory_space<vmem>>, %arg8: memref<512x896xbf16, #tpu.memory_space<vmem>>, %arg9: memref<1x896xf32, #tpu.memory_space<vmem>>, %arg10: memref<8x896xf32, #tpu.memory_space<vmem>>) attributes {dimension_semantics = [#tpu.dimension_semantics<parallel>], iteration_bounds = array<i64: 1>, scalar_prefetch = 0 : i64, scratch_operands = 0 : i64, tpu.core_type = #tpu.core_type<tc>, window_params = [{transform_indices = @transform_0, window_bounds = array<i64: 8, 32>}, {pipeline_mode = #tpu.pipeline_mode<synchronous>, transform_indices = @transform_1, window_bounds = array<i64: 32, 512>}, {pipeline_mode = #tpu.pipeline_mode<synchronous>, transform_indices = @transform_2, window_bounds = array<i64: 1, 512>}, {pipeline_mode = #tpu.pipeline_mode<synchronous>, transform_indices = @transform_3, window_bounds = array<i64: 512, 512>}, {pipeline_mode = #tpu.pipeline_mode<synchronous>, transform_indices = @transform_4, window_bounds = array<i64: 1, 512>}, {pipeline_mode = #tpu.pipeline_mode<synchronous>, transform_indices = @transform_5, window_bounds = array<i64: 512, 512>}, {pipeline_mode = #tpu.pipeline_mode<synchronous>, transform_indices = @transform_6, window_bounds = array<i64: 1, 512>}, {pipeline_mode = #tpu.pipeline_mode<synchronous>, transform_indices = @transform_7, window_bounds = array<i64: 512, 896>}, {pipeline_mode = #tpu.pipeline_mode<synchronous>, transform_indices = @transform_8, window_bounds = array<i64: 1, 896>}, {transform_indices = @transform_9, window_bounds = array<i64: 8, 896>}]} {
    %c0 = arith.constant 0 : index
    %c0_0 = arith.constant 0 : index
    %0 = vector.load %arg1[%c0, %c0_0] : memref<8x32xf32, #tpu.memory_space<vmem>>, vector<8x32xf32>
    %1 = arith.truncf %0 : vector<8x32xf32> to vector<8x32xbf16>
    %c0_1 = arith.constant 0 : index
    %c0_2 = arith.constant 0 : index
    %2 = vector.load %arg2[%c0_1, %c0_2] : memref<32x512xbf16, #tpu.memory_space<vmem>>, vector<32x512xbf16>
    %cst = arith.constant dense<0.000000e+00> : vector<8x512xf32>
    %3 = tpu.matmul %1, %2, %cst {dimension_numbers = #tpu.dot_dimension_numbers<[1], [0], [0], [1], [0, 0, 1, 1], [], []>} : vector<8x32xbf16>, vector<32x512xbf16>, vector<8x512xf32> -> vector<8x512xf32>
    %c0_3 = arith.constant 0 : index
    %c0_4 = arith.constant 0 : index
    %4 = vector.load %arg3[%c0_3, %c0_4] : memref<1x512xf32, #tpu.memory_space<vmem>>, vector<1x512xf32>
    %5 = vector.broadcast %4 : vector<1x512xf32> to vector<8x512xf32>
    %6 = arith.addf %3, %5 : vector<8x512xf32>
    %7 = arith.negf %6 : vector<8x512xf32>
    %8 = math.exp %7 : vector<8x512xf32>
    %cst_5 = arith.constant 1.000000e+00 : f32
    %9 = vector.broadcast %cst_5 : f32 to vector<8x512xf32>
    %10 = arith.addf %9, %8 : vector<8x512xf32>
    %11 = arith.divf %9, %10 : vector<8x512xf32>
    %12 = arith.mulf %6, %11 : vector<8x512xf32>
    %13 = arith.truncf %12 : vector<8x512xf32> to vector<8x512xbf16>
    %c0_6 = arith.constant 0 : index
    %c0_7 = arith.constant 0 : index
    %14 = vector.load %arg4[%c0_6, %c0_7] : memref<512x512xbf16, #tpu.memory_space<vmem>>, vector<512x512xbf16>
    %cst_8 = arith.constant dense<0.000000e+00> : vector<8x512xf32>
    %15 = tpu.matmul %13, %14, %cst_8 {dimension_numbers = #tpu.dot_dimension_numbers<[1], [0], [0], [1], [0, 0, 1, 1], [], []>} : vector<8x512xbf16>, vector<512x512xbf16>, vector<8x512xf32> -> vector<8x512xf32>
    %c0_9 = arith.constant 0 : index
    %c0_10 = arith.constant 0 : index
    %16 = vector.load %arg5[%c0_9, %c0_10] : memref<1x512xf32, #tpu.memory_space<vmem>>, vector<1x512xf32>
    %17 = vector.broadcast %16 : vector<1x512xf32> to vector<8x512xf32>
    %18 = arith.addf %15, %17 : vector<8x512xf32>
    %19 = arith.negf %18 : vector<8x512xf32>
    %20 = math.exp %19 : vector<8x512xf32>
    %cst_11 = arith.constant 1.000000e+00 : f32
    %21 = vector.broadcast %cst_11 : f32 to vector<8x512xf32>
    %22 = arith.addf %21, %20 : vector<8x512xf32>
    %23 = arith.divf %21, %22 : vector<8x512xf32>
    %24 = arith.mulf %18, %23 : vector<8x512xf32>
    %25 = arith.truncf %24 : vector<8x512xf32> to vector<8x512xbf16>
    %c0_12 = arith.constant 0 : index
    %c0_13 = arith.constant 0 : index
    %26 = vector.load %arg6[%c0_12, %c0_13] : memref<512x512xbf16, #tpu.memory_space<vmem>>, vector<512x512xbf16>
    %cst_14 = arith.constant dense<0.000000e+00> : vector<8x512xf32>
    %27 = tpu.matmul %25, %26, %cst_14 {dimension_numbers = #tpu.dot_dimension_numbers<[1], [0], [0], [1], [0, 0, 1, 1], [], []>} : vector<8x512xbf16>, vector<512x512xbf16>, vector<8x512xf32> -> vector<8x512xf32>
    %c0_15 = arith.constant 0 : index
    %c0_16 = arith.constant 0 : index
    %28 = vector.load %arg7[%c0_15, %c0_16] : memref<1x512xf32, #tpu.memory_space<vmem>>, vector<1x512xf32>
    %29 = vector.broadcast %28 : vector<1x512xf32> to vector<8x512xf32>
    %30 = arith.addf %27, %29 : vector<8x512xf32>
    %31 = arith.negf %30 : vector<8x512xf32>
    %32 = math.exp %31 : vector<8x512xf32>
    %cst_17 = arith.constant 1.000000e+00 : f32
    %33 = vector.broadcast %cst_17 : f32 to vector<8x512xf32>
    %34 = arith.addf %33, %32 : vector<8x512xf32>
    %35 = arith.divf %33, %34 : vector<8x512xf32>
    %36 = arith.mulf %30, %35 : vector<8x512xf32>
    %37 = arith.truncf %36 : vector<8x512xf32> to vector<8x512xbf16>
    %c0_18 = arith.constant 0 : index
    %c0_19 = arith.constant 0 : index
    %38 = vector.load %arg8[%c0_18, %c0_19] : memref<512x896xbf16, #tpu.memory_space<vmem>>, vector<512x896xbf16>
    %cst_20 = arith.constant dense<0.000000e+00> : vector<8x896xf32>
    %39 = tpu.matmul %37, %38, %cst_20 {dimension_numbers = #tpu.dot_dimension_numbers<[1], [0], [0], [1], [0, 0, 1, 1], [], []>} : vector<8x512xbf16>, vector<512x896xbf16>, vector<8x896xf32> -> vector<8x896xf32>
    %c0_21 = arith.constant 0 : index
    %c0_22 = arith.constant 0 : index
    %40 = vector.load %arg9[%c0_21, %c0_22] : memref<1x896xf32, #tpu.memory_space<vmem>>, vector<1x896xf32>
    %41 = vector.broadcast %40 : vector<1x896xf32> to vector<8x896xf32>
    %42 = arith.addf %39, %41 : vector<8x896xf32>
    %c0_23 = arith.constant 0 : index
    %c0_24 = arith.constant 0 : index
    %43 = vector.load %arg10[%c0_23, %c0_24] : memref<8x896xf32, #tpu.memory_space<vmem>>, vector<8x896xf32>
    tpu.vector_store %arg10[%c0_23, %c0_24], %42 {strides = array<i32>} : memref<8x896xf32, #tpu.memory_space<vmem>>, vector<8x896xf32>,
    return
  }
  func.func @transform_0(%arg0: i32) -> (i32, i32) {
    %c0_i32 = arith.constant 0 : i32
    %c0_i32_0 = arith.constant 0 : i32
    return %arg0, %c0_i32 : i32, i32
  }
  func.func @transform_1(%arg0: i32) -> (i32, i32) {
    %c0_i32 = arith.constant 0 : i32
    %c0_i32_0 = arith.constant 0 : i32
    %c0_i32_1 = arith.constant 0 : i32
    return %c0_i32, %c0_i32_0 : i32, i32
  }
  func.func @transform_2(%arg0: i32) -> (i32, i32) {
    %c0_i32 = arith.constant 0 : i32
    %c0_i32_0 = arith.constant 0 : i32
    %c0_i32_1 = arith.constant 0 : i32
    return %c0_i32, %c0_i32_0 : i32, i32
  }
  func.func @transform_3(%arg0: i32) -> (i32, i32) {
    %c0_i32 = arith.constant 0 : i32
    %c0_i32_0 = arith.constant 0 : i32
    %c0_i32_1 = arith.constant 0 : i32
    return %c0_i32, %c0_i32_0 : i32, i32
  }
  func.func @transform_4(%arg0: i32) -> (i32, i32) {
    %c0_i32 = arith.constant 0 : i32
    %c0_i32_0 = arith.constant 0 : i32
    %c0_i32_1 = arith.constant 0 : i32
    return %c0_i32, %c0_i32_0 : i32, i32
  }
  func.func @transform_5(%arg0: i32) -> (i32, i32) {
    %c0_i32 = arith.constant 0 : i32
    %c0_i32_0 = arith.constant 0 : i32
    %c0_i32_1 = arith.constant 0 : i32
    return %c0_i32, %c0_i32_0 : i32, i32
  }
  func.func @transform_6(%arg0: i32) -> (i32, i32) {
    %c0_i32 = arith.constant 0 : i32
    %c0_i32_0 = arith.constant 0 : i32
    %c0_i32_1 = arith.constant 0 : i32
    return %c0_i32, %c0_i32_0 : i32, i32
  }
  func.func @transform_7(%arg0: i32) -> (i32, i32) {
    %c0_i32 = arith.constant 0 : i32
    %c0_i32_0 = arith.constant 0 : i32
    %c0_i32_1 = arith.constant 0 : i32
    return %c0_i32, %c0_i32_0 : i32, i32
  }
  func.func @transform_8(%arg0: i32) -> (i32, i32) {
    %c0_i32 = arith.constant 0 : i32
    %c0_i32_0 = arith.constant 0 : i32
    %c0_i32_1 = arith.constant 0 : i32
    return %c0_i32, %c0_i32_0 : i32, i32
  }
  func.func @transform_9(%arg0: i32) -> (i32, i32) {
    %c0_i32 = arith.constant 0 : i32
    %c0_i32_0 = arith.constant 0 : i32
    return %arg0, %c0_i32 : i32, i32
  }
}

</mosaic_0001>

<llo_original>
// kernel: tpu_custom_call.1
$region0: #{tpu_custom_call.1}
  #allocation0 [shape = 'u32[]', space=smem, size = 0x4, offset = 0x4, fixed_abs, tag = 'smem constant byte address 0x4 - core index']
  #allocation1 [shape = 'u32[144,128]{1,0:T(1,128)}', space=vmem, size = 0x12000, scoped, tag = 'internal scratch']
  %s0 = inlined_call_operand.hbm [shape: f32[8,32], index: 0, kind: input, shape index: {}]
  %s1 = inlined_call_operand.hbm [shape: bf16[32,512], index: 1, kind: input, shape index: {}]
  %s2 = inlined_call_operand.vmem [shape: f32[1,512], index: 2, kind: input, shape index: {}]
  %s3 = inlined_call_operand.hbm [shape: bf16[512,512], index: 3, kind: input, shape index: {}]
  %s4 = inlined_call_operand.vmem [shape: f32[1,512], index: 4, kind: input, shape index: {}]
  %s5 = inlined_call_operand.hbm [shape: bf16[512,512], index: 5, kind: input, shape index: {}]
  %s6 = inlined_call_operand.vmem [shape: f32[1,512], index: 6, kind: input, shape index: {}]
  %s7 = inlined_call_operand.hbm [shape: bf16[512,896], index: 7, kind: input, shape index: {}]
  %s8 = inlined_call_operand.vmem [shape: f32[1,896], index: 8, kind: input, shape index: {}]
  %s9 = inlined_call_operand.hbm [shape: f32[8,896], index: 9, kind: output, shape index: {}]
  %s10 = sld [smem:[#allocation0]]
  $region66: #{tpu_custom_call.1} parent=0
    _
  %s12 = ssub.s32 1, %s10
  %s13 = scalar_select 0, %s12, %s10
  $region1: #{tpu_custom_call.1} parent=0
    #allocation2 [shape = 'u8[4096]{0}', space=vmem, size = 0x1000, scoped, tag = 'input window, operand 0, single buffered']
    #allocation3 [shape = 's32[1]{0}', space=sflag, size = 0x4, scoped, tag = 'scoped memory for tpu_custom_call.1']
    #allocation4 [shape = 's32[1]{0}', space=sflag, size = 0x4, scoped, tag = 'scoped memory for tpu_custom_call.1']
    #allocation5 [shape = 'u8[32768]{0}', space=vmem, size = 0x8000, scoped, tag = 'input window, operand 1, single buffered']
    #allocation6 [shape = 's32[1]{0}', space=sflag, size = 0x4, scoped, tag = 'scoped memory for tpu_custom_call.1']
    #allocation7 [shape = 'u8[524288]{0}', space=vmem, size = 0x80000, scoped, tag = 'input window, operand 3, single buffered']
    #allocation8 [shape = 'u8[524288]{0}', space=vmem, size = 0x80000, scoped, tag = 'input window, operand 5, single buffered']
    #allocation9 [shape = 's32[1]{0}', space=sflag, size = 0x4, scoped, tag = 'scoped memory for tpu_custom_call.1']
    #allocation10 [shape = 'u8[917504]{0}', space=vmem, size = 0xe0000, scoped, tag = 'input window, operand 7, single buffered']
    #allocation11 [shape = 'u8[28672]{0}', space=vmem, size = 0x7000, scoped, tag = 'output window, operand 0, single buffered']
    %14 = vsyncpa [#allocation3], 0
    %15 = vsyncpa [#allocation6], 0
    %16 = vsyncpa [#allocation9], 0
    %17 = vsyncpa [#allocation4], 0
    // Predicated region
    $region2: #{tpu_custom_call.1} parent=1 // pred_check
      _
    $region3: #{tpu_custom_call.1} parent=1 // pred_check_branch
      %19 = sbr.rel (0) target = $region5
    $region4: #{tpu_custom_call.1} parent=1 // pred_region
      %s21 = ssub.s32 128, 128
      %22 = vsyncadd [#allocation3], %s21
      %s24 = sshll.u32 [#allocation2], 4
      %s25 = int_to_ptr.vmem [resolvable:$true] %s24
      %27 = dma.hbm_to_vmem [thread:$0]  %s0, 128, %s25, [#allocation3]
    $region5: #{tpu_custom_call.1} parent=1 // pred_fallthru
      _
    // Predicated region
    $region6: #{tpu_custom_call.1} parent=1 // pred_check
      _
    $region7: #{tpu_custom_call.1} parent=1 // pred_check_branch
      %29 = sbr.rel (0) target = $region9
    $region8: #{tpu_custom_call.1} parent=1 // pred_region
      %s31 = ssub.s32 1024, 1024
      %32 = vsyncadd [#allocation6], %s31
      %s33 = sshll.u32 [#allocation5], 4
      %s34 = int_to_ptr.vmem [resolvable:$true] %s33
      %39 = dma.hbm_to_vmem [thread:$0]  %s1, 1024, %s34, [#allocation6], 256, 256, 16
    $region9: #{tpu_custom_call.1} parent=1 // pred_fallthru
      _
    // Predicated region
    $region10: #{tpu_custom_call.1} parent=1 // pred_check
      _
    $region11: #{tpu_custom_call.1} parent=1 // pred_check_branch
      %41 = sbr.rel (0) target = $region13
    $region12: #{tpu_custom_call.1} parent=1 // pred_region
      _
    $region13: #{tpu_custom_call.1} parent=1 // pred_fallthru
      _
    // Predicated region
    $region14: #{tpu_custom_call.1} parent=1 // pred_check
      _
    $region15: #{tpu_custom_call.1} parent=1 // pred_check_branch
      %43 = sbr.rel (0) target = $region17
    $region16: #{tpu_custom_call.1} parent=1 // pred_region
      %s45 = ssub.s32 16384, 16384
      %46 = vsyncadd [#allocation6], %s45
      %s47 = sshll.u32 [#allocation7], 4
      %s48 = int_to_ptr.vmem [resolvable:$true] %s47
      %53 = dma.hbm_to_vmem [thread:$0]  %s3, 16384, %s48, [#allocation6], 256, 256, 16
    $region17: #{tpu_custom_call.1} parent=1 // pred_fallthru
      _
    // Predicated region
    $region18: #{tpu_custom_call.1} parent=1 // pred_check
      _
    $region19: #{tpu_custom_call.1} parent=1 // pred_check_branch
      %55 = sbr.rel (0) target = $region21
    $region20: #{tpu_custom_call.1} parent=1 // pred_region
      _
    $region21: #{tpu_custom_call.1} parent=1 // pred_fallthru
      _
    // Predicated region
    $region22: #{tpu_custom_call.1} parent=1 // pred_check
      _
    $region23: #{tpu_custom_call.1} parent=1 // pred_check_branch
      %57 = sbr.rel (0) target = $region25
    $region24: #{tpu_custom_call.1} parent=1 // pred_region
      %s59 = ssub.s32 16384, 16384
      %60 = vsyncadd [#allocation9], %s59
      %s61 = sshll.u32 [#allocation8], 4
      %s62 = int_to_ptr.vmem [resolvable:$true] %s61
      %67 = dma.hbm_to_vmem [thread:$0]  %s5, 16384, %s62, [#allocation9], 256, 256, 16
    $region25: #{tpu_custom_call.1} parent=1 // pred_fallthru
      _
    // Predicated region
    $region26: #{tpu_custom_call.1} parent=1 // pred_check
      _
    $region27: #{tpu_custom_call.1} parent=1 // pred_check_branch
      %69 = sbr.rel (0) target = $region29
    $region28: #{tpu_custom_call.1} parent=1 // pred_region
      _
    $region29: #{tpu_custom_call.1} parent=1 // pred_fallthru
      _
    // Predicated region
    $region30: #{tpu_custom_call.1} parent=1 // pred_check
      _
    $region31: #{tpu_custom_call.1} parent=1 // pred_check_branch
      %71 = sbr.rel (0) target = $region33
    $region32: #{tpu_custom_call.1} parent=1 // pred_region
      %s73 = ssub.s32 28672, 28672
      %74 = vsyncadd [#allocation9], %s73
      %s75 = sshll.u32 [#allocation10], 4
      %s76 = int_to_ptr.vmem [resolvable:$true] %s75
      %81 = dma.hbm_to_vmem [thread:$0]  %s7, 28672, %s76, [#allocation9], 448, 448, 28
    $region33: #{tpu_custom_call.1} parent=1 // pred_fallthru
      _
    // Predicated region
    $region34: #{tpu_custom_call.1} parent=1 // pred_check
      _
    $region35: #{tpu_custom_call.1} parent=1 // pred_check_branch
      %83 = sbr.rel (0) target = $region37
    $region36: #{tpu_custom_call.1} parent=1 // pred_region
      _
    $region37: #{tpu_custom_call.1} parent=1 // pred_fallthru
      _
    // Predicated region
    $region38: #{tpu_custom_call.1} parent=1 // pred_check
      _
    $region39: #{tpu_custom_call.1} parent=1 // pred_check_branch
      %85 = sbr.rel (0) target = $region41
    $region40: #{tpu_custom_call.1} parent=1 // pred_region
      %86 = dma.done [#allocation3], 128
    $region41: #{tpu_custom_call.1} parent=1 // pred_fallthru
      _
    // Predicated region
    $region42: #{tpu_custom_call.1} parent=1 // pred_check
      _
    $region43: #{tpu_custom_call.1} parent=1 // pred_check_branch
      %88 = sbr.rel (0) target = $region45
    $region44: #{tpu_custom_call.1} parent=1 // pred_region
      %89 = dma.done [#allocation6], 1024
    $region45: #{tpu_custom_call.1} parent=1 // pred_fallthru
      _
    // Predicated region
    $region46: #{tpu_custom_call.1} parent=1 // pred_check
      _
    $region47: #{tpu_custom_call.1} parent=1 // pred_check_branch
      %91 = sbr.rel (0) target = $region49
    $region48: #{tpu_custom_call.1} parent=1 // pred_region
      %92 = dma.done [#allocation6], 16384
    $region49: #{tpu_custom_call.1} parent=1 // pred_fallthru
      _
    // Predicated region
    $region50: #{tpu_custom_call.1} parent=1 // pred_check
      _
    $region51: #{tpu_custom_call.1} parent=1 // pred_check_branch
      %94 = sbr.rel (0) target = $region53
    $region52: #{tpu_custom_call.1} parent=1 // pred_region
      %95 = dma.done [#allocation9], 16384
    $region53: #{tpu_custom_call.1} parent=1 // pred_fallthru
      _
    // Predicated region
    $region54: #{tpu_custom_call.1} parent=1 // pred_check
      _
    $region55: #{tpu_custom_call.1} parent=1 // pred_check_branch
      %97 = sbr.rel (0) target = $region57
    $region56: #{tpu_custom_call.1} parent=1 // pred_region
      %98 = dma.done [#allocation9], 28672
    $region57: #{tpu_custom_call.1} parent=1 // pred_fallthru
      _
    %v100 = vld [vmem:[#allocation2] sm:$0xff]
    %v101 = vpack.c.bf16 %v100, %v100
    %v102 = vld [vmem:[#allocation5] sm:$0xff]
    %v103 = vld [vmem:[#allocation5 + $0x8] sm:$0xff]
    %v104 = vld [vmem:[#allocation5 + $0x10] sm:$0xff]
    %v105 = vld [vmem:[#allocation5 + $0x18] sm:$0xff]
    %v106 = vld [vmem:[#allocation5 + $0x20] sm:$0xff]
    %v107 = vld [vmem:[#allocation5 + $0x28] sm:$0xff]
    %v108 = vld [vmem:[#allocation5 + $0x30] sm:$0xff]
    %v109 = vld [vmem:[#allocation5 + $0x38] sm:$0xff]
    %v110 = vld [vmem:[%s2] sm:$0xf]
    %v112 = vlaneseq
    %v113 = vshrl.u32 %v112, 7
    %v114 = vsub.s32 0, %v113
    %v115 = vrot.slane %v110, %v114
    %v116 = vlaneseq
    %v117 = vshrl.u32 %v116, 7
    %v118 = vsub.s32 1, %v117
    %v119 = vrot.slane %v110, %v118
    %v120 = vlaneseq
    %v121 = vshrl.u32 %v120, 7
    %v122 = vsub.s32 2, %v121
    %v123 = vrot.slane %v110, %v122
    %v124 = vlaneseq
    %v125 = vshrl.u32 %v124, 7
    %v126 = vsub.s32 3, %v125
    %v127 = vrot.slane %v110, %v126
    %v140 = vunpack.c.l.b16 %v102
    %v141 = vunpack.c.h.b16 %v102
    %v142 = vunpack.c.l.b16 %v103
    %v143 = vunpack.c.h.b16 %v103
    %v144 = vunpack.c.l.b16 %v104
    %v145 = vunpack.c.h.b16 %v104
    %v146 = vunpack.c.l.b16 %v105
    %v147 = vunpack.c.h.b16 %v105
    %v148 = vunpack.c.l.b16 %v106
    %v149 = vunpack.c.h.b16 %v106
    %v150 = vunpack.c.l.b16 %v107
    %v151 = vunpack.c.h.b16 %v107
    %v152 = vunpack.c.l.b16 %v108
    %v153 = vunpack.c.h.b16 %v108
    %v154 = vunpack.c.l.b16 %v109
    %v155 = vunpack.c.h.b16 %v109
    %v156 = vpack.c.b16 %v144, %v140
    %v157 = vpack.c.b16 %v145, %v141
    %v158 = vpack.c.b16 %v146, %v142
    %v159 = vpack.c.b16 %v147, %v143
    %v160 = vpack.c.b16 %v152, %v148
    %v161 = vpack.c.b16 %v153, %v149
    %v162 = vpack.c.b16 %v154, %v150
    %v163 = vpack.c.b16 %v155, %v151
    %vm172 = vcmask 261120
    %v174 = vsel %vm172, %v101, 0
    %176 = vmatprep.subr.bf16.mxu0 %v157
    %177 = vmatpush1.bf16.msra.mxu0 %v156
    %178 = vmatprep.subr.bf16.mxu0 %v161
    %179 = vmatpush1.bf16.msra.mxu0 %v160
    %180 = vmatprep.subr.bf16.mxu0 0
    %181 = vmatpush1.bf16.msra.mxu0 0
    %182 = vmatprep.subr.bf16.mxu0 0
    %183 = vmatpush1.bf16.msra.mxu0 0
    %184 = vmatprep.subr.bf16.mxu0 0
    %185 = vmatpush1.bf16.msra.mxu0 0
    %186 = vmatprep.subr.bf16.mxu0 0
    %187 = vmatpush1.bf16.msra.mxu0 0
    %188 = vmatprep.subr.bf16.mxu0 0
    %189 = vmatpush1.bf16.msra.mxu0 0
    %190 = vmatprep.subr.bf16.mxu0 0
    %191 = vmatpush1.bf16.msra.mxu0 0
    %192 = vmatprep.subr.bf16.mxu0 0
    %193 = vmatpush1.bf16.msra.mxu0 0
    %194 = vmatprep.subr.bf16.mxu0 0
    %195 = vmatpush1.bf16.msra.mxu0 0
    %196 = vmatprep.subr.bf16.mxu0 0
    %197 = vmatpush1.bf16.msra.mxu0 0
    %198 = vmatprep.subr.bf16.mxu0 0
    %199 = vmatpush1.bf16.msra.mxu0 0
    %200 = vmatprep.subr.bf16.mxu0 0
    %201 = vmatpush1.bf16.msra.mxu0 0
    %202 = vmatprep.subr.bf16.mxu0 0
    %203 = vmatpush1.bf16.msra.mxu0 0
    %204 = vmatprep.subr.bf16.mxu0 0
    %205 = vmatpush1.bf16.msra.mxu0 0
    %206 = vmatprep.subr.bf16.mxu0 0
    %207 = vmatpush1.bf16.msra.mxu0 0
    %208 = vmatprep.mubr.bf16.mxu0 0
    %209 = vmatmul.mubr.bf16.gmra.mrb[0].mxu0 %v174
    %v210 = vpop.f32.mrb[0].mxu0
    %v211 = vadd.f32 %v115, %v210
    %v212 = vpop.f32.mrb[0].mxu0
    %v213 = vadd.f32 %v119, %v212
    %v214 = vpop.f32.mrb[0].mxu0
    %v215 = vpop.f32.mrb[0].mxu0
    %216 = vdwg.mxu0
    %217 = vmatprep.subr.bf16.mxu0 %v159
    %218 = vmatpush1.bf16.msra.mxu0 %v158
    %219 = vmatprep.subr.bf16.mxu0 %v163
    %220 = vmatpush1.bf16.msra.mxu0 %v162
    %221 = vmatprep.subr.bf16.mxu0 0
    %222 = vmatpush1.bf16.msra.mxu0 0
    %223 = vmatprep.subr.bf16.mxu0 0
    %224 = vmatpush1.bf16.msra.mxu0 0
    %225 = vmatprep.subr.bf16.mxu0 0
    %226 = vmatpush1.bf16.msra.mxu0 0
    %227 = vmatprep.subr.bf16.mxu0 0
    %228 = vmatpush1.bf16.msra.mxu0 0
    %229 = vmatprep.subr.bf16.mxu0 0
    %230 = vmatpush1.bf16.msra.mxu0 0
    %231 = vmatprep.subr.bf16.mxu0 0
    %232 = vmatpush1.bf16.msra.mxu0 0
    %233 = vmatprep.subr.bf16.mxu0 0
    %234 = vmatpush1.bf16.msra.mxu0 0
    %235 = vmatprep.subr.bf16.mxu0 0
    %236 = vmatpush1.bf16.msra.mxu0 0
    %237 = vmatprep.subr.bf16.mxu0 0
    %238 = vmatpush1.bf16.msra.mxu0 0
    %239 = vmatprep.subr.bf16.mxu0 0
    %240 = vmatpush1.bf16.msra.mxu0 0
    %241 = vmatprep.subr.bf16.mxu0 0
    %242 = vmatpush1.bf16.msra.mxu0 0
    %243 = vmatprep.subr.bf16.mxu0 0
    %244 = vmatpush1.bf16.msra.mxu0 0
    %245 = vmatprep.subr.bf16.mxu0 0
    %246 = vmatpush1.bf16.msra.mxu0 0
    %247 = vmatprep.subr.bf16.mxu0 0
    %248 = vmatpush1.bf16.msra.mxu0 0
    %249 = vmatprep.mubr.bf16.mxu0 0
    %250 = vmatmul.mubr.bf16.gmra.mrb[0].mxu0 %v174
    %v251 = vpop.f32.mrb[0].mxu0
    %v252 = vadd.f32 %v123, %v251
    %v253 = vpop.f32.mrb[0].mxu0
    %v254 = vadd.f32 %v127, %v253
    %v255 = vpop.f32.mrb[0].mxu0
    %v256 = vpop.f32.mrb[0].mxu0
    %257 = vdwg.mxu0
    %v258 = vxor.u32 %v211, 2147483648
    %v259 = vxor.u32 %v213, 2147483648
    %v260 = vxor.u32 %v252, 2147483648
    %v261 = vxor.u32 %v254, 2147483648
    %v262 = vmul.f32 %v258, 1.442695
    %v263 = vpow.pop %v262
    %v264 = vmul.f32 %v259, 1.442695
    %v265 = vpow.pop %v264
    %v266 = vmul.f32 %v260, 1.442695
    %v267 = vpow.pop %v266
    %v268 = vmul.f32 %v261, 1.442695
    %v269 = vpow.pop %v268
    %v270 = vadd.f32 %v263, 1.0
    %v271 = vadd.f32 %v265, 1.0
    %v272 = vadd.f32 %v267, 1.0
    %v273 = vadd.f32 %v269, 1.0
    %v274 = vrcp.pop %v270
    %v275 = vmul.f32 1.0, %v274
    %v276 = vrcp.pop %v271
    %v277 = vmul.f32 1.0, %v276
    %v278 = vrcp.pop %v272
    %v279 = vmul.f32 1.0, %v278
    %v280 = vrcp.pop %v273
    %v281 = vmul.f32 1.0, %v280
    %v282 = vmul.f32 %v211, %v275
    %v283 = vmul.f32 %v213, %v277
    %v284 = vmul.f32 %v252, %v279
    %v285 = vmul.f32 %v254, %v281
    %v286 = vpack.c.bf16 %v282, %v282
    %v287 = vpack.c.bf16 %v283, %v283
    %v288 = vpack.c.bf16 %v284, %v284
    %v289 = vpack.c.bf16 %v285, %v285
    %v290 = vld [vmem:[#allocation7] sm:$0xff]
    %v291 = vld [vmem:[#allocation7 + $0x8] sm:$0xff]
    %v292 = vld [vmem:[#allocation7 + $0x10] sm:$0xff]
    %v293 = vld [vmem:[#allocation7 + $0x18] sm:$0xff]
    %v294 = vld [vmem:[#allocation7 + $0x20] sm:$0xff]
    %v295 = vld [vmem:[#allocation7 + $0x28] sm:$0xff]
    %v296 = vld [vmem:[#allocation7 + $0x30] sm:$0xff]
    %v297 = vld [vmem:[#allocation7 + $0x38] sm:$0xff]
    %v298 = vld [vmem:[#allocation7 + $0x40] sm:$0xff]
    %v299 = vld [vmem:[#allocation7 + $0x48] sm:$0xff]
    %v300 = vld [vmem:[#allocation7 + $0x50] sm:$0xff]
    %v301 = vld [vmem:[#allocation7 + $0x58] sm:$0xff]
    %v302 = vld [vmem:[#allocation7 + $0x60] sm:$0xff]
    %v303 = vld [vmem:[#allocation7 + $0x68] sm:$0xff]
    %v304 = vld [vmem:[#allocation7 + $0x70] sm:$0xff]
    %v305 = vld [vmem:[#allocation7 + $0x78] sm:$0xff]
    %v306 = vld [vmem:[#allocation7 + $0x80] sm:$0xff]
    %v307 = vld [vmem:[#allocation7 + $0x88] sm:$0xff]
    %v308 = vld [vmem:[#allocation7 + $0x90] sm:$0xff]
    %v309 = vld [vmem:[#allocation7 + $0x98] sm:$0xff]
    %v310 = vld [vmem:[#allocation7 + $0xa0] sm:$0xff]
    %v311 = vld [vmem:[#allocation7 + $0xa8] sm:$0xff]
    %v312 = vld [vmem:[#allocation7 + $0xb0] sm:$0xff]
    %v313 = vld [vmem:[#allocation7 + $0xb8] sm:$0xff]
    %v314 = vld [vmem:[#allocation7 + $0xc0] sm:$0xff]
    %v315 = vld [vmem:[#allocation7 + $0xc8] sm:$0xff]
    %v316 = vld [vmem:[#allocation7 + $0xd0] sm:$0xff]
    %v317 = vld [vmem:[#allocation7 + $0xd8] sm:$0xff]
    %v318 = vld [vmem:[#allocation7 + $0xe0] sm:$0xff]
    %v319 = vld [vmem:[#allocation7 + $0xe8] sm:$0xff]
    %v320 = vld [vmem:[#allocation7 + $0xf0] sm:$0xff]
    %v321 = vld [vmem:[#allocation7 + $0xf8] sm:$0xff]
    %v322 = vld [vmem:[#allocation7 + $0x100] sm:$0xff]
    %v323 = vld [vmem:[#allocation7 + $0x108] sm:$0xff]
    %v324 = vld [vmem:[#allocation7 + $0x110] sm:$0xff]
    %v325 = vld [vmem:[#allocation7 + $0x118] sm:$0xff]
    %v326 = vld [vmem:[#allocation7 + $0x120] sm:$0xff]
    %v327 = vld [vmem:[#allocation7 + $0x128] sm:$0xff]
    %v328 = vld [vmem:[#allocation7 + $0x130] sm:$0xff]
    %v329 = vld [vmem:[#allocation7 + $0x138] sm:$0xff]
    %v330 = vld [vmem:[#allocation7 + $0x140] sm:$0xff]
    %v331 = vld [vmem:[#allocation7 + $0x148] sm:$0xff]
    %v332 = vld [vmem:[#allocation7 + $0x150] sm:$0xff]
    %v333 = vld [vmem:[#allocation7 + $0x158] sm:$0xff]
    %v334 = vld [vmem:[#allocation7 + $0x160] sm:$0xff]
    %v335 = vld [vmem:[#allocation7 + $0x168] sm:$0xff]
    %v336 = vld [vmem:[#allocation7 + $0x170] sm:$0xff]
    %v337 = vld [vmem:[#allocation7 + $0x178] sm:$0xff]
    %v338 = vld [vmem:[#allocation7 + $0x180] sm:$0xff]
    %v339 = vld [vmem:[#allocation7 + $0x188] sm:$0xff]
    %v340 = vld [vmem:[#allocation7 + $0x190] sm:$0xff]
    %v341 = vld [vmem:[#allocation7 + $0x198] sm:$0xff]
    %v342 = vld [vmem:[#allocation7 + $0x1a0] sm:$0xff]
    %v343 = vld [vmem:[#allocation7 + $0x1a8] sm:$0xff]
    %v344 = vld [vmem:[#allocation7 + $0x1b0] sm:$0xff]
    %v345 = vld [vmem:[#allocation7 + $0x1b8] sm:$0xff]
    %v346 = vld [vmem:[#allocation7 + $0x1c0] sm:$0xff]
    %v347 = vld [vmem:[#allocation7 + $0x1c8] sm:$0xff]
    %v348 = vld [vmem:[#allocation7 + $0x1d0] sm:$0xff]
    %v349 = vld [vmem:[#allocation7 + $0x1d8] sm:$0xff]
    %v350 = vld [vmem:[#allocation7 + $0x1e0] sm:$0xff]
    %v351 = vld [vmem:[#allocation7 + $0x1e8] sm:$0xff]
    %v352 = vld [vmem:[#allocation7 + $0x1f0] sm:$0xff]
    %v353 = vld [vmem:[#allocation7 + $0x1f8] sm:$0xff]
    %v354 = vld [vmem:[#allocation7 + $0x200] sm:$0xff]
    %v355 = vld [vmem:[#allocation7 + $0x208] sm:$0xff]
    %v356 = vld [vmem:[#allocation7 + $0x210] sm:$0xff]
    %v357 = vld [vmem:[#allocation7 + $0x218] sm:$0xff]
    %v358 = vld [vmem:[#allocation7 + $0x220] sm:$0xff]
    %v359 = vld [vmem:[#allocation7 + $0x228] sm:$0xff]
    %v360 = vld [vmem:[#allocation7 + $0x230] sm:$0xff]
    %v361 = vld [vmem:[#allocation7 + $0x238] sm:$0xff]
    %v362 = vld [vmem:[#allocation7 + $0x240] sm:$0xff]
    %v363 = vld [vmem:[#allocation7 + $0x248] sm:$0xff]
    %v364 = vld [vmem:[#allocation7 + $0x250] sm:$0xff]
    %v365 = vld [vmem:[#allocation7 + $0x258] sm:$0xff]
    %v366 = vld [vmem:[#allocation7 + $0x260] sm:$0xff]
    %v367 = vld [vmem:[#allocation7 + $0x268] sm:$0xff]
    %v368 = vld [vmem:[#allocation7 + $0x270] sm:$0xff]
    %v369 = vld [vmem:[#allocation7 + $0x278] sm:$0xff]
    %v370 = vld [vmem:[#allocation7 + $0x280] sm:$0xff]
    %v371 = vld [vmem:[#allocation7 + $0x288] sm:$0xff]
    %v372 = vld [vmem:[#allocation7 + $0x290] sm:$0xff]
    %v373 = vld [vmem:[#allocation7 + $0x298] sm:$0xff]
    %v374 = vld [vmem:[#allocation7 + $0x2a0] sm:$0xff]
    %v375 = vld [vmem:[#allocation7 + $0x2a8] sm:$0xff]
    %v376 = vld [vmem:[#allocation7 + $0x2b0] sm:$0xff]
    %v377 = vld [vmem:[#allocation7 + $0x2b8] sm:$0xff]
    %v378 = vld [vmem:[#allocation7 + $0x2c0] sm:$0xff]
    %v379 = vld [vmem:[#allocation7 + $0x2c8] sm:$0xff]
    %v380 = vld [vmem:[#allocation7 + $0x2d0] sm:$0xff]
    %v381 = vld [vmem:[#allocation7 + $0x2d8] sm:$0xff]
    %v382 = vld [vmem:[#allocation7 + $0x2e0] sm:$0xff]
    %v383 = vld [vmem:[#allocation7 + $0x2e8] sm:$0xff]
    %v384 = vld [vmem:[#allocation7 + $0x2f0] sm:$0xff]
    %v385 = vld [vmem:[#allocation7 + $0x2f8] sm:$0xff]
    %v386 = vld [vmem:[#allocation7 + $0x300] sm:$0xff]
    %v387 = vld [vmem:[#allocation7 + $0x308] sm:$0xff]
    %v388 = vld [vmem:[#allocation7 + $0x310] sm:$0xff]
    %v389 = vld [vmem:[#allocation7 + $0x318] sm:$0xff]
    %v390 = vld [vmem:[#allocation7 + $0x320] sm:$0xff]
    %v391 = vld [vmem:[#allocation7 + $0x328] sm:$0xff]
    %v392 = vld [vmem:[#allocation7 + $0x330] sm:$0xff]
    %v393 = vld [vmem:[#allocation7 + $0x338] sm:$0xff]
    %v394 = vld [vmem:[#allocation7 + $0x340] sm:$0xff]
    %v395 = vld [vmem:[#allocation7 + $0x348] sm:$0xff]
    %v396 = vld [vmem:[#allocation7 + $0x350] sm:$0xff]
    %v397 = vld [vmem:[#allocation7 + $0x358] sm:$0xff]
    %v398 = vld [vmem:[#allocation7 + $0x360] sm:$0xff]
    %v399 = vld [vmem:[#allocation7 + $0x368] sm:$0xff]
    %v400 = vld [vmem:[#allocation7 + $0x370] sm:$0xff]
    %v401 = vld [vmem:[#allocation7 + $0x378] sm:$0xff]
    %v402 = vld [vmem:[#allocation7 + $0x380] sm:$0xff]
    %v403 = vld [vmem:[#allocation7 + $0x388] sm:$0xff]
    %v404 = vld [vmem:[#allocation7 + $0x390] sm:$0xff]
    %v405 = vld [vmem:[#allocation7 + $0x398] sm:$0xff]
    %v406 = vld [vmem:[#allocation7 + $0x3a0] sm:$0xff]
    %v407 = vld [vmem:[#allocation7 + $0x3a8] sm:$0xff]
    %v408 = vld [vmem:[#allocation7 + $0x3b0] sm:$0xff]
    %v409 = vld [vmem:[#allocation7 + $0x3b8] sm:$0xff]
    %v410 = vld [vmem:[#allocation7 + $0x3c0] sm:$0xff]
    %v411 = vld [vmem:[#allocation7 + $0x3c8] sm:$0xff]
    %v412 = vld [vmem:[#allocation7 + $0x3d0] sm:$0xff]
    %v413 = vld [vmem:[#allocation7 + $0x3d8] sm:$0xff]
    %v414 = vld [vmem:[#allocation7 + $0x3e0] sm:$0xff]
    %v415 = vld [vmem:[#allocation7 + $0x3e8] sm:$0xff]
    %v416 = vld [vmem:[#allocation7 + $0x3f0] sm:$0xff]
    %v417 = vld [vmem:[#allocation7 + $0x3f8] sm:$0xff]
    %v418 = vld [vmem:[%s4] sm:$0xf]
    %v420 = vlaneseq
    %v421 = vshrl.u32 %v420, 7
    %v422 = vsub.s32 0, %v421
    %v423 = vrot.slane %v418, %v422
    %v424 = vlaneseq
    %v425 = vshrl.u32 %v424, 7
    %v426 = vsub.s32 1, %v425
    %v427 = vrot.slane %v418, %v426
    %v428 = vlaneseq
    %v429 = vshrl.u32 %v428, 7
    %v430 = vsub.s32 2, %v429
    %v431 = vrot.slane %v418, %v430
    %v432 = vlaneseq
    %v433 = vshrl.u32 %v432, 7
    %v434 = vsub.s32 3, %v433
    %v435 = vrot.slane %v418, %v434
    %v568 = vunpack.c.l.b16 %v290
    %v569 = vunpack.c.h.b16 %v290
    %v570 = vunpack.c.l.b16 %v291
    %v571 = vunpack.c.h.b16 %v291
    %v572 = vunpack.c.l.b16 %v292
    %v573 = vunpack.c.h.b16 %v292
    %v574 = vunpack.c.l.b16 %v293
    %v575 = vunpack.c.h.b16 %v293
    %v576 = vunpack.c.l.b16 %v294
    %v577 = vunpack.c.h.b16 %v294
    %v578 = vunpack.c.l.b16 %v295
    %v579 = vunpack.c.h.b16 %v295
    %v580 = vunpack.c.l.b16 %v296
    %v581 = vunpack.c.h.b16 %v296
    %v582 = vunpack.c.l.b16 %v297
    %v583 = vunpack.c.h.b16 %v297
    %v584 = vunpack.c.l.b16 %v298
    %v585 = vunpack.c.h.b16 %v298
    %v586 = vunpack.c.l.b16 %v299
    %v587 = vunpack.c.h.b16 %v299
    %v588 = vunpack.c.l.b16 %v300
    %v589 = vunpack.c.h.b16 %v300
    %v590 = vunpack.c.l.b16 %v301
    %v591 = vunpack.c.h.b16 %v301
    %v592 = vunpack.c.l.b16 %v302
    %v593 = vunpack.c.h.b16 %v302
    %v594 = vunpack.c.l.b16 %v303
    %v595 = vunpack.c.h.b16 %v303
    %v596 = vunpack.c.l.b16 %v304
    %v597 = vunpack.c.h.b16 %v304
    %v598 = vunpack.c.l.b16 %v305
    %v599 = vunpack.c.h.b16 %v305
    %v600 = vunpack.c.l.b16 %v306
    %v601 = vunpack.c.h.b16 %v306
    %v602 = vunpack.c.l.b16 %v307
    %v603 = vunpack.c.h.b16 %v307
    %v604 = vunpack.c.l.b16 %v308
    %v605 = vunpack.c.h.b16 %v308
    %v606 = vunpack.c.l.b16 %v309
    %v607 = vunpack.c.h.b16 %v309
    %v608 = vunpack.c.l.b16 %v310
    %v609 = vunpack.c.h.b16 %v310
    %v610 = vunpack.c.l.b16 %v311
    %v611 = vunpack.c.h.b16 %v311
    %v612 = vunpack.c.l.b16 %v312
    %v613 = vunpack.c.h.b16 %v312
    %v614 = vunpack.c.l.b16 %v313
    %v615 = vunpack.c.h.b16 %v313
    %v616 = vunpack.c.l.b16 %v314
    %v617 = vunpack.c.h.b16 %v314
    %v618 = vunpack.c.l.b16 %v315
    %v619 = vunpack.c.h.b16 %v315
    %v620 = vunpack.c.l.b16 %v316
    %v621 = vunpack.c.h.b16 %v316
    %v622 = vunpack.c.l.b16 %v317
    %v623 = vunpack.c.h.b16 %v317
    %v624 = vunpack.c.l.b16 %v318
    %v625 = vunpack.c.h.b16 %v318
    %v626 = vunpack.c.l.b16 %v319
    %v627 = vunpack.c.h.b16 %v319
    %v628 = vunpack.c.l.b16 %v320
    %v629 = vunpack.c.h.b16 %v320
    %v630 = vunpack.c.l.b16 %v321
    %v631 = vunpack.c.h.b16 %v321
    %v632 = vunpack.c.l.b16 %v322
    %v633 = vunpack.c.h.b16 %v322
    %v634 = vunpack.c.l.b16 %v323
    %v635 = vunpack.c.h.b16 %v323
    %v636 = vunpack.c.l.b16 %v324
    %v637 = vunpack.c.h.b16 %v324
    %v638 = vunpack.c.l.b16 %v325
    %v639 = vunpack.c.h.b16 %v325
    %v640 = vunpack.c.l.b16 %v326
    %v641 = vunpack.c.h.b16 %v326
    %v642 = vunpack.c.l.b16 %v327
    %v643 = vunpack.c.h.b16 %v327
    %v644 = vunpack.c.l.b16 %v328
    %v645 = vunpack.c.h.b16 %v328
    %v646 = vunpack.c.l.b16 %v329
    %v647 = vunpack.c.h.b16 %v329
    %v648 = vunpack.c.l.b16 %v330
    %v649 = vunpack.c.h.b16 %v330
    %v650 = vunpack.c.l.b16 %v331
    %v651 = vunpack.c.h.b16 %v331
    %v652 = vunpack.c.l.b16 %v332
    %v653 = vunpack.c.h.b16 %v332
    %v654 = vunpack.c.l.b16 %v333
    %v655 = vunpack.c.h.b16 %v333
    %v656 = vunpack.c.l.b16 %v334
    %v657 = vunpack.c.h.b16 %v334
    %v658 = vunpack.c.l.b16 %v335
    %v659 = vunpack.c.h.b16 %v335
    %v660 = vunpack.c.l.b16 %v336
    %v661 = vunpack.c.h.b16 %v336
    %v662 = vunpack.c.l.b16 %v337
    %v663 = vunpack.c.h.b16 %v337
    %v664 = vunpack.c.l.b16 %v338
    %v665 = vunpack.c.h.b16 %v338
    %v666 = vunpack.c.l.b16 %v339
    %v667 = vunpack.c.h.b16 %v339
    %v668 = vunpack.c.l.b16 %v340
    %v669 = vunpack.c.h.b16 %v340
    %v670 = vunpack.c.l.b16 %v341
    %v671 = vunpack.c.h.b16 %v341
    %v672 = vunpack.c.l.b16 %v342
    %v673 = vunpack.c.h.b16 %v342
    %v674 = vunpack.c.l.b16 %v343
    %v675 = vunpack.c.h.b16 %v343
    %v676 = vunpack.c.l.b16 %v344
    %v677 = vunpack.c.h.b16 %v344
    %v678 = vunpack.c.l.b16 %v345
    %v679 = vunpack.c.h.b16 %v345
    %v680 = vunpack.c.l.b16 %v346
    %v681 = vunpack.c.h.b16 %v346
    %v682 = vunpack.c.l.b16 %v347
    %v683 = vunpack.c.h.b16 %v347
    %v684 = vunpack.c.l.b16 %v348
    %v685 = vunpack.c.h.b16 %v348
    %v686 = vunpack.c.l.b16 %v349
    %v687 = vunpack.c.h.b16 %v349
    %v688 = vunpack.c.l.b16 %v350
    %v689 = vunpack.c.h.b16 %v350
    %v690 = vunpack.c.l.b16 %v351
    %v691 = vunpack.c.h.b16 %v351
    %v692 = vunpack.c.l.b16 %v352
    %v693 = vunpack.c.h.b16 %v352
    %v694 = vunpack.c.l.b16 %v353
    %v695 = vunpack.c.h.b16 %v353
    %v696 = vunpack.c.l.b16 %v354
    %v697 = vunpack.c.h.b16 %v354
    %v698 = vunpack.c.l.b16 %v355
    %v699 = vunpack.c.h.b16 %v355
    %v700 = vunpack.c.l.b16 %v356
    %v701 = vunpack.c.h.b16 %v356
    %v702 = vunpack.c.l.b16 %v357
    %v703 = vunpack.c.h.b16 %v357
    %v704 = vunpack.c.l.b16 %v358
    %v705 = vunpack.c.h.b16 %v358
    %v706 = vunpack.c.l.b16 %v359
    %v707 = vunpack.c.h.b16 %v359
    %v708 = vunpack.c.l.b16 %v360
    %v709 = vunpack.c.h.b16 %v360
    %v710 = vunpack.c.l.b16 %v361
    %v711 = vunpack.c.h.b16 %v361
    %v712 = vunpack.c.l.b16 %v362
    %v713 = vunpack.c.h.b16 %v362
    %v714 = vunpack.c.l.b16 %v363
    %v715 = vunpack.c.h.b16 %v363
    %v716 = vunpack.c.l.b16 %v364
    %v717 = vunpack.c.h.b16 %v364
    %v718 = vunpack.c.l.b16 %v365
    %v719 = vunpack.c.h.b16 %v365
    %v720 = vunpack.c.l.b16 %v366
    %v721 = vunpack.c.h.b16 %v366
    %v722 = vunpack.c.l.b16 %v367
    %v723 = vunpack.c.h.b16 %v367
    %v724 = vunpack.c.l.b16 %v368
    %v725 = vunpack.c.h.b16 %v368
    %v726 = vunpack.c.l.b16 %v369
    %v727 = vunpack.c.h.b16 %v369
    %v728 = vunpack.c.l.b16 %v370
    %v729 = vunpack.c.h.b16 %v370
    %v730 = vunpack.c.l.b16 %v371
    %v731 = vunpack.c.h.b16 %v371
    %v732 = vunpack.c.l.b16 %v372
    %v733 = vunpack.c.h.b16 %v372
    %v734 = vunpack.c.l.b16 %v373
    %v735 = vunpack.c.h.b16 %v373
    %v736 = vunpack.c.l.b16 %v374
    %v737 = vunpack.c.h.b16 %v374
    %v738 = vunpack.c.l.b16 %v375
    %v739 = vunpack.c.h.b16 %v375
    %v740 = vunpack.c.l.b16 %v376
    %v741 = vunpack.c.h.b16 %v376
    %v742 = vunpack.c.l.b16 %v377
    %v743 = vunpack.c.h.b16 %v377
    %v744 = vunpack.c.l.b16 %v378
    %v745 = vunpack.c.h.b16 %v378
    %v746 = vunpack.c.l.b16 %v379
    %v747 = vunpack.c.h.b16 %v379
    %v748 = vunpack.c.l.b16 %v380
    %v749 = vunpack.c.h.b16 %v380
    %v750 = vunpack.c.l.b16 %v381
    %v751 = vunpack.c.h.b16 %v381
    %v752 = vunpack.c.l.b16 %v382
    %v753 = vunpack.c.h.b16 %v382
    %v754 = vunpack.c.l.b16 %v383
    %v755 = vunpack.c.h.b16 %v383
    %v756 = vunpack.c.l.b16 %v384
    %v757 = vunpack.c.h.b16 %v384
    %v758 = vunpack.c.l.b16 %v385
    %v759 = vunpack.c.h.b16 %v385
    %v760 = vunpack.c.l.b16 %v386
    %v761 = vunpack.c.h.b16 %v386
    %v762 = vunpack.c.l.b16 %v387
    %v763 = vunpack.c.h.b16 %v387
    %v764 = vunpack.c.l.b16 %v388
    %v765 = vunpack.c.h.b16 %v388
    %v766 = vunpack.c.l.b16 %v389
    %v767 = vunpack.c.h.b16 %v389
    %v768 = vunpack.c.l.b16 %v390
    %v769 = vunpack.c.h.b16 %v390
    %v770 = vunpack.c.l.b16 %v391
    %v771 = vunpack.c.h.b16 %v391
    %v772 = vunpack.c.l.b16 %v392
    %v773 = vunpack.c.h.b16 %v392
    %v774 = vunpack.c.l.b16 %v393
    %v775 = vunpack.c.h.b16 %v393
    %v776 = vunpack.c.l.b16 %v394
    %v777 = vunpack.c.h.b16 %v394
    %v778 = vunpack.c.l.b16 %v395
    %v779 = vunpack.c.h.b16 %v395
    %v780 = vunpack.c.l.b16 %v396
    %v781 = vunpack.c.h.b16 %v396
    %v782 = vunpack.c.l.b16 %v397
    %v783 = vunpack.c.h.b16 %v397
    %v784 = vunpack.c.l.b16 %v398
    %v785 = vunpack.c.h.b16 %v398
    %v786 = vunpack.c.l.b16 %v399
    %v787 = vunpack.c.h.b16 %v399
    %v788 = vunpack.c.l.b16 %v400
    %v789 = vunpack.c.h.b16 %v400
    %v790 = vunpack.c.l.b16 %v401
    %v791 = vunpack.c.h.b16 %v401
    %v792 = vunpack.c.l.b16 %v402
    %v793 = vunpack.c.h.b16 %v402
    %v794 = vunpack.c.l.b16 %v403
    %v795 = vunpack.c.h.b16 %v403
    %v796 = vunpack.c.l.b16 %v404
    %v797 = vunpack.c.h.b16 %v404
    %v798 = vunpack.c.l.b16 %v405
    %v799 = vunpack.c.h.b16 %v405
    %v800 = vunpack.c.l.b16 %v406
    %v801 = vunpack.c.h.b16 %v406
    %v802 = vunpack.c.l.b16 %v407
    %v803 = vunpack.c.h.b16 %v407
    %v804 = vunpack.c.l.b16 %v408
    %v805 = vunpack.c.h.b16 %v408
    %v806 = vunpack.c.l.b16 %v409
    %v807 = vunpack.c.h.b16 %v409
    %v808 = vunpack.c.l.b16 %v410
    %v809 = vunpack.c.h.b16 %v410
    %v810 = vunpack.c.l.b16 %v411
    %v811 = vunpack.c.h.b16 %v411
    %v812 = vunpack.c.l.b16 %v412
    %v813 = vunpack.c.h.b16 %v412
    %v814 = vunpack.c.l.b16 %v413
    %v815 = vunpack.c.h.b16 %v413
    %v816 = vunpack.c.l.b16 %v414
    %v817 = vunpack.c.h.b16 %v414
    %v818 = vunpack.c.l.b16 %v415
    %v819 = vunpack.c.h.b16 %v415
    %v820 = vunpack.c.l.b16 %v416
    %v821 = vunpack.c.h.b16 %v416
    %v822 = vunpack.c.l.b16 %v417
    %v823 = vunpack.c.h.b16 %v417
    %v824 = vpack.c.b16 %v572, %v568
    %v825 = vpack.c.b16 %v573, %v569
    %v826 = vpack.c.b16 %v574, %v570
    %v827 = vpack.c.b16 %v575, %v571
    %v828 = vpack.c.b16 %v580, %v576
    %v829 = vpack.c.b16 %v581, %v577
    %v830 = vpack.c.b16 %v582, %v578
    %v831 = vpack.c.b16 %v583, %v579
    %v832 = vpack.c.b16 %v588, %v584
    %v833 = vpack.c.b16 %v589, %v585
    %v834 = vpack.c.b16 %v590, %v586
    %v835 = vpack.c.b16 %v591, %v587
    %v836 = vpack.c.b16 %v596, %v592
    %v837 = vpack.c.b16 %v597, %v593
    %v838 = vpack.c.b16 %v598, %v594
    %v839 = vpack.c.b16 %v599, %v595
    %v840 = vpack.c.b16 %v604, %v600
    %v841 = vpack.c.b16 %v605, %v601
    %v842 = vpack.c.b16 %v606, %v602
    %v843 = vpack.c.b16 %v607, %v603
    %v844 = vpack.c.b16 %v612, %v608
    %v845 = vpack.c.b16 %v613, %v609
    %v846 = vpack.c.b16 %v614, %v610
    %v847 = vpack.c.b16 %v615, %v611
    %v848 = vpack.c.b16 %v620, %v616
    %v849 = vpack.c.b16 %v621, %v617
    %v850 = vpack.c.b16 %v622, %v618
    %v851 = vpack.c.b16 %v623, %v619
    %v852 = vpack.c.b16 %v628, %v624
    %v853 = vpack.c.b16 %v629, %v625
    %v854 = vpack.c.b16 %v630, %v626
    %v855 = vpack.c.b16 %v631, %v627
    %v856 = vpack.c.b16 %v636, %v632
    %v857 = vpack.c.b16 %v637, %v633
    %v858 = vpack.c.b16 %v638, %v634
    %v859 = vpack.c.b16 %v639, %v635
    %v860 = vpack.c.b16 %v644, %v640
    %v861 = vpack.c.b16 %v645, %v641
    %v862 = vpack.c.b16 %v646, %v642
    %v863 = vpack.c.b16 %v647, %v643
    %v864 = vpack.c.b16 %v652, %v648
    %v865 = vpack.c.b16 %v653, %v649
    %v866 = vpack.c.b16 %v654, %v650
    %v867 = vpack.c.b16 %v655, %v651
    %v868 = vpack.c.b16 %v660, %v656
    %v869 = vpack.c.b16 %v661, %v657
    %v870 = vpack.c.b16 %v662, %v658
    %v871 = vpack.c.b16 %v663, %v659
    %v872 = vpack.c.b16 %v668, %v664
    %v873 = vpack.c.b16 %v669, %v665
    %v874 = vpack.c.b16 %v670, %v666
    %v875 = vpack.c.b16 %v671, %v667
    %v876 = vpack.c.b16 %v676, %v672
    %v877 = vpack.c.b16 %v677, %v673
    %v878 = vpack.c.b16 %v678, %v674
    %v879 = vpack.c.b16 %v679, %v675
    %v880 = vpack.c.b16 %v684, %v680
    %v881 = vpack.c.b16 %v685, %v681
    %v882 = vpack.c.b16 %v686, %v682
    %v883 = vpack.c.b16 %v687, %v683
    %v884 = vpack.c.b16 %v692, %v688
    %v885 = vpack.c.b16 %v693, %v689
    %v886 = vpack.c.b16 %v694, %v690
    %v887 = vpack.c.b16 %v695, %v691
    %v888 = vpack.c.b16 %v700, %v696
    %v889 = vpack.c.b16 %v701, %v697
    %v890 = vpack.c.b16 %v702, %v698
    %v891 = vpack.c.b16 %v703, %v699
    %v892 = vpack.c.b16 %v708, %v704
    %v893 = vpack.c.b16 %v709, %v705
    %v894 = vpack.c.b16 %v710, %v706
    %v895 = vpack.c.b16 %v711, %v707
    %v896 = vpack.c.b16 %v716, %v712
    %v897 = vpack.c.b16 %v717, %v713
    %v898 = vpack.c.b16 %v718, %v714
    %v899 = vpack.c.b16 %v719, %v715
    %v900 = vpack.c.b16 %v724, %v720
    %v901 = vpack.c.b16 %v725, %v721
    %v902 = vpack.c.b16 %v726, %v722
    %v903 = vpack.c.b16 %v727, %v723
    %v904 = vpack.c.b16 %v732, %v728
    %v905 = vpack.c.b16 %v733, %v729
    %v906 = vpack.c.b16 %v734, %v730
    %v907 = vpack.c.b16 %v735, %v731
    %v908 = vpack.c.b16 %v740, %v736
    %v909 = vpack.c.b16 %v741, %v737
    %v910 = vpack.c.b16 %v742, %v738
    %v911 = vpack.c.b16 %v743, %v739
    %v912 = vpack.c.b16 %v748, %v744
    %v913 = vpack.c.b16 %v749, %v745
    %v914 = vpack.c.b16 %v750, %v746
    %v915 = vpack.c.b16 %v751, %v747
    %v916 = vpack.c.b16 %v756, %v752
    %v917 = vpack.c.b16 %v757, %v753
    %v918 = vpack.c.b16 %v758, %v754
    %v919 = vpack.c.b16 %v759, %v755
    %v920 = vpack.c.b16 %v764, %v760
    %v921 = vpack.c.b16 %v765, %v761
    %v922 = vpack.c.b16 %v766, %v762
    %v923 = vpack.c.b16 %v767, %v763
    %v924 = vpack.c.b16 %v772, %v768
    %v925 = vpack.c.b16 %v773, %v769
    %v926 = vpack.c.b16 %v774, %v770
    %v927 = vpack.c.b16 %v775, %v771
    %v928 = vpack.c.b16 %v780, %v776
    %v929 = vpack.c.b16 %v781, %v777
    %v930 = vpack.c.b16 %v782, %v778
    %v931 = vpack.c.b16 %v783, %v779
    %v932 = vpack.c.b16 %v788, %v784
    %v933 = vpack.c.b16 %v789, %v785
    %v934 = vpack.c.b16 %v790, %v786
    %v935 = vpack.c.b16 %v791, %v787
    %v936 = vpack.c.b16 %v796, %v792
    %v937 = vpack.c.b16 %v797, %v793
    %v938 = vpack.c.b16 %v798, %v794
    %v939 = vpack.c.b16 %v799, %v795
    %v940 = vpack.c.b16 %v804, %v800
    %v941 = vpack.c.b16 %v805, %v801
    %v942 = vpack.c.b16 %v806, %v802
    %v943 = vpack.c.b16 %v807, %v803
    %v944 = vpack.c.b16 %v812, %v808
    %v945 = vpack.c.b16 %v813, %v809
    %v946 = vpack.c.b16 %v814, %v810
    %v947 = vpack.c.b16 %v815, %v811
    %v948 = vpack.c.b16 %v820, %v816
    %v949 = vpack.c.b16 %v821, %v817
    %v950 = vpack.c.b16 %v822, %v818
    %v951 = vpack.c.b16 %v823, %v819
    %1080 = vmatprep.subr.bf16.mxu0 %v825
    %1081 = vmatpush1.bf16.msra.mxu0 %v824
    %1082 = vmatprep.subr.bf16.mxu0 %v829
    %1083 = vmatpush1.bf16.msra.mxu0 %v828
    %1084 = vmatprep.subr.bf16.mxu0 %v833
    %1085 = vmatpush1.bf16.msra.mxu0 %v832
    %1086 = vmatprep.subr.bf16.mxu0 %v837
    %1087 = vmatpush1.bf16.msra.mxu0 %v836
    %1088 = vmatprep.subr.bf16.mxu0 %v841
    %1089 = vmatpush1.bf16.msra.mxu0 %v840
    %1090 = vmatprep.subr.bf16.mxu0 %v845
    %1091 = vmatpush1.bf16.msra.mxu0 %v844
    %1092 = vmatprep.subr.bf16.mxu0 %v849
    %1093 = vmatpush1.bf16.msra.mxu0 %v848
    %1094 = vmatprep.subr.bf16.mxu0 %v853
    %1095 = vmatpush1.bf16.msra.mxu0 %v852
    %1096 = vmatprep.subr.bf16.mxu0 %v857
    %1097 = vmatpush1.bf16.msra.mxu0 %v856
    %1098 = vmatprep.subr.bf16.mxu0 %v861
    %1099 = vmatpush1.bf16.msra.mxu0 %v860
    %1100 = vmatprep.subr.bf16.mxu0 %v865
    %1101 = vmatpush1.bf16.msra.mxu0 %v864
    %1102 = vmatprep.subr.bf16.mxu0 %v869
    %1103 = vmatpush1.bf16.msra.mxu0 %v868
    %1104 = vmatprep.subr.bf16.mxu0 %v873
    %1105 = vmatpush1.bf16.msra.mxu0 %v872
    %1106 = vmatprep.subr.bf16.mxu0 %v877
    %1107 = vmatpush1.bf16.msra.mxu0 %v876
    %1108 = vmatprep.subr.bf16.mxu0 %v881
    %1109 = vmatpush1.bf16.msra.mxu0 %v880
    %1110 = vmatprep.subr.bf16.mxu0 %v885
    %1111 = vmatpush1.bf16.msra.mxu0 %v884
    %1112 = vmatprep.mubr.bf16.mxu0 %v287
    %1113 = vmatmul.mubr.bf16.gmra.mrb[0].mxu0 %v286
    %v1114 = vpop.f32.mrb[0].mxu0
    %v1115 = vadd.f32 %v423, %v1114
    %v1116 = vpop.f32.mrb[0].mxu0
    %v1117 = vadd.f32 %v427, %v1116
    %v1118 = vpop.f32.mrb[0].mxu0
    %v1119 = vpop.f32.mrb[0].mxu0
    %1120 = vdwg.mxu0
    %1121 = vmatprep.subr.bf16.mxu0 %v889
    %1122 = vmatpush1.bf16.msra.mxu0 %v888
    %1123 = vmatprep.subr.bf16.mxu0 %v893
    %1124 = vmatpush1.bf16.msra.mxu0 %v892
    %1125 = vmatprep.subr.bf16.mxu0 %v897
    %1126 = vmatpush1.bf16.msra.mxu0 %v896
    %1127 = vmatprep.subr.bf16.mxu0 %v901
    %1128 = vmatpush1.bf16.msra.mxu0 %v900
    %1129 = vmatprep.subr.bf16.mxu0 %v905
    %1130 = vmatpush1.bf16.msra.mxu0 %v904
    %1131 = vmatprep.subr.bf16.mxu0 %v909
    %1132 = vmatpush1.bf16.msra.mxu0 %v908
    %1133 = vmatprep.subr.bf16.mxu0 %v913
    %1134 = vmatpush1.bf16.msra.mxu0 %v912
    %1135 = vmatprep.subr.bf16.mxu0 %v917
    %1136 = vmatpush1.bf16.msra.mxu0 %v916
    %1137 = vmatprep.subr.bf16.mxu0 %v921
    %1138 = vmatpush1.bf16.msra.mxu0 %v920
    %1139 = vmatprep.subr.bf16.mxu0 %v925
    %1140 = vmatpush1.bf16.msra.mxu0 %v924
    %1141 = vmatprep.subr.bf16.mxu0 %v929
    %1142 = vmatpush1.bf16.msra.mxu0 %v928
    %1143 = vmatprep.subr.bf16.mxu0 %v933
    %1144 = vmatpush1.bf16.msra.mxu0 %v932
    %1145 = vmatprep.subr.bf16.mxu0 %v937
    %1146 = vmatpush1.bf16.msra.mxu0 %v936
    %1147 = vmatprep.subr.bf16.mxu0 %v941
    %1148 = vmatpush1.bf16.msra.mxu0 %v940
    %1149 = vmatprep.subr.bf16.mxu0 %v945
    %1150 = vmatpush1.bf16.msra.mxu0 %v944
    %1151 = vmatprep.subr.bf16.mxu0 %v949
    %1152 = vmatpush1.bf16.msra.mxu0 %v948
    %1153 = vmatprep.mubr.bf16.mxu0 %v289
    %1154 = vmatmul.mubr.bf16.gmra.mrb[0].mxu0 %v288
    %v1155 = vpop.f32.mrb[0].mxu0
    %v1156 = vadd.f32 %v1115, %v1155
    %v1157 = vpop.f32.mrb[0].mxu0
    %v1158 = vadd.f32 %v1117, %v1157
    %v1159 = vpop.f32.mrb[0].mxu0
    %v1160 = vpop.f32.mrb[0].mxu0
    %1161 = vdwg.mxu0
    %1162 = vmatprep.subr.bf16.mxu0 %v827
    %1163 = vmatpush1.bf16.msra.mxu0 %v826
    %1164 = vmatprep.subr.bf16.mxu0 %v831
    %1165 = vmatpush1.bf16.msra.mxu0 %v830
    %1166 = vmatprep.subr.bf16.mxu0 %v835
    %1167 = vmatpush1.bf16.msra.mxu0 %v834
    %1168 = vmatprep.subr.bf16.mxu0 %v839
    %1169 = vmatpush1.bf16.msra.mxu0 %v838
    %1170 = vmatprep.subr.bf16.mxu0 %v843
    %1171 = vmatpush1.bf16.msra.mxu0 %v842
    %1172 = vmatprep.subr.bf16.mxu0 %v847
    %1173 = vmatpush1.bf16.msra.mxu0 %v846
    %1174 = vmatprep.subr.bf16.mxu0 %v851
    %1175 = vmatpush1.bf16.msra.mxu0 %v850
    %1176 = vmatprep.subr.bf16.mxu0 %v855
    %1177 = vmatpush1.bf16.msra.mxu0 %v854
    %1178 = vmatprep.subr.bf16.mxu0 %v859
    %1179 = vmatpush1.bf16.msra.mxu0 %v858
    %1180 = vmatprep.subr.bf16.mxu0 %v863
    %1181 = vmatpush1.bf16.msra.mxu0 %v862
    %1182 = vmatprep.subr.bf16.mxu0 %v867
    %1183 = vmatpush1.bf16.msra.mxu0 %v866
    %1184 = vmatprep.subr.bf16.mxu0 %v871
    %1185 = vmatpush1.bf16.msra.mxu0 %v870
    %1186 = vmatprep.subr.bf16.mxu0 %v875
    %1187 = vmatpush1.bf16.msra.mxu0 %v874
    %1188 = vmatprep.subr.bf16.mxu0 %v879
    %1189 = vmatpush1.bf16.msra.mxu0 %v878
    %1190 = vmatprep.subr.bf16.mxu0 %v883
    %1191 = vmatpush1.bf16.msra.mxu0 %v882
    %1192 = vmatprep.subr.bf16.mxu0 %v887
    %1193 = vmatpush1.bf16.msra.mxu0 %v886
    %1194 = vmatprep.mubr.bf16.mxu0 %v287
    %1195 = vmatmul.mubr.bf16.gmra.mrb[0].mxu0 %v286
    %v1196 = vpop.f32.mrb[0].mxu0
    %v1197 = vadd.f32 %v431, %v1196
    %v1198 = vpop.f32.mrb[0].mxu0
    %v1199 = vadd.f32 %v435, %v1198
    %v1200 = vpop.f32.mrb[0].mxu0
    %v1201 = vpop.f32.mrb[0].mxu0
    %1202 = vdwg.mxu0
    %1203 = vmatprep.subr.bf16.mxu0 %v891
    %1204 = vmatpush1.bf16.msra.mxu0 %v890
    %1205 = vmatprep.subr.bf16.mxu0 %v895
    %1206 = vmatpush1.bf16.msra.mxu0 %v894
    %1207 = vmatprep.subr.bf16.mxu0 %v899
    %1208 = vmatpush1.bf16.msra.mxu0 %v898
    %1209 = vmatprep.subr.bf16.mxu0 %v903
    %1210 = vmatpush1.bf16.msra.mxu0 %v902
    %1211 = vmatprep.subr.bf16.mxu0 %v907
    %1212 = vmatpush1.bf16.msra.mxu0 %v906
    %1213 = vmatprep.subr.bf16.mxu0 %v911
    %1214 = vmatpush1.bf16.msra.mxu0 %v910
    %1215 = vmatprep.subr.bf16.mxu0 %v915
    %1216 = vmatpush1.bf16.msra.mxu0 %v914
    %1217 = vmatprep.subr.bf16.mxu0 %v919
    %1218 = vmatpush1.bf16.msra.mxu0 %v918
    %1219 = vmatprep.subr.bf16.mxu0 %v923
    %1220 = vmatpush1.bf16.msra.mxu0 %v922
    %1221 = vmatprep.subr.bf16.mxu0 %v927
    %1222 = vmatpush1.bf16.msra.mxu0 %v926
    %1223 = vmatprep.subr.bf16.mxu0 %v931
    %1224 = vmatpush1.bf16.msra.mxu0 %v930
    %1225 = vmatprep.subr.bf16.mxu0 %v935
    %1226 = vmatpush1.bf16.msra.mxu0 %v934
    %1227 = vmatprep.subr.bf16.mxu0 %v939
    %1228 = vmatpush1.bf16.msra.mxu0 %v938
    %1229 = vmatprep.subr.bf16.mxu0 %v943
    %1230 = vmatpush1.bf16.msra.mxu0 %v942
    %1231 = vmatprep.subr.bf16.mxu0 %v947
    %1232 = vmatpush1.bf16.msra.mxu0 %v946
    %1233 = vmatprep.subr.bf16.mxu0 %v951
    %1234 = vmatpush1.bf16.msra.mxu0 %v950
    %1235 = vmatprep.mubr.bf16.mxu0 %v289
    %1236 = vmatmul.mubr.bf16.gmra.mrb[0].mxu0 %v288
    %v1237 = vpop.f32.mrb[0].mxu0
    %v1238 = vadd.f32 %v1197, %v1237
    %v1239 = vpop.f32.mrb[0].mxu0
    %v1240 = vadd.f32 %v1199, %v1239
    %v1241 = vpop.f32.mrb[0].mxu0
    %v1242 = vpop.f32.mrb[0].mxu0
    %1243 = vdwg.mxu0
    %v1244 = vxor.u32 %v1156, 2147483648
    %v1245 = vxor.u32 %v1158, 2147483648
    %v1246 = vxor.u32 %v1238, 2147483648
    %v1247 = vxor.u32 %v1240, 2147483648
    %v1248 = vmul.f32 %v1244, 1.442695
    %v1249 = vpow.pop %v1248
    %v1250 = vmul.f32 %v1245, 1.442695
    %v1251 = vpow.pop %v1250
    %v1252 = vmul.f32 %v1246, 1.442695
    %v1253 = vpow.pop %v1252
    %v1254 = vmul.f32 %v1247, 1.442695
    %v1255 = vpow.pop %v1254
    %v1256 = vadd.f32 %v1249, 1.0
    %v1257 = vadd.f32 %v1251, 1.0
    %v1258 = vadd.f32 %v1253, 1.0
    %v1259 = vadd.f32 %v1255, 1.0
    %v1260 = vrcp.pop %v1256
    %v1261 = vmul.f32 1.0, %v1260
    %v1262 = vrcp.pop %v1257
    %v1263 = vmul.f32 1.0, %v1262
    %v1264 = vrcp.pop %v1258
    %v1265 = vmul.f32 1.0, %v1264
    %v1266 = vrcp.pop %v1259
    %v1267 = vmul.f32 1.0, %v1266
    %v1268 = vmul.f32 %v1156, %v1261
    %v1269 = vmul.f32 %v1158, %v1263
    %v1270 = vmul.f32 %v1238, %v1265
    %v1271 = vmul.f32 %v1240, %v1267
    %v1272 = vpack.c.bf16 %v1268, %v1268
    %v1273 = vpack.c.bf16 %v1269, %v1269
    %v1274 = vpack.c.bf16 %v1270, %v1270
    %v1275 = vpack.c.bf16 %v1271, %v1271
    %v1276 = vld [vmem:[#allocation8] sm:$0xff]
    %v1277 = vld [vmem:[#allocation8 + $0x8] sm:$0xff]
    %v1278 = vld [vmem:[#allocation8 + $0x10] sm:$0xff]
    %v1279 = vld [vmem:[#allocation8 + $0x18] sm:$0xff]
    %v1280 = vld [vmem:[#allocation8 + $0x20] sm:$0xff]
    %v1281 = vld [vmem:[#allocation8 + $0x28] sm:$0xff]
    %v1282 = vld [vmem:[#allocation8 + $0x30] sm:$0xff]
    %v1283 = vld [vmem:[#allocation8 + $0x38] sm:$0xff]
    %v1284 = vld [vmem:[#allocation8 + $0x40] sm:$0xff]
    %v1285 = vld [vmem:[#allocation8 + $0x48] sm:$0xff]
    %v1286 = vld [vmem:[#allocation8 + $0x50] sm:$0xff]
    %v1287 = vld [vmem:[#allocation8 + $0x58] sm:$0xff]
    %v1288 = vld [vmem:[#allocation8 + $0x60] sm:$0xff]
    %v1289 = vld [vmem:[#allocation8 + $0x68] sm:$0xff]
    %v1290 = vld [vmem:[#allocation8 + $0x70] sm:$0xff]
    %v1291 = vld [vmem:[#allocation8 + $0x78] sm:$0xff]
    %v1292 = vld [vmem:[#allocation8 + $0x80] sm:$0xff]
    %v1293 = vld [vmem:[#allocation8 + $0x88] sm:$0xff]
    %v1294 = vld [vmem:[#allocation8 + $0x90] sm:$0xff]
    %v1295 = vld [vmem:[#allocation8 + $0x98] sm:$0xff]
    %v1296 = vld [vmem:[#allocation8 + $0xa0] sm:$0xff]
    %v1297 = vld [vmem:[#allocation8 + $0xa8] sm:$0xff]
    %v1298 = vld [vmem:[#allocation8 + $0xb0] sm:$0xff]
    %v1299 = vld [vmem:[#allocation8 + $0xb8] sm:$0xff]
    %v1300 = vld [vmem:[#allocation8 + $0xc0] sm:$0xff]
    %v1301 = vld [vmem:[#allocation8 + $0xc8] sm:$0xff]
    %v1302 = vld [vmem:[#allocation8 + $0xd0] sm:$0xff]
    %v1303 = vld [vmem:[#allocation8 + $0xd8] sm:$0xff]
    %v1304 = vld [vmem:[#allocation8 + $0xe0] sm:$0xff]
    %v1305 = vld [vmem:[#allocation8 + $0xe8] sm:$0xff]
    %v1306 = vld [vmem:[#allocation8 + $0xf0] sm:$0xff]
    %v1307 = vld [vmem:[#allocation8 + $0xf8] sm:$0xff]
    %v1308 = vld [vmem:[#allocation8 + $0x100] sm:$0xff]
    %v1309 = vld [vmem:[#allocation8 + $0x108] sm:$0xff]
    %v1310 = vld [vmem:[#allocation8 + $0x110] sm:$0xff]
    %v1311 = vld [vmem:[#allocation8 + $0x118] sm:$0xff]
    %v1312 = vld [vmem:[#allocation8 + $0x120] sm:$0xff]
    %v1313 = vld [vmem:[#allocation8 + $0x128] sm:$0xff]
    %v1314 = vld [vmem:[#allocation8 + $0x130] sm:$0xff]
    %v1315 = vld [vmem:[#allocation8 + $0x138] sm:$0xff]
    %v1316 = vld [vmem:[#allocation8 + $0x140] sm:$0xff]
    %v1317 = vld [vmem:[#allocation8 + $0x148] sm:$0xff]
    %v1318 = vld [vmem:[#allocation8 + $0x150] sm:$0xff]
    %v1319 = vld [vmem:[#allocation8 + $0x158] sm:$0xff]
    %v1320 = vld [vmem:[#allocation8 + $0x160] sm:$0xff]
    %v1321 = vld [vmem:[#allocation8 + $0x168] sm:$0xff]
    %v1322 = vld [vmem:[#allocation8 + $0x170] sm:$0xff]
    %v1323 = vld [vmem:[#allocation8 + $0x178] sm:$0xff]
    %v1324 = vld [vmem:[#allocation8 + $0x180] sm:$0xff]
    %v1325 = vld [vmem:[#allocation8 + $0x188] sm:$0xff]
    %v1326 = vld [vmem:[#allocation8 + $0x190] sm:$0xff]
    %v1327 = vld [vmem:[#allocation8 + $0x198] sm:$0xff]
    %v1328 = vld [vmem:[#allocation8 + $0x1a0] sm:$0xff]
    %v1329 = vld [vmem:[#allocation8 + $0x1a8] sm:$0xff]
    %v1330 = vld [vmem:[#allocation8 + $0x1b0] sm:$0xff]
    %v1331 = vld [vmem:[#allocation8 + $0x1b8] sm:$0xff]
    %v1332 = vld [vmem:[#allocation8 + $0x1c0] sm:$0xff]
    %v1333 = vld [vmem:[#allocation8 + $0x1c8] sm:$0xff]
    %v1334 = vld [vmem:[#allocation8 + $0x1d0] sm:$0xff]
    %v1335 = vld [vmem:[#allocation8 + $0x1d8] sm:$0xff]
    %v1336 = vld [vmem:[#allocation8 + $0x1e0] sm:$0xff]
    %v1337 = vld [vmem:[#allocation8 + $0x1e8] sm:$0xff]
    %v1338 = vld [vmem:[#allocation8 + $0x1f0] sm:$0xff]
    %v1339 = vld [vmem:[#allocation8 + $0x1f8] sm:$0xff]
    %v1340 = vld [vmem:[#allocation8 + $0x200] sm:$0xff]
    %v1341 = vld [vmem:[#allocation8 + $0x208] sm:$0xff]
    %v1342 = vld [vmem:[#allocation8 + $0x210] sm:$0xff]
    %v1343 = vld [vmem:[#allocation8 + $0x218] sm:$0xff]
    %v1344 = vld [vmem:[#allocation8 + $0x220] sm:$0xff]
    %v1345 = vld [vmem:[#allocation8 + $0x228] sm:$0xff]
    %v1346 = vld [vmem:[#allocation8 + $0x230] sm:$0xff]
    %v1347 = vld [vmem:[#allocation8 + $0x238] sm:$0xff]
    %v1348 = vld [vmem:[#allocation8 + $0x240] sm:$0xff]
    %v1349 = vld [vmem:[#allocation8 + $0x248] sm:$0xff]
    %v1350 = vld [vmem:[#allocation8 + $0x250] sm:$0xff]
    %v1351 = vld [vmem:[#allocation8 + $0x258] sm:$0xff]
    %v1352 = vld [vmem:[#allocation8 + $0x260] sm:$0xff]
    %v1353 = vld [vmem:[#allocation8 + $0x268] sm:$0xff]
    %v1354 = vld [vmem:[#allocation8 + $0x270] sm:$0xff]
    %v1355 = vld [vmem:[#allocation8 + $0x278] sm:$0xff]
    %v1356 = vld [vmem:[#allocation8 + $0x280] sm:$0xff]
    %v1357 = vld [vmem:[#allocation8 + $0x288] sm:$0xff]
    %v1358 = vld [vmem:[#allocation8 + $0x290] sm:$0xff]
    %v1359 = vld [vmem:[#allocation8 + $0x298] sm:$0xff]
    %v1360 = vld [vmem:[#allocation8 + $0x2a0] sm:$0xff]
    %v1361 = vld [vmem:[#allocation8 + $0x2a8] sm:$0xff]
    %v1362 = vld [vmem:[#allocation8 + $0x2b0] sm:$0xff]
    %v1363 = vld [vmem:[#allocation8 + $0x2b8] sm:$0xff]
    %v1364 = vld [vmem:[#allocation8 + $0x2c0] sm:$0xff]
    %v1365 = vld [vmem:[#allocation8 + $0x2c8] sm:$0xff]
    %v1366 = vld [vmem:[#allocation8 + $0x2d0] sm:$0xff]
    %v1367 = vld [vmem:[#allocation8 + $0x2d8] sm:$0xff]
    %v1368 = vld [vmem:[#allocation8 + $0x2e0] sm:$0xff]
    %v1369 = vld [vmem:[#allocation8 + $0x2e8] sm:$0xff]
    %v1370 = vld [vmem:[#allocation8 + $0x2f0] sm:$0xff]
    %v1371 = vld [vmem:[#allocation8 + $0x2f8] sm:$0xff]
    %v1372 = vld [vmem:[#allocation8 + $0x300] sm:$0xff]
    %v1373 = vld [vmem:[#allocation8 + $0x308] sm:$0xff]
    %v1374 = vld [vmem:[#allocation8 + $0x310] sm:$0xff]
    %v1375 = vld [vmem:[#allocation8 + $0x318] sm:$0xff]
    %v1376 = vld [vmem:[#allocation8 + $0x320] sm:$0xff]
    %v1377 = vld [vmem:[#allocation8 + $0x328] sm:$0xff]
    %v1378 = vld [vmem:[#allocation8 + $0x330] sm:$0xff]
    %v1379 = vld [vmem:[#allocation8 + $0x338] sm:$0xff]
    %v1380 = vld [vmem:[#allocation8 + $0x340] sm:$0xff]
    %v1381 = vld [vmem:[#allocation8 + $0x348] sm:$0xff]
    %v1382 = vld [vmem:[#allocation8 + $0x350] sm:$0xff]
    %v1383 = vld [vmem:[#allocation8 + $0x358] sm:$0xff]
    %v1384 = vld [vmem:[#allocation8 + $0x360] sm:$0xff]
    %v1385 = vld [vmem:[#allocation8 + $0x368] sm:$0xff]
    %v1386 = vld [vmem:[#allocation8 + $0x370] sm:$0xff]
    %v1387 = vld [vmem:[#allocation8 + $0x378] sm:$0xff]
    %v1388 = vld [vmem:[#allocation8 + $0x380] sm:$0xff]
    %v1389 = vld [vmem:[#allocation8 + $0x388] sm:$0xff]
    %v1390 = vld [vmem:[#allocation8 + $0x390] sm:$0xff]
    %v1391 = vld [vmem:[#allocation8 + $0x398] sm:$0xff]
    %v1392 = vld [vmem:[#allocation8 + $0x3a0] sm:$0xff]
    %v1393 = vld [vmem:[#allocation8 + $0x3a8] sm:$0xff]
    %v1394 = vld [vmem:[#allocation8 + $0x3b0] sm:$0xff]
    %v1395 = vld [vmem:[#allocation8 + $0x3b8] sm:$0xff]
    %v1396 = vld [vmem:[#allocation8 + $0x3c0] sm:$0xff]
    %v1397 = vld [vmem:[#allocation8 + $0x3c8] sm:$0xff]
    %v1398 = vld [vmem:[#allocation8 + $0x3d0] sm:$0xff]
    %v1399 = vld [vmem:[#allocation8 + $0x3d8] sm:$0xff]
    %v1400 = vld [vmem:[#allocation8 + $0x3e0] sm:$0xff]
    %v1401 = vld [vmem:[#allocation8 + $0x3e8] sm:$0xff]
    %v1402 = vld [vmem:[#allocation8 + $0x3f0] sm:$0xff]
    %v1403 = vld [vmem:[#allocation8 + $0x3f8] sm:$0xff]
    %v1404 = vld [vmem:[%s6] sm:$0xf]
    %v1406 = vlaneseq
    %v1407 = vshrl.u32 %v1406, 7
    %v1408 = vsub.s32 0, %v1407
    %v1409 = vrot.slane %v1404, %v1408
    %v1410 = vlaneseq
    %v1411 = vshrl.u32 %v1410, 7
    %v1412 = vsub.s32 1, %v1411
    %v1413 = vrot.slane %v1404, %v1412
    %v1414 = vlaneseq
    %v1415 = vshrl.u32 %v1414, 7
    %v1416 = vsub.s32 2, %v1415
    %v1417 = vrot.slane %v1404, %v1416
    %v1418 = vlaneseq
    %v1419 = vshrl.u32 %v1418, 7
    %v1420 = vsub.s32 3, %v1419
    %v1421 = vrot.slane %v1404, %v1420
    %v1554 = vunpack.c.l.b16 %v1276
    %v1555 = vunpack.c.h.b16 %v1276
    %v1556 = vunpack.c.l.b16 %v1277
    %v1557 = vunpack.c.h.b16 %v1277
    %v1558 = vunpack.c.l.b16 %v1278
    %v1559 = vunpack.c.h.b16 %v1278
    %v1560 = vunpack.c.l.b16 %v1279
    %v1561 = vunpack.c.h.b16 %v1279
    %v1562 = vunpack.c.l.b16 %v1280
    %v1563 = vunpack.c.h.b16 %v1280
    %v1564 = vunpack.c.l.b16 %v1281
    %v1565 = vunpack.c.h.b16 %v1281
    %v1566 = vunpack.c.l.b16 %v1282
    %v1567 = vunpack.c.h.b16 %v1282
    %v1568 = vunpack.c.l.b16 %v1283
    %v1569 = vunpack.c.h.b16 %v1283
    %v1570 = vunpack.c.l.b16 %v1284
    %v1571 = vunpack.c.h.b16 %v1284
    %v1572 = vunpack.c.l.b16 %v1285
    %v1573 = vunpack.c.h.b16 %v1285
    %v1574 = vunpack.c.l.b16 %v1286
    %v1575 = vunpack.c.h.b16 %v1286
    %v1576 = vunpack.c.l.b16 %v1287
    %v1577 = vunpack.c.h.b16 %v1287
    %v1578 = vunpack.c.l.b16 %v1288
    %v1579 = vunpack.c.h.b16 %v1288
    %v1580 = vunpack.c.l.b16 %v1289
    %v1581 = vunpack.c.h.b16 %v1289
    %v1582 = vunpack.c.l.b16 %v1290
    %v1583 = vunpack.c.h.b16 %v1290
    %v1584 = vunpack.c.l.b16 %v1291
    %v1585 = vunpack.c.h.b16 %v1291
    %v1586 = vunpack.c.l.b16 %v1292
    %v1587 = vunpack.c.h.b16 %v1292
    %v1588 = vunpack.c.l.b16 %v1293
    %v1589 = vunpack.c.h.b16 %v1293
    %v1590 = vunpack.c.l.b16 %v1294
    %v1591 = vunpack.c.h.b16 %v1294
    %v1592 = vunpack.c.l.b16 %v1295
    %v1593 = vunpack.c.h.b16 %v1295
    %v1594 = vunpack.c.l.b16 %v1296
    %v1595 = vunpack.c.h.b16 %v1296
    %v1596 = vunpack.c.l.b16 %v1297
    %v1597 = vunpack.c.h.b16 %v1297
    %v1598 = vunpack.c.l.b16 %v1298
    %v1599 = vunpack.c.h.b16 %v1298
    %v1600 = vunpack.c.l.b16 %v1299
    %v1601 = vunpack.c.h.b16 %v1299
    %v1602 = vunpack.c.l.b16 %v1300
    %v1603 = vunpack.c.h.b16 %v1300
    %v1604 = vunpack.c.l.b16 %v1301
    %v1605 = vunpack.c.h.b16 %v1301
    %v1606 = vunpack.c.l.b16 %v1302
    %v1607 = vunpack.c.h.b16 %v1302
    %v1608 = vunpack.c.l.b16 %v1303
    %v1609 = vunpack.c.h.b16 %v1303
    %v1610 = vunpack.c.l.b16 %v1304
    %v1611 = vunpack.c.h.b16 %v1304
    %v1612 = vunpack.c.l.b16 %v1305
    %v1613 = vunpack.c.h.b16 %v1305
    %v1614 = vunpack.c.l.b16 %v1306
    %v1615 = vunpack.c.h.b16 %v1306
    %v1616 = vunpack.c.l.b16 %v1307
    %v1617 = vunpack.c.h.b16 %v1307
    %v1618 = vunpack.c.l.b16 %v1308
    %v1619 = vunpack.c.h.b16 %v1308
    %v1620 = vunpack.c.l.b16 %v1309
    %v1621 = vunpack.c.h.b16 %v1309
    %v1622 = vunpack.c.l.b16 %v1310
    %v1623 = vunpack.c.h.b16 %v1310
    %v1624 = vunpack.c.l.b16 %v1311
    %v1625 = vunpack.c.h.b16 %v1311
    %v1626 = vunpack.c.l.b16 %v1312
    %v1627 = vunpack.c.h.b16 %v1312
    %v1628 = vunpack.c.l.b16 %v1313
    %v1629 = vunpack.c.h.b16 %v1313
    %v1630 = vunpack.c.l.b16 %v1314
    %v1631 = vunpack.c.h.b16 %v1314
    %v1632 = vunpack.c.l.b16 %v1315
    %v1633 = vunpack.c.h.b16 %v1315
    %v1634 = vunpack.c.l.b16 %v1316
    %v1635 = vunpack.c.h.b16 %v1316
    %v1636 = vunpack.c.l.b16 %v1317
    %v1637 = vunpack.c.h.b16 %v1317
    %v1638 = vunpack.c.l.b16 %v1318
    %v1639 = vunpack.c.h.b16 %v1318
    %v1640 = vunpack.c.l.b16 %v1319
    %v1641 = vunpack.c.h.b16 %v1319
    %v1642 = vunpack.c.l.b16 %v1320
    %v1643 = vunpack.c.h.b16 %v1320
    %v1644 = vunpack.c.l.b16 %v1321
    %v1645 = vunpack.c.h.b16 %v1321
    %v1646 = vunpack.c.l.b16 %v1322
    %v1647 = vunpack.c.h.b16 %v1322
    %v1648 = vunpack.c.l.b16 %v1323
    %v1649 = vunpack.c.h.b16 %v1323
    %v1650 = vunpack.c.l.b16 %v1324
    %v1651 = vunpack.c.h.b16 %v1324
    %v1652 = vunpack.c.l.b16 %v1325
    %v1653 = vunpack.c.h.b16 %v1325
    %v1654 = vunpack.c.l.b16 %v1326
    %v1655 = vunpack.c.h.b16 %v1326
    %v1656 = vunpack.c.l.b16 %v1327
    %v1657 = vunpack.c.h.b16 %v1327
    %v1658 = vunpack.c.l.b16 %v1328
    %v1659 = vunpack.c.h.b16 %v1328
    %v1660 = vunpack.c.l.b16 %v1329
    %v1661 = vunpack.c.h.b16 %v1329
    %v1662 = vunpack.c.l.b16 %v1330
    %v1663 = vunpack.c.h.b16 %v1330
    %v1664 = vunpack.c.l.b16 %v1331
    %v1665 = vunpack.c.h.b16 %v1331
    %v1666 = vunpack.c.l.b16 %v1332
    %v1667 = vunpack.c.h.b16 %v1332
    %v1668 = vunpack.c.l.b16 %v1333
    %v1669 = vunpack.c.h.b16 %v1333
    %v1670 = vunpack.c.l.b16 %v1334
    %v1671 = vunpack.c.h.b16 %v1334
    %v1672 = vunpack.c.l.b16 %v1335
    %v1673 = vunpack.c.h.b16 %v1335
    %v1674 = vunpack.c.l.b16 %v1336
    %v1675 = vunpack.c.h.b16 %v1336
    %v1676 = vunpack.c.l.b16 %v1337
    %v1677 = vunpack.c.h.b16 %v1337
    %v1678 = vunpack.c.l.b16 %v1338
    %v1679 = vunpack.c.h.b16 %v1338
    %v1680 = vunpack.c.l.b16 %v1339
    %v1681 = vunpack.c.h.b16 %v1339
    %v1682 = vunpack.c.l.b16 %v1340
    %v1683 = vunpack.c.h.b16 %v1340
    %v1684 = vunpack.c.l.b16 %v1341
    %v1685 = vunpack.c.h.b16 %v1341
    %v1686 = vunpack.c.l.b16 %v1342
    %v1687 = vunpack.c.h.b16 %v1342
    %v1688 = vunpack.c.l.b16 %v1343
    %v1689 = vunpack.c.h.b16 %v1343
    %v1690 = vunpack.c.l.b16 %v1344
    %v1691 = vunpack.c.h.b16 %v1344
    %v1692 = vunpack.c.l.b16 %v1345
    %v1693 = vunpack.c.h.b16 %v1345
    %v1694 = vunpack.c.l.b16 %v1346
    %v1695 = vunpack.c.h.b16 %v1346
    %v1696 = vunpack.c.l.b16 %v1347
    %v1697 = vunpack.c.h.b16 %v1347
    %v1698 = vunpack.c.l.b16 %v1348
    %v1699 = vunpack.c.h.b16 %v1348
    %v1700 = vunpack.c.l.b16 %v1349
    %v1701 = vunpack.c.h.b16 %v1349
    %v1702 = vunpack.c.l.b16 %v1350
    %v1703 = vunpack.c.h.b16 %v1350
    %v1704 = vunpack.c.l.b16 %v1351
    %v1705 = vunpack.c.h.b16 %v1351
    %v1706 = vunpack.c.l.b16 %v1352
    %v1707 = vunpack.c.h.b16 %v1352
    %v1708 = vunpack.c.l.b16 %v1353
    %v1709 = vunpack.c.h.b16 %v1353
    %v1710 = vunpack.c.l.b16 %v1354
    %v1711 = vunpack.c.h.b16 %v1354
    %v1712 = vunpack.c.l.b16 %v1355
    %v1713 = vunpack.c.h.b16 %v1355
    %v1714 = vunpack.c.l.b16 %v1356
    %v1715 = vunpack.c.h.b16 %v1356
    %v1716 = vunpack.c.l.b16 %v1357
    %v1717 = vunpack.c.h.b16 %v1357
    %v1718 = vunpack.c.l.b16 %v1358
    %v1719 = vunpack.c.h.b16 %v1358
    %v1720 = vunpack.c.l.b16 %v1359
    %v1721 = vunpack.c.h.b16 %v1359
    %v1722 = vunpack.c.l.b16 %v1360
    %v1723 = vunpack.c.h.b16 %v1360
    %v1724 = vunpack.c.l.b16 %v1361
    %v1725 = vunpack.c.h.b16 %v1361
    %v1726 = vunpack.c.l.b16 %v1362
    %v1727 = vunpack.c.h.b16 %v1362
    %v1728 = vunpack.c.l.b16 %v1363
    %v1729 = vunpack.c.h.b16 %v1363
    %v1730 = vunpack.c.l.b16 %v1364
    %v1731 = vunpack.c.h.b16 %v1364
    %v1732 = vunpack.c.l.b16 %v1365
    %v1733 = vunpack.c.h.b16 %v1365
    %v1734 = vunpack.c.l.b16 %v1366
    %v1735 = vunpack.c.h.b16 %v1366
    %v1736 = vunpack.c.l.b16 %v1367
    %v1737 = vunpack.c.h.b16 %v1367
    %v1738 = vunpack.c.l.b16 %v1368
    %v1739 = vunpack.c.h.b16 %v1368
    %v1740 = vunpack.c.l.b16 %v1369
    %v1741 = vunpack.c.h.b16 %v1369
    %v1742 = vunpack.c.l.b16 %v1370
    %v1743 = vunpack.c.h.b16 %v1370
    %v1744 = vunpack.c.l.b16 %v1371
    %v1745 = vunpack.c.h.b16 %v1371
    %v1746 = vunpack.c.l.b16 %v1372
    %v1747 = vunpack.c.h.b16 %v1372
    %v1748 = vunpack.c.l.b16 %v1373
    %v1749 = vunpack.c.h.b16 %v1373
    %v1750 = vunpack.c.l.b16 %v1374
    %v1751 = vunpack.c.h.b16 %v1374
    %v1752 = vunpack.c.l.b16 %v1375
    %v1753 = vunpack.c.h.b16 %v1375
    %v1754 = vunpack.c.l.b16 %v1376
    %v1755 = vunpack.c.h.b16 %v1376
    %v1756 = vunpack.c.l.b16 %v1377
    %v1757 = vunpack.c.h.b16 %v1377
    %v1758 = vunpack.c.l.b16 %v1378
    %v1759 = vunpack.c.h.b16 %v1378
    %v1760 = vunpack.c.l.b16 %v1379
    %v1761 = vunpack.c.h.b16 %v1379
    %v1762 = vunpack.c.l.b16 %v1380
    %v1763 = vunpack.c.h.b16 %v1380
    %v1764 = vunpack.c.l.b16 %v1381
    %v1765 = vunpack.c.h.b16 %v1381
    %v1766 = vunpack.c.l.b16 %v1382
    %v1767 = vunpack.c.h.b16 %v1382
    %v1768 = vunpack.c.l.b16 %v1383
    %v1769 = vunpack.c.h.b16 %v1383
    %v1770 = vunpack.c.l.b16 %v1384
    %v1771 = vunpack.c.h.b16 %v1384
    %v1772 = vunpack.c.l.b16 %v1385
    %v1773 = vunpack.c.h.b16 %v1385
    %v1774 = vunpack.c.l.b16 %v1386
    %v1775 = vunpack.c.h.b16 %v1386
    %v1776 = vunpack.c.l.b16 %v1387
    %v1777 = vunpack.c.h.b16 %v1387
    %v1778 = vunpack.c.l.b16 %v1388
    %v1779 = vunpack.c.h.b16 %v1388
    %v1780 = vunpack.c.l.b16 %v1389
    %v1781 = vunpack.c.h.b16 %v1389
    %v1782 = vunpack.c.l.b16 %v1390
    %v1783 = vunpack.c.h.b16 %v1390
    %v1784 = vunpack.c.l.b16 %v1391
    %v1785 = vunpack.c.h.b16 %v1391
    %v1786 = vunpack.c.l.b16 %v1392
    %v1787 = vunpack.c.h.b16 %v1392
    %v1788 = vunpack.c.l.b16 %v1393
    %v1789 = vunpack.c.h.b16 %v1393
    %v1790 = vunpack.c.l.b16 %v1394
    %v1791 = vunpack.c.h.b16 %v1394
    %v1792 = vunpack.c.l.b16 %v1395
    %v1793 = vunpack.c.h.b16 %v1395
    %v1794 = vunpack.c.l.b16 %v1396
    %v1795 = vunpack.c.h.b16 %v1396
    %v1796 = vunpack.c.l.b16 %v1397
    %v1797 = vunpack.c.h.b16 %v1397
    %v1798 = vunpack.c.l.b16 %v1398
    %v1799 = vunpack.c.h.b16 %v1398
    %v1800 = vunpack.c.l.b16 %v1399
    %v1801 = vunpack.c.h.b16 %v1399
    %v1802 = vunpack.c.l.b16 %v1400
    %v1803 = vunpack.c.h.b16 %v1400
    %v1804 = vunpack.c.l.b16 %v1401
    %v1805 = vunpack.c.h.b16 %v1401
    %v1806 = vunpack.c.l.b16 %v1402
    %v1807 = vunpack.c.h.b16 %v1402
    %v1808 = vunpack.c.l.b16 %v1403
    %v1809 = vunpack.c.h.b16 %v1403
    %v1810 = vpack.c.b16 %v1558, %v1554
    %v1811 = vpack.c.b16 %v1559, %v1555
    %v1812 = vpack.c.b16 %v1560, %v1556
    %v1813 = vpack.c.b16 %v1561, %v1557
    %v1814 = vpack.c.b16 %v1566, %v1562
    %v1815 = vpack.c.b16 %v1567, %v1563
    %v1816 = vpack.c.b16 %v1568, %v1564
    %v1817 = vpack.c.b16 %v1569, %v1565
    %v1818 = vpack.c.b16 %v1574, %v1570
    %v1819 = vpack.c.b16 %v1575, %v1571
    %v1820 = vpack.c.b16 %v1576, %v1572
    %v1821 = vpack.c.b16 %v1577, %v1573
    %v1822 = vpack.c.b16 %v1582, %v1578
    %v1823 = vpack.c.b16 %v1583, %v1579
    %v1824 = vpack.c.b16 %v1584, %v1580
    %v1825 = vpack.c.b16 %v1585, %v1581
    %v1826 = vpack.c.b16 %v1590, %v1586
    %v1827 = vpack.c.b16 %v1591, %v1587
    %v1828 = vpack.c.b16 %v1592, %v1588
    %v1829 = vpack.c.b16 %v1593, %v1589
    %v1830 = vpack.c.b16 %v1598, %v1594
    %v1831 = vpack.c.b16 %v1599, %v1595
    %v1832 = vpack.c.b16 %v1600, %v1596
    %v1833 = vpack.c.b16 %v1601, %v1597
    %v1834 = vpack.c.b16 %v1606, %v1602
    %v1835 = vpack.c.b16 %v1607, %v1603
    %v1836 = vpack.c.b16 %v1608, %v1604
    %v1837 = vpack.c.b16 %v1609, %v1605
    %v1838 = vpack.c.b16 %v1614, %v1610
    %v1839 = vpack.c.b16 %v1615, %v1611
    %v1840 = vpack.c.b16 %v1616, %v1612
    %v1841 = vpack.c.b16 %v1617, %v1613
    %v1842 = vpack.c.b16 %v1622, %v1618
    %v1843 = vpack.c.b16 %v1623, %v1619
    %v1844 = vpack.c.b16 %v1624, %v1620
    %v1845 = vpack.c.b16 %v1625, %v1621
    %v1846 = vpack.c.b16 %v1630, %v1626
    %v1847 = vpack.c.b16 %v1631, %v1627
    %v1848 = vpack.c.b16 %v1632, %v1628
    %v1849 = vpack.c.b16 %v1633, %v1629
    %v1850 = vpack.c.b16 %v1638, %v1634
    %v1851 = vpack.c.b16 %v1639, %v1635
    %v1852 = vpack.c.b16 %v1640, %v1636
    %v1853 = vpack.c.b16 %v1641, %v1637
    %v1854 = vpack.c.b16 %v1646, %v1642
    %v1855 = vpack.c.b16 %v1647, %v1643
    %v1856 = vpack.c.b16 %v1648, %v1644
    %v1857 = vpack.c.b16 %v1649, %v1645
    %v1858 = vpack.c.b16 %v1654, %v1650
    %v1859 = vpack.c.b16 %v1655, %v1651
    %v1860 = vpack.c.b16 %v1656, %v1652
    %v1861 = vpack.c.b16 %v1657, %v1653
    %v1862 = vpack.c.b16 %v1662, %v1658
    %v1863 = vpack.c.b16 %v1663, %v1659
    %v1864 = vpack.c.b16 %v1664, %v1660
    %v1865 = vpack.c.b16 %v1665, %v1661
    %v1866 = vpack.c.b16 %v1670, %v1666
    %v1867 = vpack.c.b16 %v1671, %v1667
    %v1868 = vpack.c.b16 %v1672, %v1668
    %v1869 = vpack.c.b16 %v1673, %v1669
    %v1870 = vpack.c.b16 %v1678, %v1674
    %v1871 = vpack.c.b16 %v1679, %v1675
    %v1872 = vpack.c.b16 %v1680, %v1676
    %v1873 = vpack.c.b16 %v1681, %v1677
    %v1874 = vpack.c.b16 %v1686, %v1682
    %v1875 = vpack.c.b16 %v1687, %v1683
    %v1876 = vpack.c.b16 %v1688, %v1684
    %v1877 = vpack.c.b16 %v1689, %v1685
    %v1878 = vpack.c.b16 %v1694, %v1690
    %v1879 = vpack.c.b16 %v1695, %v1691
    %v1880 = vpack.c.b16 %v1696, %v1692
    %v1881 = vpack.c.b16 %v1697, %v1693
    %v1882 = vpack.c.b16 %v1702, %v1698
    %v1883 = vpack.c.b16 %v1703, %v1699
    %v1884 = vpack.c.b16 %v1704, %v1700
    %v1885 = vpack.c.b16 %v1705, %v1701
    %v1886 = vpack.c.b16 %v1710, %v1706
    %v1887 = vpack.c.b16 %v1711, %v1707
    %v1888 = vpack.c.b16 %v1712, %v1708
    %v1889 = vpack.c.b16 %v1713, %v1709
    %v1890 = vpack.c.b16 %v1718, %v1714
    %v1891 = vpack.c.b16 %v1719, %v1715
    %v1892 = vpack.c.b16 %v1720, %v1716
    %v1893 = vpack.c.b16 %v1721, %v1717
    %v1894 = vpack.c.b16 %v1726, %v1722
    %v1895 = vpack.c.b16 %v1727, %v1723
    %v1896 = vpack.c.b16 %v1728, %v1724
    %v1897 = vpack.c.b16 %v1729, %v1725
    %v1898 = vpack.c.b16 %v1734, %v1730
    %v1899 = vpack.c.b16 %v1735, %v1731
    %v1900 = vpack.c.b16 %v1736, %v1732
    %v1901 = vpack.c.b16 %v1737, %v1733
    %v1902 = vpack.c.b16 %v1742, %v1738
    %v1903 = vpack.c.b16 %v1743, %v1739
    %v1904 = vpack.c.b16 %v1744, %v1740
    %v1905 = vpack.c.b16 %v1745, %v1741
    %v1906 = vpack.c.b16 %v1750, %v1746
    %v1907 = vpack.c.b16 %v1751, %v1747
    %v1908 = vpack.c.b16 %v1752, %v1748
    %v1909 = vpack.c.b16 %v1753, %v1749
    %v1910 = vpack.c.b16 %v1758, %v1754
    %v1911 = vpack.c.b16 %v1759, %v1755
    %v1912 = vpack.c.b16 %v1760, %v1756
    %v1913 = vpack.c.b16 %v1761, %v1757
    %v1914 = vpack.c.b16 %v1766, %v1762
    %v1915 = vpack.c.b16 %v1767, %v1763
    %v1916 = vpack.c.b16 %v1768, %v1764
    %v1917 = vpack.c.b16 %v1769, %v1765
    %v1918 = vpack.c.b16 %v1774, %v1770
    %v1919 = vpack.c.b16 %v1775, %v1771
    %v1920 = vpack.c.b16 %v1776, %v1772
    %v1921 = vpack.c.b16 %v1777, %v1773
    %v1922 = vpack.c.b16 %v1782, %v1778
    %v1923 = vpack.c.b16 %v1783, %v1779
    %v1924 = vpack.c.b16 %v1784, %v1780
    %v1925 = vpack.c.b16 %v1785, %v1781
    %v1926 = vpack.c.b16 %v1790, %v1786
    %v1927 = vpack.c.b16 %v1791, %v1787
    %v1928 = vpack.c.b16 %v1792, %v1788
    %v1929 = vpack.c.b16 %v1793, %v1789
    %v1930 = vpack.c.b16 %v1798, %v1794
    %v1931 = vpack.c.b16 %v1799, %v1795
    %v1932 = vpack.c.b16 %v1800, %v1796
    %v1933 = vpack.c.b16 %v1801, %v1797
    %v1934 = vpack.c.b16 %v1806, %v1802
    %v1935 = vpack.c.b16 %v1807, %v1803
    %v1936 = vpack.c.b16 %v1808, %v1804
    %v1937 = vpack.c.b16 %v1809, %v1805
    %2066 = vmatprep.subr.bf16.mxu0 %v1811
    %2067 = vmatpush1.bf16.msra.mxu0 %v1810
    %2068 = vmatprep.subr.bf16.mxu0 %v1815
    %2069 = vmatpush1.bf16.msra.mxu0 %v1814
    %2070 = vmatprep.subr.bf16.mxu0 %v1819
    %2071 = vmatpush1.bf16.msra.mxu0 %v1818
    %2072 = vmatprep.subr.bf16.mxu0 %v1823
    %2073 = vmatpush1.bf16.msra.mxu0 %v1822
    %2074 = vmatprep.subr.bf16.mxu0 %v1827
    %2075 = vmatpush1.bf16.msra.mxu0 %v1826
    %2076 = vmatprep.subr.bf16.mxu0 %v1831
    %2077 = vmatpush1.bf16.msra.mxu0 %v1830
    %2078 = vmatprep.subr.bf16.mxu0 %v1835
    %2079 = vmatpush1.bf16.msra.mxu0 %v1834
    %2080 = vmatprep.subr.bf16.mxu0 %v1839
    %2081 = vmatpush1.bf16.msra.mxu0 %v1838
    %2082 = vmatprep.subr.bf16.mxu0 %v1843
    %2083 = vmatpush1.bf16.msra.mxu0 %v1842
    %2084 = vmatprep.subr.bf16.mxu0 %v1847
    %2085 = vmatpush1.bf16.msra.mxu0 %v1846
    %2086 = vmatprep.subr.bf16.mxu0 %v1851
    %2087 = vmatpush1.bf16.msra.mxu0 %v1850
    %2088 = vmatprep.subr.bf16.mxu0 %v1855
    %2089 = vmatpush1.bf16.msra.mxu0 %v1854
    %2090 = vmatprep.subr.bf16.mxu0 %v1859
    %2091 = vmatpush1.bf16.msra.mxu0 %v1858
    %2092 = vmatprep.subr.bf16.mxu0 %v1863
    %2093 = vmatpush1.bf16.msra.mxu0 %v1862
    %2094 = vmatprep.subr.bf16.mxu0 %v1867
    %2095 = vmatpush1.bf16.msra.mxu0 %v1866
    %2096 = vmatprep.subr.bf16.mxu0 %v1871
    %2097 = vmatpush1.bf16.msra.mxu0 %v1870
    %2098 = vmatprep.mubr.bf16.mxu0 %v1273
    %2099 = vmatmul.mubr.bf16.gmra.mrb[0].mxu0 %v1272
    %v2100 = vpop.f32.mrb[0].mxu0
    %v2101 = vadd.f32 %v1409, %v2100
    %v2102 = vpop.f32.mrb[0].mxu0
    %v2103 = vadd.f32 %v1413, %v2102
    %v2104 = vpop.f32.mrb[0].mxu0
    %v2105 = vpop.f32.mrb[0].mxu0
    %2106 = vdwg.mxu0
    %2107 = vmatprep.subr.bf16.mxu0 %v1875
    %2108 = vmatpush1.bf16.msra.mxu0 %v1874
    %2109 = vmatprep.subr.bf16.mxu0 %v1879
    %2110 = vmatpush1.bf16.msra.mxu0 %v1878
    %2111 = vmatprep.subr.bf16.mxu0 %v1883
    %2112 = vmatpush1.bf16.msra.mxu0 %v1882
    %2113 = vmatprep.subr.bf16.mxu0 %v1887
    %2114 = vmatpush1.bf16.msra.mxu0 %v1886
    %2115 = vmatprep.subr.bf16.mxu0 %v1891
    %2116 = vmatpush1.bf16.msra.mxu0 %v1890
    %2117 = vmatprep.subr.bf16.mxu0 %v1895
    %2118 = vmatpush1.bf16.msra.mxu0 %v1894
    %2119 = vmatprep.subr.bf16.mxu0 %v1899
    %2120 = vmatpush1.bf16.msra.mxu0 %v1898
    %2121 = vmatprep.subr.bf16.mxu0 %v1903
    %2122 = vmatpush1.bf16.msra.mxu0 %v1902
    %2123 = vmatprep.subr.bf16.mxu0 %v1907
    %2124 = vmatpush1.bf16.msra.mxu0 %v1906
    %2125 = vmatprep.subr.bf16.mxu0 %v1911
    %2126 = vmatpush1.bf16.msra.mxu0 %v1910
    %2127 = vmatprep.subr.bf16.mxu0 %v1915
    %2128 = vmatpush1.bf16.msra.mxu0 %v1914
    %2129 = vmatprep.subr.bf16.mxu0 %v1919
    %2130 = vmatpush1.bf16.msra.mxu0 %v1918
    %2131 = vmatprep.subr.bf16.mxu0 %v1923
    %2132 = vmatpush1.bf16.msra.mxu0 %v1922
    %2133 = vmatprep.subr.bf16.mxu0 %v1927
    %2134 = vmatpush1.bf16.msra.mxu0 %v1926
    %2135 = vmatprep.subr.bf16.mxu0 %v1931
    %2136 = vmatpush1.bf16.msra.mxu0 %v1930
    %2137 = vmatprep.subr.bf16.mxu0 %v1935
    %2138 = vmatpush1.bf16.msra.mxu0 %v1934
    %2139 = vmatprep.mubr.bf16.mxu0 %v1275
    %2140 = vmatmul.mubr.bf16.gmra.mrb[0].mxu0 %v1274
    %v2141 = vpop.f32.mrb[0].mxu0
    %v2142 = vadd.f32 %v2101, %v2141
    %v2143 = vpop.f32.mrb[0].mxu0
    %v2144 = vadd.f32 %v2103, %v2143
    %v2145 = vpop.f32.mrb[0].mxu0
    %v2146 = vpop.f32.mrb[0].mxu0
    %2147 = vdwg.mxu0
    %2148 = vmatprep.subr.bf16.mxu0 %v1813
    %2149 = vmatpush1.bf16.msra.mxu0 %v1812
    %2150 = vmatprep.subr.bf16.mxu0 %v1817
    %2151 = vmatpush1.bf16.msra.mxu0 %v1816
    %2152 = vmatprep.subr.bf16.mxu0 %v1821
    %2153 = vmatpush1.bf16.msra.mxu0 %v1820
    %2154 = vmatprep.subr.bf16.mxu0 %v1825
    %2155 = vmatpush1.bf16.msra.mxu0 %v1824
    %2156 = vmatprep.subr.bf16.mxu0 %v1829
    %2157 = vmatpush1.bf16.msra.mxu0 %v1828
    %2158 = vmatprep.subr.bf16.mxu0 %v1833
    %2159 = vmatpush1.bf16.msra.mxu0 %v1832
    %2160 = vmatprep.subr.bf16.mxu0 %v1837
    %2161 = vmatpush1.bf16.msra.mxu0 %v1836
    %2162 = vmatprep.subr.bf16.mxu0 %v1841
    %2163 = vmatpush1.bf16.msra.mxu0 %v1840
    %2164 = vmatprep.subr.bf16.mxu0 %v1845
    %2165 = vmatpush1.bf16.msra.mxu0 %v1844
    %2166 = vmatprep.subr.bf16.mxu0 %v1849
    %2167 = vmatpush1.bf16.msra.mxu0 %v1848
    %2168 = vmatprep.subr.bf16.mxu0 %v1853
    %2169 = vmatpush1.bf16.msra.mxu0 %v1852
    %2170 = vmatprep.subr.bf16.mxu0 %v1857
    %2171 = vmatpush1.bf16.msra.mxu0 %v1856
    %2172 = vmatprep.subr.bf16.mxu0 %v1861
    %2173 = vmatpush1.bf16.msra.mxu0 %v1860
    %2174 = vmatprep.subr.bf16.mxu0 %v1865
    %2175 = vmatpush1.bf16.msra.mxu0 %v1864
    %2176 = vmatprep.subr.bf16.mxu0 %v1869
    %2177 = vmatpush1.bf16.msra.mxu0 %v1868
    %2178 = vmatprep.subr.bf16.mxu0 %v1873
    %2179 = vmatpush1.bf16.msra.mxu0 %v1872
    %2180 = vmatprep.mubr.bf16.mxu0 %v1273
    %2181 = vmatmul.mubr.bf16.gmra.mrb[0].mxu0 %v1272
    %v2182 = vpop.f32.mrb[0].mxu0
    %v2183 = vadd.f32 %v1417, %v2182
    %v2184 = vpop.f32.mrb[0].mxu0
    %v2185 = vadd.f32 %v1421, %v2184
    %v2186 = vpop.f32.mrb[0].mxu0
    %v2187 = vpop.f32.mrb[0].mxu0
    %2188 = vdwg.mxu0
    %2189 = vmatprep.subr.bf16.mxu0 %v1877
    %2190 = vmatpush1.bf16.msra.mxu0 %v1876
    %2191 = vmatprep.subr.bf16.mxu0 %v1881
    %2192 = vmatpush1.bf16.msra.mxu0 %v1880
    %2193 = vmatprep.subr.bf16.mxu0 %v1885
    %2194 = vmatpush1.bf16.msra.mxu0 %v1884
    %2195 = vmatprep.subr.bf16.mxu0 %v1889
    %2196 = vmatpush1.bf16.msra.mxu0 %v1888
    %2197 = vmatprep.subr.bf16.mxu0 %v1893
    %2198 = vmatpush1.bf16.msra.mxu0 %v1892
    %2199 = vmatprep.subr.bf16.mxu0 %v1897
    %2200 = vmatpush1.bf16.msra.mxu0 %v1896
    %2201 = vmatprep.subr.bf16.mxu0 %v1901
    %2202 = vmatpush1.bf16.msra.mxu0 %v1900
    %2203 = vmatprep.subr.bf16.mxu0 %v1905
    %2204 = vmatpush1.bf16.msra.mxu0 %v1904
    %2205 = vmatprep.subr.bf16.mxu0 %v1909
    %2206 = vmatpush1.bf16.msra.mxu0 %v1908
    %2207 = vmatprep.subr.bf16.mxu0 %v1913
    %2208 = vmatpush1.bf16.msra.mxu0 %v1912
    %2209 = vmatprep.subr.bf16.mxu0 %v1917
    %2210 = vmatpush1.bf16.msra.mxu0 %v1916
    %2211 = vmatprep.subr.bf16.mxu0 %v1921
    %2212 = vmatpush1.bf16.msra.mxu0 %v1920
    %2213 = vmatprep.subr.bf16.mxu0 %v1925
    %2214 = vmatpush1.bf16.msra.mxu0 %v1924
    %2215 = vmatprep.subr.bf16.mxu0 %v1929
    %2216 = vmatpush1.bf16.msra.mxu0 %v1928
    %2217 = vmatprep.subr.bf16.mxu0 %v1933
    %2218 = vmatpush1.bf16.msra.mxu0 %v1932
    %2219 = vmatprep.subr.bf16.mxu0 %v1937
    %2220 = vmatpush1.bf16.msra.mxu0 %v1936
    %2221 = vmatprep.mubr.bf16.mxu0 %v1275
    %2222 = vmatmul.mubr.bf16.gmra.mrb[0].mxu0 %v1274
    %v2223 = vpop.f32.mrb[0].mxu0
    %v2224 = vadd.f32 %v2183, %v2223
    %v2225 = vpop.f32.mrb[0].mxu0
    %v2226 = vadd.f32 %v2185, %v2225
    %v2227 = vpop.f32.mrb[0].mxu0
    %v2228 = vpop.f32.mrb[0].mxu0
    %2229 = vdwg.mxu0
    %v2230 = vxor.u32 %v2142, 2147483648
    %v2231 = vxor.u32 %v2144, 2147483648
    %v2232 = vxor.u32 %v2224, 2147483648
    %v2233 = vxor.u32 %v2226, 2147483648
    %v2234 = vmul.f32 %v2230, 1.442695
    %v2235 = vpow.pop %v2234
    %v2236 = vmul.f32 %v2231, 1.442695
    %v2237 = vpow.pop %v2236
    %v2238 = vmul.f32 %v2232, 1.442695
    %v2239 = vpow.pop %v2238
    %v2240 = vmul.f32 %v2233, 1.442695
    %v2241 = vpow.pop %v2240
    %v2242 = vadd.f32 %v2235, 1.0
    %v2243 = vadd.f32 %v2237, 1.0
    %v2244 = vadd.f32 %v2239, 1.0
    %v2245 = vadd.f32 %v2241, 1.0
    %v2246 = vrcp.pop %v2242
    %v2247 = vmul.f32 1.0, %v2246
    %v2248 = vrcp.pop %v2243
    %v2249 = vmul.f32 1.0, %v2248
    %v2250 = vrcp.pop %v2244
    %v2251 = vmul.f32 1.0, %v2250
    %v2252 = vrcp.pop %v2245
    %v2253 = vmul.f32 1.0, %v2252
    %v2254 = vmul.f32 %v2142, %v2247
    %v2255 = vmul.f32 %v2144, %v2249
    %v2256 = vmul.f32 %v2224, %v2251
    %v2257 = vmul.f32 %v2226, %v2253
    %v2258 = vpack.c.bf16 %v2254, %v2254
    %v2259 = vpack.c.bf16 %v2255, %v2255
    %v2260 = vpack.c.bf16 %v2256, %v2256
    %v2261 = vpack.c.bf16 %v2257, %v2257
    %v2262 = vld [vmem:[#allocation10] sm:$0xff]
    %v2263 = vld [vmem:[#allocation10 + $0x8] sm:$0xff]
    %v2264 = vld [vmem:[#allocation10 + $0x10] sm:$0xff]
    %v2265 = vld [vmem:[#allocation10 + $0x18] sm:$0xf]
    %v2266 = vld [vmem:[#allocation10 + $0x1c] sm:$0xff]
    %v2267 = vld [vmem:[#allocation10 + $0x24] sm:$0xff]
    %v2268 = vld [vmem:[#allocation10 + $0x2c] sm:$0xff]
    %v2269 = vld [vmem:[#allocation10 + $0x34] sm:$0xf]
    %v2270 = vld [vmem:[#allocation10 + $0x38] sm:$0xff]
    %v2271 = vld [vmem:[#allocation10 + $0x40] sm:$0xff]
    %v2272 = vld [vmem:[#allocation10 + $0x48] sm:$0xff]
    %v2273 = vld [vmem:[#allocation10 + $0x50] sm:$0xf]
    %v2274 = vld [vmem:[#allocation10 + $0x54] sm:$0xff]
    %v2275 = vld [vmem:[#allocation10 + $0x5c] sm:$0xff]
    %v2276 = vld [vmem:[#allocation10 + $0x64] sm:$0xff]
    %v2277 = vld [vmem:[#allocation10 + $0x6c] sm:$0xf]
    %v2278 = vld [vmem:[#allocation10 + $0x70] sm:$0xff]
    %v2279 = vld [vmem:[#allocation10 + $0x78] sm:$0xff]
    %v2280 = vld [vmem:[#allocation10 + $0x80] sm:$0xff]
    %v2281 = vld [vmem:[#allocation10 + $0x88] sm:$0xf]
    %v2282 = vld [vmem:[#allocation10 + $0x8c] sm:$0xff]
    %v2283 = vld [vmem:[#allocation10 + $0x94] sm:$0xff]
    %v2284 = vld [vmem:[#allocation10 + $0x9c] sm:$0xff]
    %v2285 = vld [vmem:[#allocation10 + $0xa4] sm:$0xf]
    %v2286 = vld [vmem:[#allocation10 + $0xa8] sm:$0xff]
    %v2287 = vld [vmem:[#allocation10 + $0xb0] sm:$0xff]
    %v2288 = vld [vmem:[#allocation10 + $0xb8] sm:$0xff]
    %v2289 = vld [vmem:[#allocation10 + $0xc0] sm:$0xf]
    %v2290 = vld [vmem:[#allocation10 + $0xc4] sm:$0xff]
    %v2291 = vld [vmem:[#allocation10 + $0xcc] sm:$0xff]
    %v2292 = vld [vmem:[#allocation10 + $0xd4] sm:$0xff]
    %v2293 = vld [vmem:[#allocation10 + $0xdc] sm:$0xf]
    %v2294 = vld [vmem:[#allocation10 + $0xe0] sm:$0xff]
    %v2295 = vld [vmem:[#allocation10 + $0xe8] sm:$0xff]
    %v2296 = vld [vmem:[#allocation10 + $0xf0] sm:$0xff]
    %v2297 = vld [vmem:[#allocation10 + $0xf8] sm:$0xf]
    %v2298 = vld [vmem:[#allocation10 + $0xfc] sm:$0xff]
    %v2299 = vld [vmem:[#allocation10 + $0x104] sm:$0xff]
    %v2300 = vld [vmem:[#allocation10 + $0x10c] sm:$0xff]
    %v2301 = vld [vmem:[#allocation10 + $0x114] sm:$0xf]
    %v2302 = vld [vmem:[#allocation10 + $0x118] sm:$0xff]
    %v2303 = vld [vmem:[#allocation10 + $0x120] sm:$0xff]
    %v2304 = vld [vmem:[#allocation10 + $0x128] sm:$0xff]
    %v2305 = vld [vmem:[#allocation10 + $0x130] sm:$0xf]
    %v2306 = vld [vmem:[#allocation10 + $0x134] sm:$0xff]
    %v2307 = vld [vmem:[#allocation10 + $0x13c] sm:$0xff]
    %v2308 = vld [vmem:[#allocation10 + $0x144] sm:$0xff]
    %v2309 = vld [vmem:[#allocation10 + $0x14c] sm:$0xf]
    %v2310 = vld [vmem:[#allocation10 + $0x150] sm:$0xff]
    %v2311 = vld [vmem:[#allocation10 + $0x158] sm:$0xff]
    %v2312 = vld [vmem:[#allocation10 + $0x160] sm:$0xff]
    %v2313 = vld [vmem:[#allocation10 + $0x168] sm:$0xf]
    %v2314 = vld [vmem:[#allocation10 + $0x16c] sm:$0xff]
    %v2315 = vld [vmem:[#allocation10 + $0x174] sm:$0xff]
    %v2316 = vld [vmem:[#allocation10 + $0x17c] sm:$0xff]
    %v2317 = vld [vmem:[#allocation10 + $0x184] sm:$0xf]
    %v2318 = vld [vmem:[#allocation10 + $0x188] sm:$0xff]
    %v2319 = vld [vmem:[#allocation10 + $0x190] sm:$0xff]
    %v2320 = vld [vmem:[#allocation10 + $0x198] sm:$0xff]
    %v2321 = vld [vmem:[#allocation10 + $0x1a0] sm:$0xf]
    %v2322 = vld [vmem:[#allocation10 + $0x1a4] sm:$0xff]
    %v2323 = vld [vmem:[#allocation10 + $0x1ac] sm:$0xff]
    %v2324 = vld [vmem:[#allocation10 + $0x1b4] sm:$0xff]
    %v2325 = vld [vmem:[#allocation10 + $0x1bc] sm:$0xf]
    %v2326 = vld [vmem:[#allocation10 + $0x1c0] sm:$0xff]
    %v2327 = vld [vmem:[#allocation10 + $0x1c8] sm:$0xff]
    %v2328 = vld [vmem:[#allocation10 + $0x1d0] sm:$0xff]
    %v2329 = vld [vmem:[#allocation10 + $0x1d8] sm:$0xf]
    %v2330 = vld [vmem:[#allocation10 + $0x1dc] sm:$0xff]
    %v2331 = vld [vmem:[#allocation10 + $0x1e4] sm:$0xff]
    %v2332 = vld [vmem:[#allocation10 + $0x1ec] sm:$0xff]
    %v2333 = vld [vmem:[#allocation10 + $0x1f4] sm:$0xf]
    %v2334 = vld [vmem:[#allocation10 + $0x1f8] sm:$0xff]
    %v2335 = vld [vmem:[#allocation10 + $0x200] sm:$0xff]
    %v2336 = vld [vmem:[#allocation10 + $0x208] sm:$0xff]
    %v2337 = vld [vmem:[#allocation10 + $0x210] sm:$0xf]
    %v2338 = vld [vmem:[#allocation10 + $0x214] sm:$0xff]
    %v2339 = vld [vmem:[#allocation10 + $0x21c] sm:$0xff]
    %v2340 = vld [vmem:[#allocation10 + $0x224] sm:$0xff]
    %v2341 = vld [vmem:[#allocation10 + $0x22c] sm:$0xf]
    %v2342 = vld [vmem:[#allocation10 + $0x230] sm:$0xff]
    %v2343 = vld [vmem:[#allocation10 + $0x238] sm:$0xff]
    %v2344 = vld [vmem:[#allocation10 + $0x240] sm:$0xff]
    %v2345 = vld [vmem:[#allocation10 + $0x248] sm:$0xf]
    %v2346 = vld [vmem:[#allocation10 + $0x24c] sm:$0xff]
    %v2347 = vld [vmem:[#allocation10 + $0x254] sm:$0xff]
    %v2348 = vld [vmem:[#allocation10 + $0x25c] sm:$0xff]
    %v2349 = vld [vmem:[#allocation10 + $0x264] sm:$0xf]
    %v2350 = vld [vmem:[#allocation10 + $0x268] sm:$0xff]
    %v2351 = vld [vmem:[#allocation10 + $0x270] sm:$0xff]
    %v2352 = vld [vmem:[#allocation10 + $0x278] sm:$0xff]
    %v2353 = vld [vmem:[#allocation10 + $0x280] sm:$0xf]
    %v2354 = vld [vmem:[#allocation10 + $0x284] sm:$0xff]
    %v2355 = vld [vmem:[#allocation10 + $0x28c] sm:$0xff]
    %v2356 = vld [vmem:[#allocation10 + $0x294] sm:$0xff]
    %v2357 = vld [vmem:[#allocation10 + $0x29c] sm:$0xf]
    %v2358 = vld [vmem:[#allocation10 + $0x2a0] sm:$0xff]
    %v2359 = vld [vmem:[#allocation10 + $0x2a8] sm:$0xff]
    %v2360 = vld [vmem:[#allocation10 + $0x2b0] sm:$0xff]
    %v2361 = vld [vmem:[#allocation10 + $0x2b8] sm:$0xf]
    %v2362 = vld [vmem:[#allocation10 + $0x2bc] sm:$0xff]
    %v2363 = vld [vmem:[#allocation10 + $0x2c4] sm:$0xff]
    %v2364 = vld [vmem:[#allocation10 + $0x2cc] sm:$0xff]
    %v2365 = vld [vmem:[#allocation10 + $0x2d4] sm:$0xf]
    %v2366 = vld [vmem:[#allocation10 + $0x2d8] sm:$0xff]
    %v2367 = vld [vmem:[#allocation10 + $0x2e0] sm:$0xff]
    %v2368 = vld [vmem:[#allocation10 + $0x2e8] sm:$0xff]
    %v2369 = vld [vmem:[#allocation10 + $0x2f0] sm:$0xf]
    %v2370 = vld [vmem:[#allocation10 + $0x2f4] sm:$0xff]
    %v2371 = vld [vmem:[#allocation10 + $0x2fc] sm:$0xff]
    %v2372 = vld [vmem:[#allocation10 + $0x304] sm:$0xff]
    %v2373 = vld [vmem:[#allocation10 + $0x30c] sm:$0xf]
    %v2374 = vld [vmem:[#allocation10 + $0x310] sm:$0xff]
    %v2375 = vld [vmem:[#allocation10 + $0x318] sm:$0xff]
    %v2376 = vld [vmem:[#allocation10 + $0x320] sm:$0xff]
    %v2377 = vld [vmem:[#allocation10 + $0x328] sm:$0xf]
    %v2378 = vld [vmem:[#allocation10 + $0x32c] sm:$0xff]
    %v2379 = vld [vmem:[#allocation10 + $0x334] sm:$0xff]
    %v2380 = vld [vmem:[#allocation10 + $0x33c] sm:$0xff]
    %v2381 = vld [vmem:[#allocation10 + $0x344] sm:$0xf]
    %v2382 = vld [vmem:[#allocation10 + $0x348] sm:$0xff]
    %v2383 = vld [vmem:[#allocation10 + $0x350] sm:$0xff]
    %v2384 = vld [vmem:[#allocation10 + $0x358] sm:$0xff]
    %v2385 = vld [vmem:[#allocation10 + $0x360] sm:$0xf]
    %v2386 = vld [vmem:[#allocation10 + $0x364] sm:$0xff]
    %v2387 = vld [vmem:[#allocation10 + $0x36c] sm:$0xff]
    %v2388 = vld [vmem:[#allocation10 + $0x374] sm:$0xff]
    %v2389 = vld [vmem:[#allocation10 + $0x37c] sm:$0xf]
    %v2390 = vld [vmem:[#allocation10 + $0x380] sm:$0xff]
    %v2391 = vld [vmem:[#allocation10 + $0x388] sm:$0xff]
    %v2392 = vld [vmem:[#allocation10 + $0x390] sm:$0xff]
    %v2393 = vld [vmem:[#allocation10 + $0x398] sm:$0xf]
    %v2394 = vld [vmem:[#allocation10 + $0x39c] sm:$0xff]
    %v2395 = vld [vmem:[#allocation10 + $0x3a4] sm:$0xff]
    %v2396 = vld [vmem:[#allocation10 + $0x3ac] sm:$0xff]
    %v2397 = vld [vmem:[#allocation10 + $0x3b4] sm:$0xf]
    %v2398 = vld [vmem:[#allocation10 + $0x3b8] sm:$0xff]
    %v2399 = vld [vmem:[#allocation10 + $0x3c0] sm:$0xff]
    %v2400 = vld [vmem:[#allocation10 + $0x3c8] sm:$0xff]
    %v2401 = vld [vmem:[#allocation10 + $0x3d0] sm:$0xf]
    %v2402 = vld [vmem:[#allocation10 + $0x3d4] sm:$0xff]
    %v2403 = vld [vmem:[#allocation10 + $0x3dc] sm:$0xff]
    %v2404 = vld [vmem:[#allocation10 + $0x3e4] sm:$0xff]
    %v2405 = vld [vmem:[#allocation10 + $0x3ec] sm:$0xf]
    %v2406 = vld [vmem:[#allocation10 + $0x3f0] sm:$0xff]
    %v2407 = vld [vmem:[#allocation10 + $0x3f8] sm:$0xff]
    %v2408 = vld [vmem:[#allocation10 + $0x400] sm:$0xff]
    %v2409 = vld [vmem:[#allocation10 + $0x408] sm:$0xf]
    %v2410 = vld [vmem:[#allocation10 + $0x40c] sm:$0xff]
    %v2411 = vld [vmem:[#allocation10 + $0x414] sm:$0xff]
    %v2412 = vld [vmem:[#allocation10 + $0x41c] sm:$0xff]
    %v2413 = vld [vmem:[#allocation10 + $0x424] sm:$0xf]
    %v2414 = vld [vmem:[#allocation10 + $0x428] sm:$0xff]
    %v2415 = vld [vmem:[#allocation10 + $0x430] sm:$0xff]
    %v2416 = vld [vmem:[#allocation10 + $0x438] sm:$0xff]
    %v2417 = vld [vmem:[#allocation10 + $0x440] sm:$0xf]
    %v2418 = vld [vmem:[#allocation10 + $0x444] sm:$0xff]
    %v2419 = vld [vmem:[#allocation10 + $0x44c] sm:$0xff]
    %v2420 = vld [vmem:[#allocation10 + $0x454] sm:$0xff]
    %v2421 = vld [vmem:[#allocation10 + $0x45c] sm:$0xf]
    %v2422 = vld [vmem:[#allocation10 + $0x460] sm:$0xff]
    %v2423 = vld [vmem:[#allocation10 + $0x468] sm:$0xff]
    %v2424 = vld [vmem:[#allocation10 + $0x470] sm:$0xff]
    %v2425 = vld [vmem:[#allocation10 + $0x478] sm:$0xf]
    %v2426 = vld [vmem:[#allocation10 + $0x47c] sm:$0xff]
    %v2427 = vld [vmem:[#allocation10 + $0x484] sm:$0xff]
    %v2428 = vld [vmem:[#allocation10 + $0x48c] sm:$0xff]
    %v2429 = vld [vmem:[#allocation10 + $0x494] sm:$0xf]
    %v2430 = vld [vmem:[#allocation10 + $0x498] sm:$0xff]
    %v2431 = vld [vmem:[#allocation10 + $0x4a0] sm:$0xff]
    %v2432 = vld [vmem:[#allocation10 + $0x4a8] sm:$0xff]
    %v2433 = vld [vmem:[#allocation10 + $0x4b0] sm:$0xf]
    %v2434 = vld [vmem:[#allocation10 + $0x4b4] sm:$0xff]
    %v2435 = vld [vmem:[#allocation10 + $0x4bc] sm:$0xff]
    %v2436 = vld [vmem:[#allocation10 + $0x4c4] sm:$0xff]
    %v2437 = vld [vmem:[#allocation10 + $0x4cc] sm:$0xf]
    %v2438 = vld [vmem:[#allocation10 + $0x4d0] sm:$0xff]
    %v2439 = vld [vmem:[#allocation10 + $0x4d8] sm:$0xff]
    %v2440 = vld [vmem:[#allocation10 + $0x4e0] sm:$0xff]
    %v2441 = vld [vmem:[#allocation10 + $0x4e8] sm:$0xf]
    %v2442 = vld [vmem:[#allocation10 + $0x4ec] sm:$0xff]
    %v2443 = vld [vmem:[#allocation10 + $0x4f4] sm:$0xff]
    %v2444 = vld [vmem:[#allocation10 + $0x4fc] sm:$0xff]
    %v2445 = vld [vmem:[#allocation10 + $0x504] sm:$0xf]
    %v2446 = vld [vmem:[#allocation10 + $0x508] sm:$0xff]
    %v2447 = vld [vmem:[#allocation10 + $0x510] sm:$0xff]
    %v2448 = vld [vmem:[#allocation10 + $0x518] sm:$0xff]
    %v2449 = vld [vmem:[#allocation10 + $0x520] sm:$0xf]
    %v2450 = vld [vmem:[#allocation10 + $0x524] sm:$0xff]
    %v2451 = vld [vmem:[#allocation10 + $0x52c] sm:$0xff]
    %v2452 = vld [vmem:[#allocation10 + $0x534] sm:$0xff]
    %v2453 = vld [vmem:[#allocation10 + $0x53c] sm:$0xf]
    %v2454 = vld [vmem:[#allocation10 + $0x540] sm:$0xff]
    %v2455 = vld [vmem:[#allocation10 + $0x548] sm:$0xff]
    %v2456 = vld [vmem:[#allocation10 + $0x550] sm:$0xff]
    %v2457 = vld [vmem:[#allocation10 + $0x558] sm:$0xf]
    %v2458 = vld [vmem:[#allocation10 + $0x55c] sm:$0xff]
    %v2459 = vld [vmem:[#allocation10 + $0x564] sm:$0xff]
    %v2460 = vld [vmem:[#allocation10 + $0x56c] sm:$0xff]
    %v2461 = vld [vmem:[#allocation10 + $0x574] sm:$0xf]
    %v2462 = vld [vmem:[#allocation10 + $0x578] sm:$0xff]
    %v2463 = vld [vmem:[#allocation10 + $0x580] sm:$0xff]
    %v2464 = vld [vmem:[#allocation10 + $0x588] sm:$0xff]
    %v2465 = vld [vmem:[#allocation10 + $0x590] sm:$0xf]
    %v2466 = vld [vmem:[#allocation10 + $0x594] sm:$0xff]
    %v2467 = vld [vmem:[#allocation10 + $0x59c] sm:$0xff]
    %v2468 = vld [vmem:[#allocation10 + $0x5a4] sm:$0xff]
    %v2469 = vld [vmem:[#allocation10 + $0x5ac] sm:$0xf]
    %v2470 = vld [vmem:[#allocation10 + $0x5b0] sm:$0xff]
    %v2471 = vld [vmem:[#allocation10 + $0x5b8] sm:$0xff]
    %v2472 = vld [vmem:[#allocation10 + $0x5c0] sm:$0xff]
    %v2473 = vld [vmem:[#allocation10 + $0x5c8] sm:$0xf]
    %v2474 = vld [vmem:[#allocation10 + $0x5cc] sm:$0xff]
    %v2475 = vld [vmem:[#allocation10 + $0x5d4] sm:$0xff]
    %v2476 = vld [vmem:[#allocation10 + $0x5dc] sm:$0xff]
    %v2477 = vld [vmem:[#allocation10 + $0x5e4] sm:$0xf]
    %v2478 = vld [vmem:[#allocation10 + $0x5e8] sm:$0xff]
    %v2479 = vld [vmem:[#allocation10 + $0x5f0] sm:$0xff]
    %v2480 = vld [vmem:[#allocation10 + $0x5f8] sm:$0xff]
    %v2481 = vld [vmem:[#allocation10 + $0x600] sm:$0xf]
    %v2482 = vld [vmem:[#allocation10 + $0x604] sm:$0xff]
    %v2483 = vld [vmem:[#allocation10 + $0x60c] sm:$0xff]
    %v2484 = vld [vmem:[#allocation10 + $0x614] sm:$0xff]
    %v2485 = vld [vmem:[#allocation10 + $0x61c] sm:$0xf]
    %v2486 = vld [vmem:[#allocation10 + $0x620] sm:$0xff]
    %v2487 = vld [vmem:[#allocation10 + $0x628] sm:$0xff]
    %v2488 = vld [vmem:[#allocation10 + $0x630] sm:$0xff]
    %v2489 = vld [vmem:[#allocation10 + $0x638] sm:$0xf]
    %v2490 = vld [vmem:[#allocation10 + $0x63c] sm:$0xff]
    %v2491 = vld [vmem:[#allocation10 + $0x644] sm:$0xff]
    %v2492 = vld [vmem:[#allocation10 + $0x64c] sm:$0xff]
    %v2493 = vld [vmem:[#allocation10 + $0x654] sm:$0xf]
    %v2494 = vld [vmem:[#allocation10 + $0x658] sm:$0xff]
    %v2495 = vld [vmem:[#allocation10 + $0x660] sm:$0xff]
    %v2496 = vld [vmem:[#allocation10 + $0x668] sm:$0xff]
    %v2497 = vld [vmem:[#allocation10 + $0x670] sm:$0xf]
    %v2498 = vld [vmem:[#allocation10 + $0x674] sm:$0xff]
    %v2499 = vld [vmem:[#allocation10 + $0x67c] sm:$0xff]
    %v2500 = vld [vmem:[#allocation10 + $0x684] sm:$0xff]
    %v2501 = vld [vmem:[#allocation10 + $0x68c] sm:$0xf]
    %v2502 = vld [vmem:[#allocation10 + $0x690] sm:$0xff]
    %v2503 = vld [vmem:[#allocation10 + $0x698] sm:$0xff]
    %v2504 = vld [vmem:[#allocation10 + $0x6a0] sm:$0xff]
    %v2505 = vld [vmem:[#allocation10 + $0x6a8] sm:$0xf]
    %v2506 = vld [vmem:[#allocation10 + $0x6ac] sm:$0xff]
    %v2507 = vld [vmem:[#allocation10 + $0x6b4] sm:$0xff]
    %v2508 = vld [vmem:[#allocation10 + $0x6bc] sm:$0xff]
    %v2509 = vld [vmem:[#allocation10 + $0x6c4] sm:$0xf]
    %v2510 = vld [vmem:[#allocation10 + $0x6c8] sm:$0xff]
    %v2511 = vld [vmem:[#allocation10 + $0x6d0] sm:$0xff]
    %v2512 = vld [vmem:[#allocation10 + $0x6d8] sm:$0xff]
    %v2513 = vld [vmem:[#allocation10 + $0x6e0] sm:$0xf]
    %v2514 = vld [vmem:[#allocation10 + $0x6e4] sm:$0xff]
    %v2515 = vld [vmem:[#allocation10 + $0x6ec] sm:$0xff]
    %v2516 = vld [vmem:[#allocation10 + $0x6f4] sm:$0xff]
    %v2517 = vld [vmem:[#allocation10 + $0x6fc] sm:$0xf]
    %v2518 = vld [vmem:[%s8] sm:$0xff]
    %v2520 = vlaneseq
    %v2521 = vshrl.u32 %v2520, 7
    %v2522 = vsub.s32 0, %v2521
    %v2523 = vrot.slane %v2518, %v2522
    %v2524 = vlaneseq
    %v2525 = vshrl.u32 %v2524, 7
    %v2526 = vsub.s32 1, %v2525
    %v2527 = vrot.slane %v2518, %v2526
    %v2528 = vlaneseq
    %v2529 = vshrl.u32 %v2528, 7
    %v2530 = vsub.s32 2, %v2529
    %v2531 = vrot.slane %v2518, %v2530
    %v2532 = vlaneseq
    %v2533 = vshrl.u32 %v2532, 7
    %v2534 = vsub.s32 3, %v2533
    %v2535 = vrot.slane %v2518, %v2534
    %v2536 = vlaneseq
    %v2537 = vshrl.u32 %v2536, 7
    %v2538 = vsub.s32 4, %v2537
    %v2539 = vrot.slane %v2518, %v2538
    %v2540 = vlaneseq
    %v2541 = vshrl.u32 %v2540, 7
    %v2542 = vsub.s32 5, %v2541
    %v2543 = vrot.slane %v2518, %v2542
    %v2544 = vlaneseq
    %v2545 = vshrl.u32 %v2544, 7
    %v2546 = vsub.s32 6, %v2545
    %v2547 = vrot.slane %v2518, %v2546
    %v2811 = vunpack.c.l.b16 %v2262
    %v2812 = vunpack.c.h.b16 %v2262
    %v2813 = vunpack.c.l.b16 %v2263
    %v2814 = vunpack.c.h.b16 %v2263
    %v2815 = vunpack.c.l.b16 %v2264
    %v2816 = vunpack.c.h.b16 %v2264
    %v2817 = vunpack.c.l.b16 %v2265
    %v2818 = vunpack.c.l.b16 %v2266
    %v2819 = vunpack.c.h.b16 %v2266
    %v2820 = vunpack.c.l.b16 %v2267
    %v2821 = vunpack.c.h.b16 %v2267
    %v2822 = vunpack.c.l.b16 %v2268
    %v2823 = vunpack.c.h.b16 %v2268
    %v2824 = vunpack.c.l.b16 %v2269
    %v2825 = vunpack.c.l.b16 %v2270
    %v2826 = vunpack.c.h.b16 %v2270
    %v2827 = vunpack.c.l.b16 %v2271
    %v2828 = vunpack.c.h.b16 %v2271
    %v2829 = vunpack.c.l.b16 %v2272
    %v2830 = vunpack.c.h.b16 %v2272
    %v2831 = vunpack.c.l.b16 %v2273
    %v2832 = vunpack.c.l.b16 %v2274
    %v2833 = vunpack.c.h.b16 %v2274
    %v2834 = vunpack.c.l.b16 %v2275
    %v2835 = vunpack.c.h.b16 %v2275
    %v2836 = vunpack.c.l.b16 %v2276
    %v2837 = vunpack.c.h.b16 %v2276
    %v2838 = vunpack.c.l.b16 %v2277
    %v2839 = vunpack.c.l.b16 %v2278
    %v2840 = vunpack.c.h.b16 %v2278
    %v2841 = vunpack.c.l.b16 %v2279
    %v2842 = vunpack.c.h.b16 %v2279
    %v2843 = vunpack.c.l.b16 %v2280
    %v2844 = vunpack.c.h.b16 %v2280
    %v2845 = vunpack.c.l.b16 %v2281
    %v2846 = vunpack.c.l.b16 %v2282
    %v2847 = vunpack.c.h.b16 %v2282
    %v2848 = vunpack.c.l.b16 %v2283
    %v2849 = vunpack.c.h.b16 %v2283
    %v2850 = vunpack.c.l.b16 %v2284
    %v2851 = vunpack.c.h.b16 %v2284
    %v2852 = vunpack.c.l.b16 %v2285
    %v2853 = vunpack.c.l.b16 %v2286
    %v2854 = vunpack.c.h.b16 %v2286
    %v2855 = vunpack.c.l.b16 %v2287
    %v2856 = vunpack.c.h.b16 %v2287
    %v2857 = vunpack.c.l.b16 %v2288
    %v2858 = vunpack.c.h.b16 %v2288
    %v2859 = vunpack.c.l.b16 %v2289
    %v2860 = vunpack.c.l.b16 %v2290
    %v2861 = vunpack.c.h.b16 %v2290
    %v2862 = vunpack.c.l.b16 %v2291
    %v2863 = vunpack.c.h.b16 %v2291
    %v2864 = vunpack.c.l.b16 %v2292
    %v2865 = vunpack.c.h.b16 %v2292
    %v2866 = vunpack.c.l.b16 %v2293
    %v2867 = vunpack.c.l.b16 %v2294
    %v2868 = vunpack.c.h.b16 %v2294
    %v2869 = vunpack.c.l.b16 %v2295
    %v2870 = vunpack.c.h.b16 %v2295
    %v2871 = vunpack.c.l.b16 %v2296
    %v2872 = vunpack.c.h.b16 %v2296
    %v2873 = vunpack.c.l.b16 %v2297
    %v2874 = vunpack.c.l.b16 %v2298
    %v2875 = vunpack.c.h.b16 %v2298
    %v2876 = vunpack.c.l.b16 %v2299
    %v2877 = vunpack.c.h.b16 %v2299
    %v2878 = vunpack.c.l.b16 %v2300
    %v2879 = vunpack.c.h.b16 %v2300
    %v2880 = vunpack.c.l.b16 %v2301
    %v2881 = vunpack.c.l.b16 %v2302
    %v2882 = vunpack.c.h.b16 %v2302
    %v2883 = vunpack.c.l.b16 %v2303
    %v2884 = vunpack.c.h.b16 %v2303
    %v2885 = vunpack.c.l.b16 %v2304
    %v2886 = vunpack.c.h.b16 %v2304
    %v2887 = vunpack.c.l.b16 %v2305
    %v2888 = vunpack.c.l.b16 %v2306
    %v2889 = vunpack.c.h.b16 %v2306
    %v2890 = vunpack.c.l.b16 %v2307
    %v2891 = vunpack.c.h.b16 %v2307
    %v2892 = vunpack.c.l.b16 %v2308
    %v2893 = vunpack.c.h.b16 %v2308
    %v2894 = vunpack.c.l.b16 %v2309
    %v2895 = vunpack.c.l.b16 %v2310
    %v2896 = vunpack.c.h.b16 %v2310
    %v2897 = vunpack.c.l.b16 %v2311
    %v2898 = vunpack.c.h.b16 %v2311
    %v2899 = vunpack.c.l.b16 %v2312
    %v2900 = vunpack.c.h.b16 %v2312
    %v2901 = vunpack.c.l.b16 %v2313
    %v2902 = vunpack.c.l.b16 %v2314
    %v2903 = vunpack.c.h.b16 %v2314
    %v2904 = vunpack.c.l.b16 %v2315
    %v2905 = vunpack.c.h.b16 %v2315
    %v2906 = vunpack.c.l.b16 %v2316
    %v2907 = vunpack.c.h.b16 %v2316
    %v2908 = vunpack.c.l.b16 %v2317
    %v2909 = vunpack.c.l.b16 %v2318
    %v2910 = vunpack.c.h.b16 %v2318
    %v2911 = vunpack.c.l.b16 %v2319
    %v2912 = vunpack.c.h.b16 %v2319
    %v2913 = vunpack.c.l.b16 %v2320
    %v2914 = vunpack.c.h.b16 %v2320
    %v2915 = vunpack.c.l.b16 %v2321
    %v2916 = vunpack.c.l.b16 %v2322
    %v2917 = vunpack.c.h.b16 %v2322
    %v2918 = vunpack.c.l.b16 %v2323
    %v2919 = vunpack.c.h.b16 %v2323
    %v2920 = vunpack.c.l.b16 %v2324
    %v2921 = vunpack.c.h.b16 %v2324
    %v2922 = vunpack.c.l.b16 %v2325
    %v2923 = vunpack.c.l.b16 %v2326
    %v2924 = vunpack.c.h.b16 %v2326
    %v2925 = vunpack.c.l.b16 %v2327
    %v2926 = vunpack.c.h.b16 %v2327
    %v2927 = vunpack.c.l.b16 %v2328
    %v2928 = vunpack.c.h.b16 %v2328
    %v2929 = vunpack.c.l.b16 %v2329
    %v2930 = vunpack.c.l.b16 %v2330
    %v2931 = vunpack.c.h.b16 %v2330
    %v2932 = vunpack.c.l.b16 %v2331
    %v2933 = vunpack.c.h.b16 %v2331
    %v2934 = vunpack.c.l.b16 %v2332
    %v2935 = vunpack.c.h.b16 %v2332
    %v2936 = vunpack.c.l.b16 %v2333
    %v2937 = vunpack.c.l.b16 %v2334
    %v2938 = vunpack.c.h.b16 %v2334
    %v2939 = vunpack.c.l.b16 %v2335
    %v2940 = vunpack.c.h.b16 %v2335
    %v2941 = vunpack.c.l.b16 %v2336
    %v2942 = vunpack.c.h.b16 %v2336
    %v2943 = vunpack.c.l.b16 %v2337
    %v2944 = vunpack.c.l.b16 %v2338
    %v2945 = vunpack.c.h.b16 %v2338
    %v2946 = vunpack.c.l.b16 %v2339
    %v2947 = vunpack.c.h.b16 %v2339
    %v2948 = vunpack.c.l.b16 %v2340
    %v2949 = vunpack.c.h.b16 %v2340
    %v2950 = vunpack.c.l.b16 %v2341
    %v2951 = vunpack.c.l.b16 %v2342
    %v2952 = vunpack.c.h.b16 %v2342
    %v2953 = vunpack.c.l.b16 %v2343
    %v2954 = vunpack.c.h.b16 %v2343
    %v2955 = vunpack.c.l.b16 %v2344
    %v2956 = vunpack.c.h.b16 %v2344
    %v2957 = vunpack.c.l.b16 %v2345
    %v2958 = vunpack.c.l.b16 %v2346
    %v2959 = vunpack.c.h.b16 %v2346
    %v2960 = vunpack.c.l.b16 %v2347
    %v2961 = vunpack.c.h.b16 %v2347
    %v2962 = vunpack.c.l.b16 %v2348
    %v2963 = vunpack.c.h.b16 %v2348
    %v2964 = vunpack.c.l.b16 %v2349
    %v2965 = vunpack.c.l.b16 %v2350
    %v2966 = vunpack.c.h.b16 %v2350
    %v2967 = vunpack.c.l.b16 %v2351
    %v2968 = vunpack.c.h.b16 %v2351
    %v2969 = vunpack.c.l.b16 %v2352
    %v2970 = vunpack.c.h.b16 %v2352
    %v2971 = vunpack.c.l.b16 %v2353
    %v2972 = vunpack.c.l.b16 %v2354
    %v2973 = vunpack.c.h.b16 %v2354
    %v2974 = vunpack.c.l.b16 %v2355
    %v2975 = vunpack.c.h.b16 %v2355
    %v2976 = vunpack.c.l.b16 %v2356
    %v2977 = vunpack.c.h.b16 %v2356
    %v2978 = vunpack.c.l.b16 %v2357
    %v2979 = vunpack.c.l.b16 %v2358
    %v2980 = vunpack.c.h.b16 %v2358
    %v2981 = vunpack.c.l.b16 %v2359
    %v2982 = vunpack.c.h.b16 %v2359
    %v2983 = vunpack.c.l.b16 %v2360
    %v2984 = vunpack.c.h.b16 %v2360
    %v2985 = vunpack.c.l.b16 %v2361
    %v2986 = vunpack.c.l.b16 %v2362
    %v2987 = vunpack.c.h.b16 %v2362
    %v2988 = vunpack.c.l.b16 %v2363
    %v2989 = vunpack.c.h.b16 %v2363
    %v2990 = vunpack.c.l.b16 %v2364
    %v2991 = vunpack.c.h.b16 %v2364
    %v2992 = vunpack.c.l.b16 %v2365
    %v2993 = vunpack.c.l.b16 %v2366
    %v2994 = vunpack.c.h.b16 %v2366
    %v2995 = vunpack.c.l.b16 %v2367
    %v2996 = vunpack.c.h.b16 %v2367
    %v2997 = vunpack.c.l.b16 %v2368
    %v2998 = vunpack.c.h.b16 %v2368
    %v2999 = vunpack.c.l.b16 %v2369
    %v3000 = vunpack.c.l.b16 %v2370
    %v3001 = vunpack.c.h.b16 %v2370
    %v3002 = vunpack.c.l.b16 %v2371
    %v3003 = vunpack.c.h.b16 %v2371
    %v3004 = vunpack.c.l.b16 %v2372
    %v3005 = vunpack.c.h.b16 %v2372
    %v3006 = vunpack.c.l.b16 %v2373
    %v3007 = vunpack.c.l.b16 %v2374
    %v3008 = vunpack.c.h.b16 %v2374
    %v3009 = vunpack.c.l.b16 %v2375
    %v3010 = vunpack.c.h.b16 %v2375
    %v3011 = vunpack.c.l.b16 %v2376
    %v3012 = vunpack.c.h.b16 %v2376
    %v3013 = vunpack.c.l.b16 %v2377
    %v3014 = vunpack.c.l.b16 %v2378
    %v3015 = vunpack.c.h.b16 %v2378
    %v3016 = vunpack.c.l.b16 %v2379
    %v3017 = vunpack.c.h.b16 %v2379
    %v3018 = vunpack.c.l.b16 %v2380
    %v3019 = vunpack.c.h.b16 %v2380
    %v3020 = vunpack.c.l.b16 %v2381
    %v3021 = vunpack.c.l.b16 %v2382
    %v3022 = vunpack.c.h.b16 %v2382
    %v3023 = vunpack.c.l.b16 %v2383
    %v3024 = vunpack.c.h.b16 %v2383
    %v3025 = vunpack.c.l.b16 %v2384
    %v3026 = vunpack.c.h.b16 %v2384
    %v3027 = vunpack.c.l.b16 %v2385
    %v3028 = vunpack.c.l.b16 %v2386
    %v3029 = vunpack.c.h.b16 %v2386
    %v3030 = vunpack.c.l.b16 %v2387
    %v3031 = vunpack.c.h.b16 %v2387
    %v3032 = vunpack.c.l.b16 %v2388
    %v3033 = vunpack.c.h.b16 %v2388
    %v3034 = vunpack.c.l.b16 %v2389
    %v3035 = vunpack.c.l.b16 %v2390
    %v3036 = vunpack.c.h.b16 %v2390
    %v3037 = vunpack.c.l.b16 %v2391
    %v3038 = vunpack.c.h.b16 %v2391
    %v3039 = vunpack.c.l.b16 %v2392
    %v3040 = vunpack.c.h.b16 %v2392
    %v3041 = vunpack.c.l.b16 %v2393
    %v3042 = vunpack.c.l.b16 %v2394
    %v3043 = vunpack.c.h.b16 %v2394
    %v3044 = vunpack.c.l.b16 %v2395
    %v3045 = vunpack.c.h.b16 %v2395
    %v3046 = vunpack.c.l.b16 %v2396
    %v3047 = vunpack.c.h.b16 %v2396
    %v3048 = vunpack.c.l.b16 %v2397
    %v3049 = vunpack.c.l.b16 %v2398
    %v3050 = vunpack.c.h.b16 %v2398
    %v3051 = vunpack.c.l.b16 %v2399
    %v3052 = vunpack.c.h.b16 %v2399
    %v3053 = vunpack.c.l.b16 %v2400
    %v3054 = vunpack.c.h.b16 %v2400
    %v3055 = vunpack.c.l.b16 %v2401
    %v3056 = vunpack.c.l.b16 %v2402
    %v3057 = vunpack.c.h.b16 %v2402
    %v3058 = vunpack.c.l.b16 %v2403
    %v3059 = vunpack.c.h.b16 %v2403
    %v3060 = vunpack.c.l.b16 %v2404
    %v3061 = vunpack.c.h.b16 %v2404
    %v3062 = vunpack.c.l.b16 %v2405
    %v3063 = vunpack.c.l.b16 %v2406
    %v3064 = vunpack.c.h.b16 %v2406
    %v3065 = vunpack.c.l.b16 %v2407
    %v3066 = vunpack.c.h.b16 %v2407
    %v3067 = vunpack.c.l.b16 %v2408
    %v3068 = vunpack.c.h.b16 %v2408
    %v3069 = vunpack.c.l.b16 %v2409
    %v3070 = vunpack.c.l.b16 %v2410
    %v3071 = vunpack.c.h.b16 %v2410
    %v3072 = vunpack.c.l.b16 %v2411
    %v3073 = vunpack.c.h.b16 %v2411
    %v3074 = vunpack.c.l.b16 %v2412
    %v3075 = vunpack.c.h.b16 %v2412
    %v3076 = vunpack.c.l.b16 %v2413
    %v3077 = vunpack.c.l.b16 %v2414
    %v3078 = vunpack.c.h.b16 %v2414
    %v3079 = vunpack.c.l.b16 %v2415
    %v3080 = vunpack.c.h.b16 %v2415
    %v3081 = vunpack.c.l.b16 %v2416
    %v3082 = vunpack.c.h.b16 %v2416
    %v3083 = vunpack.c.l.b16 %v2417
    %v3084 = vunpack.c.l.b16 %v2418
    %v3085 = vunpack.c.h.b16 %v2418
    %v3086 = vunpack.c.l.b16 %v2419
    %v3087 = vunpack.c.h.b16 %v2419
    %v3088 = vunpack.c.l.b16 %v2420
    %v3089 = vunpack.c.h.b16 %v2420
    %v3090 = vunpack.c.l.b16 %v2421
    %v3091 = vunpack.c.l.b16 %v2422
    %v3092 = vunpack.c.h.b16 %v2422
    %v3093 = vunpack.c.l.b16 %v2423
    %v3094 = vunpack.c.h.b16 %v2423
    %v3095 = vunpack.c.l.b16 %v2424
    %v3096 = vunpack.c.h.b16 %v2424
    %v3097 = vunpack.c.l.b16 %v2425
    %v3098 = vunpack.c.l.b16 %v2426
    %v3099 = vunpack.c.h.b16 %v2426
    %v3100 = vunpack.c.l.b16 %v2427
    %v3101 = vunpack.c.h.b16 %v2427
    %v3102 = vunpack.c.l.b16 %v2428
    %v3103 = vunpack.c.h.b16 %v2428
    %v3104 = vunpack.c.l.b16 %v2429
    %v3105 = vunpack.c.l.b16 %v2430
    %v3106 = vunpack.c.h.b16 %v2430
    %v3107 = vunpack.c.l.b16 %v2431
    %v3108 = vunpack.c.h.b16 %v2431
    %v3109 = vunpack.c.l.b16 %v2432
    %v3110 = vunpack.c.h.b16 %v2432
    %v3111 = vunpack.c.l.b16 %v2433
    %v3112 = vunpack.c.l.b16 %v2434
    %v3113 = vunpack.c.h.b16 %v2434
    %v3114 = vunpack.c.l.b16 %v2435
    %v3115 = vunpack.c.h.b16 %v2435
    %v3116 = vunpack.c.l.b16 %v2436
    %v3117 = vunpack.c.h.b16 %v2436
    %v3118 = vunpack.c.l.b16 %v2437
    %v3119 = vunpack.c.l.b16 %v2438
    %v3120 = vunpack.c.h.b16 %v2438
    %v3121 = vunpack.c.l.b16 %v2439
    %v3122 = vunpack.c.h.b16 %v2439
    %v3123 = vunpack.c.l.b16 %v2440
    %v3124 = vunpack.c.h.b16 %v2440
    %v3125 = vunpack.c.l.b16 %v2441
    %v3126 = vunpack.c.l.b16 %v2442
    %v3127 = vunpack.c.h.b16 %v2442
    %v3128 = vunpack.c.l.b16 %v2443
    %v3129 = vunpack.c.h.b16 %v2443
    %v3130 = vunpack.c.l.b16 %v2444
    %v3131 = vunpack.c.h.b16 %v2444
    %v3132 = vunpack.c.l.b16 %v2445
    %v3133 = vunpack.c.l.b16 %v2446
    %v3134 = vunpack.c.h.b16 %v2446
    %v3135 = vunpack.c.l.b16 %v2447
    %v3136 = vunpack.c.h.b16 %v2447
    %v3137 = vunpack.c.l.b16 %v2448
    %v3138 = vunpack.c.h.b16 %v2448
    %v3139 = vunpack.c.l.b16 %v2449
    %v3140 = vunpack.c.l.b16 %v2450
    %v3141 = vunpack.c.h.b16 %v2450
    %v3142 = vunpack.c.l.b16 %v2451
    %v3143 = vunpack.c.h.b16 %v2451
    %v3144 = vunpack.c.l.b16 %v2452
    %v3145 = vunpack.c.h.b16 %v2452
    %v3146 = vunpack.c.l.b16 %v2453
    %v3147 = vunpack.c.l.b16 %v2454
    %v3148 = vunpack.c.h.b16 %v2454
    %v3149 = vunpack.c.l.b16 %v2455
    %v3150 = vunpack.c.h.b16 %v2455
    %v3151 = vunpack.c.l.b16 %v2456
    %v3152 = vunpack.c.h.b16 %v2456
    %v3153 = vunpack.c.l.b16 %v2457
    %v3154 = vunpack.c.l.b16 %v2458
    %v3155 = vunpack.c.h.b16 %v2458
    %v3156 = vunpack.c.l.b16 %v2459
    %v3157 = vunpack.c.h.b16 %v2459
    %v3158 = vunpack.c.l.b16 %v2460
    %v3159 = vunpack.c.h.b16 %v2460
    %v3160 = vunpack.c.l.b16 %v2461
    %v3161 = vunpack.c.l.b16 %v2462
    %v3162 = vunpack.c.h.b16 %v2462
    %v3163 = vunpack.c.l.b16 %v2463
    %v3164 = vunpack.c.h.b16 %v2463
    %v3165 = vunpack.c.l.b16 %v2464
    %v3166 = vunpack.c.h.b16 %v2464
    %v3167 = vunpack.c.l.b16 %v2465
    %v3168 = vunpack.c.l.b16 %v2466
    %v3169 = vunpack.c.h.b16 %v2466
    %v3170 = vunpack.c.l.b16 %v2467
    %v3171 = vunpack.c.h.b16 %v2467
    %v3172 = vunpack.c.l.b16 %v2468
    %v3173 = vunpack.c.h.b16 %v2468
    %v3174 = vunpack.c.l.b16 %v2469
    %v3175 = vunpack.c.l.b16 %v2470
    %v3176 = vunpack.c.h.b16 %v2470
    %v3177 = vunpack.c.l.b16 %v2471
    %v3178 = vunpack.c.h.b16 %v2471
    %v3179 = vunpack.c.l.b16 %v2472
    %v3180 = vunpack.c.h.b16 %v2472
    %v3181 = vunpack.c.l.b16 %v2473
    %v3182 = vunpack.c.l.b16 %v2474
    %v3183 = vunpack.c.h.b16 %v2474
    %v3184 = vunpack.c.l.b16 %v2475
    %v3185 = vunpack.c.h.b16 %v2475
    %v3186 = vunpack.c.l.b16 %v2476
    %v3187 = vunpack.c.h.b16 %v2476
    %v3188 = vunpack.c.l.b16 %v2477
    %v3189 = vunpack.c.l.b16 %v2478
    %v3190 = vunpack.c.h.b16 %v2478
    %v3191 = vunpack.c.l.b16 %v2479
    %v3192 = vunpack.c.h.b16 %v2479
    %v3193 = vunpack.c.l.b16 %v2480
    %v3194 = vunpack.c.h.b16 %v2480
    %v3195 = vunpack.c.l.b16 %v2481
    %v3196 = vunpack.c.l.b16 %v2482
    %v3197 = vunpack.c.h.b16 %v2482
    %v3198 = vunpack.c.l.b16 %v2483
    %v3199 = vunpack.c.h.b16 %v2483
    %v3200 = vunpack.c.l.b16 %v2484
    %v3201 = vunpack.c.h.b16 %v2484
    %v3202 = vunpack.c.l.b16 %v2485
    %v3203 = vunpack.c.l.b16 %v2486
    %v3204 = vunpack.c.h.b16 %v2486
    %v3205 = vunpack.c.l.b16 %v2487
    %v3206 = vunpack.c.h.b16 %v2487
    %v3207 = vunpack.c.l.b16 %v2488
    %v3208 = vunpack.c.h.b16 %v2488
    %v3209 = vunpack.c.l.b16 %v2489
    %v3210 = vunpack.c.l.b16 %v2490
    %v3211 = vunpack.c.h.b16 %v2490
    %v3212 = vunpack.c.l.b16 %v2491
    %v3213 = vunpack.c.h.b16 %v2491
    %v3214 = vunpack.c.l.b16 %v2492
    %v3215 = vunpack.c.h.b16 %v2492
    %v3216 = vunpack.c.l.b16 %v2493
    %v3217 = vunpack.c.l.b16 %v2494
    %v3218 = vunpack.c.h.b16 %v2494
    %v3219 = vunpack.c.l.b16 %v2495
    %v3220 = vunpack.c.h.b16 %v2495
    %v3221 = vunpack.c.l.b16 %v2496
    %v3222 = vunpack.c.h.b16 %v2496
    %v3223 = vunpack.c.l.b16 %v2497
    %v3224 = vunpack.c.l.b16 %v2498
    %v3225 = vunpack.c.h.b16 %v2498
    %v3226 = vunpack.c.l.b16 %v2499
    %v3227 = vunpack.c.h.b16 %v2499
    %v3228 = vunpack.c.l.b16 %v2500
    %v3229 = vunpack.c.h.b16 %v2500
    %v3230 = vunpack.c.l.b16 %v2501
    %v3231 = vunpack.c.l.b16 %v2502
    %v3232 = vunpack.c.h.b16 %v2502
    %v3233 = vunpack.c.l.b16 %v2503
    %v3234 = vunpack.c.h.b16 %v2503
    %v3235 = vunpack.c.l.b16 %v2504
    %v3236 = vunpack.c.h.b16 %v2504
    %v3237 = vunpack.c.l.b16 %v2505
    %v3238 = vunpack.c.l.b16 %v2506
    %v3239 = vunpack.c.h.b16 %v2506
    %v3240 = vunpack.c.l.b16 %v2507
    %v3241 = vunpack.c.h.b16 %v2507
    %v3242 = vunpack.c.l.b16 %v2508
    %v3243 = vunpack.c.h.b16 %v2508
    %v3244 = vunpack.c.l.b16 %v2509
    %v3245 = vunpack.c.l.b16 %v2510
    %v3246 = vunpack.c.h.b16 %v2510
    %v3247 = vunpack.c.l.b16 %v2511
    %v3248 = vunpack.c.h.b16 %v2511
    %v3249 = vunpack.c.l.b16 %v2512
    %v3250 = vunpack.c.h.b16 %v2512
    %v3251 = vunpack.c.l.b16 %v2513
    %v3252 = vunpack.c.l.b16 %v2514
    %v3253 = vunpack.c.h.b16 %v2514
    %v3254 = vunpack.c.l.b16 %v2515
    %v3255 = vunpack.c.h.b16 %v2515
    %v3256 = vunpack.c.l.b16 %v2516
    %v3257 = vunpack.c.h.b16 %v2516
    %v3258 = vunpack.c.l.b16 %v2517
    %v3259 = vpack.c.b16 %v2818, %v2811
    %v3260 = vpack.c.b16 %v2819, %v2812
    %v3261 = vpack.c.b16 %v2820, %v2813
    %v3262 = vpack.c.b16 %v2821, %v2814
    %v3263 = vpack.c.b16 %v2822, %v2815
    %v3264 = vpack.c.b16 %v2823, %v2816
    %v3265 = vpack.c.b16 %v2824, %v2817
    %v3266 = vpack.c.b16 %v2832, %v2825
    %v3267 = vpack.c.b16 %v2833, %v2826
    %v3268 = vpack.c.b16 %v2834, %v2827
    %v3269 = vpack.c.b16 %v2835, %v2828
    %v3270 = vpack.c.b16 %v2836, %v2829
    %v3271 = vpack.c.b16 %v2837, %v2830
    %v3272 = vpack.c.b16 %v2838, %v2831
    %v3273 = vpack.c.b16 %v2846, %v2839
    %v3274 = vpack.c.b16 %v2847, %v2840
    %v3275 = vpack.c.b16 %v2848, %v2841
    %v3276 = vpack.c.b16 %v2849, %v2842
    %v3277 = vpack.c.b16 %v2850, %v2843
    %v3278 = vpack.c.b16 %v2851, %v2844
    %v3279 = vpack.c.b16 %v2852, %v2845
    %v3280 = vpack.c.b16 %v2860, %v2853
    %v3281 = vpack.c.b16 %v2861, %v2854
    %v3282 = vpack.c.b16 %v2862, %v2855
    %v3283 = vpack.c.b16 %v2863, %v2856
    %v3284 = vpack.c.b16 %v2864, %v2857
    %v3285 = vpack.c.b16 %v2865, %v2858
    %v3286 = vpack.c.b16 %v2866, %v2859
    %v3287 = vpack.c.b16 %v2874, %v2867
    %v3288 = vpack.c.b16 %v2875, %v2868
    %v3289 = vpack.c.b16 %v2876, %v2869
    %v3290 = vpack.c.b16 %v2877, %v2870
    %v3291 = vpack.c.b16 %v2878, %v2871
    %v3292 = vpack.c.b16 %v2879, %v2872
    %v3293 = vpack.c.b16 %v2880, %v2873
    %v3294 = vpack.c.b16 %v2888, %v2881
    %v3295 = vpack.c.b16 %v2889, %v2882
    %v3296 = vpack.c.b16 %v2890, %v2883
    %v3297 = vpack.c.b16 %v2891, %v2884
    %v3298 = vpack.c.b16 %v2892, %v2885
    %v3299 = vpack.c.b16 %v2893, %v2886
    %v3300 = vpack.c.b16 %v2894, %v2887
    %v3301 = vpack.c.b16 %v2902, %v2895
    %v3302 = vpack.c.b16 %v2903, %v2896
    %v3303 = vpack.c.b16 %v2904, %v2897
    %v3304 = vpack.c.b16 %v2905, %v2898
    %v3305 = vpack.c.b16 %v2906, %v2899
    %v3306 = vpack.c.b16 %v2907, %v2900
    %v3307 = vpack.c.b16 %v2908, %v2901
    %v3308 = vpack.c.b16 %v2916, %v2909
    %v3309 = vpack.c.b16 %v2917, %v2910
    %v3310 = vpack.c.b16 %v2918, %v2911
    %v3311 = vpack.c.b16 %v2919, %v2912
    %v3312 = vpack.c.b16 %v2920, %v2913
    %v3313 = vpack.c.b16 %v2921, %v2914
    %v3314 = vpack.c.b16 %v2922, %v2915
    %v3315 = vpack.c.b16 %v2930, %v2923
    %v3316 = vpack.c.b16 %v2931, %v2924
    %v3317 = vpack.c.b16 %v2932, %v2925
    %v3318 = vpack.c.b16 %v2933, %v2926
    %v3319 = vpack.c.b16 %v2934, %v2927
    %v3320 = vpack.c.b16 %v2935, %v2928
    %v3321 = vpack.c.b16 %v2936, %v2929
    %v3322 = vpack.c.b16 %v2944, %v2937
    %v3323 = vpack.c.b16 %v2945, %v2938
    %v3324 = vpack.c.b16 %v2946, %v2939
    %v3325 = vpack.c.b16 %v2947, %v2940
    %v3326 = vpack.c.b16 %v2948, %v2941
    %v3327 = vpack.c.b16 %v2949, %v2942
    %v3328 = vpack.c.b16 %v2950, %v2943
    %v3329 = vpack.c.b16 %v2958, %v2951
    %v3330 = vpack.c.b16 %v2959, %v2952
    %v3331 = vpack.c.b16 %v2960, %v2953
    %v3332 = vpack.c.b16 %v2961, %v2954
    %v3333 = vpack.c.b16 %v2962, %v2955
    %v3334 = vpack.c.b16 %v2963, %v2956
    %v3335 = vpack.c.b16 %v2964, %v2957
    %v3336 = vpack.c.b16 %v2972, %v2965
    %v3337 = vpack.c.b16 %v2973, %v2966
    %v3338 = vpack.c.b16 %v2974, %v2967
    %v3339 = vpack.c.b16 %v2975, %v2968
    %v3340 = vpack.c.b16 %v2976, %v2969
    %v3341 = vpack.c.b16 %v2977, %v2970
    %v3342 = vpack.c.b16 %v2978, %v2971
    %v3343 = vpack.c.b16 %v2986, %v2979
    %v3344 = vpack.c.b16 %v2987, %v2980
    %v3345 = vpack.c.b16 %v2988, %v2981
    %v3346 = vpack.c.b16 %v2989, %v2982
    %v3347 = vpack.c.b16 %v2990, %v2983
    %v3348 = vpack.c.b16 %v2991, %v2984
    %v3349 = vpack.c.b16 %v2992, %v2985
    %v3350 = vpack.c.b16 %v3000, %v2993
    %v3351 = vpack.c.b16 %v3001, %v2994
    %v3352 = vpack.c.b16 %v3002, %v2995
    %v3353 = vpack.c.b16 %v3003, %v2996
    %v3354 = vpack.c.b16 %v3004, %v2997
    %v3355 = vpack.c.b16 %v3005, %v2998
    %v3356 = vpack.c.b16 %v3006, %v2999
    %v3357 = vpack.c.b16 %v3014, %v3007
    %v3358 = vpack.c.b16 %v3015, %v3008
    %v3359 = vpack.c.b16 %v3016, %v3009
    %v3360 = vpack.c.b16 %v3017, %v3010
    %v3361 = vpack.c.b16 %v3018, %v3011
    %v3362 = vpack.c.b16 %v3019, %v3012
    %v3363 = vpack.c.b16 %v3020, %v3013
    %v3364 = vpack.c.b16 %v3028, %v3021
    %v3365 = vpack.c.b16 %v3029, %v3022
    %v3366 = vpack.c.b16 %v3030, %v3023
    %v3367 = vpack.c.b16 %v3031, %v3024
    %v3368 = vpack.c.b16 %v3032, %v3025
    %v3369 = vpack.c.b16 %v3033, %v3026
    %v3370 = vpack.c.b16 %v3034, %v3027
    %v3371 = vpack.c.b16 %v3042, %v3035
    %v3372 = vpack.c.b16 %v3043, %v3036
    %v3373 = vpack.c.b16 %v3044, %v3037
    %v3374 = vpack.c.b16 %v3045, %v3038
    %v3375 = vpack.c.b16 %v3046, %v3039
    %v3376 = vpack.c.b16 %v3047, %v3040
    %v3377 = vpack.c.b16 %v3048, %v3041
    %v3378 = vpack.c.b16 %v3056, %v3049
    %v3379 = vpack.c.b16 %v3057, %v3050
    %v3380 = vpack.c.b16 %v3058, %v3051
    %v3381 = vpack.c.b16 %v3059, %v3052
    %v3382 = vpack.c.b16 %v3060, %v3053
    %v3383 = vpack.c.b16 %v3061, %v3054
    %v3384 = vpack.c.b16 %v3062, %v3055
    %v3385 = vpack.c.b16 %v3070, %v3063
    %v3386 = vpack.c.b16 %v3071, %v3064
    %v3387 = vpack.c.b16 %v3072, %v3065
    %v3388 = vpack.c.b16 %v3073, %v3066
    %v3389 = vpack.c.b16 %v3074, %v3067
    %v3390 = vpack.c.b16 %v3075, %v3068
    %v3391 = vpack.c.b16 %v3076, %v3069
    %v3392 = vpack.c.b16 %v3084, %v3077
    %v3393 = vpack.c.b16 %v3085, %v3078
    %v3394 = vpack.c.b16 %v3086, %v3079
    %v3395 = vpack.c.b16 %v3087, %v3080
    %v3396 = vpack.c.b16 %v3088, %v3081
    %v3397 = vpack.c.b16 %v3089, %v3082
    %v3398 = vpack.c.b16 %v3090, %v3083
    %v3399 = vpack.c.b16 %v3098, %v3091
    %v3400 = vpack.c.b16 %v3099, %v3092
    %v3401 = vpack.c.b16 %v3100, %v3093
    %v3402 = vpack.c.b16 %v3101, %v3094
    %v3403 = vpack.c.b16 %v3102, %v3095
    %v3404 = vpack.c.b16 %v3103, %v3096
    %v3405 = vpack.c.b16 %v3104, %v3097
    %v3406 = vpack.c.b16 %v3112, %v3105
    %v3407 = vpack.c.b16 %v3113, %v3106
    %v3408 = vpack.c.b16 %v3114, %v3107
    %v3409 = vpack.c.b16 %v3115, %v3108
    %v3410 = vpack.c.b16 %v3116, %v3109
    %v3411 = vpack.c.b16 %v3117, %v3110
    %v3412 = vpack.c.b16 %v3118, %v3111
    %v3413 = vpack.c.b16 %v3126, %v3119
    %v3414 = vpack.c.b16 %v3127, %v3120
    %v3415 = vpack.c.b16 %v3128, %v3121
    %v3416 = vpack.c.b16 %v3129, %v3122
    %v3417 = vpack.c.b16 %v3130, %v3123
    %v3418 = vpack.c.b16 %v3131, %v3124
    %v3419 = vpack.c.b16 %v3132, %v3125
    %v3420 = vpack.c.b16 %v3140, %v3133
    %v3421 = vpack.c.b16 %v3141, %v3134
    %v3422 = vpack.c.b16 %v3142, %v3135
    %v3423 = vpack.c.b16 %v3143, %v3136
    %v3424 = vpack.c.b16 %v3144, %v3137
    %v3425 = vpack.c.b16 %v3145, %v3138
    %v3426 = vpack.c.b16 %v3146, %v3139
    %v3427 = vpack.c.b16 %v3154, %v3147
    %v3428 = vpack.c.b16 %v3155, %v3148
    %v3429 = vpack.c.b16 %v3156, %v3149
    %v3430 = vpack.c.b16 %v3157, %v3150
    %v3431 = vpack.c.b16 %v3158, %v3151
    %v3432 = vpack.c.b16 %v3159, %v3152
    %v3433 = vpack.c.b16 %v3160, %v3153
    %v3434 = vpack.c.b16 %v3168, %v3161
    %v3435 = vpack.c.b16 %v3169, %v3162
    %v3436 = vpack.c.b16 %v3170, %v3163
    %v3437 = vpack.c.b16 %v3171, %v3164
    %v3438 = vpack.c.b16 %v3172, %v3165
    %v3439 = vpack.c.b16 %v3173, %v3166
    %v3440 = vpack.c.b16 %v3174, %v3167
    %v3441 = vpack.c.b16 %v3182, %v3175
    %v3442 = vpack.c.b16 %v3183, %v3176
    %v3443 = vpack.c.b16 %v3184, %v3177
    %v3444 = vpack.c.b16 %v3185, %v3178
    %v3445 = vpack.c.b16 %v3186, %v3179
    %v3446 = vpack.c.b16 %v3187, %v3180
    %v3447 = vpack.c.b16 %v3188, %v3181
    %v3448 = vpack.c.b16 %v3196, %v3189
    %v3449 = vpack.c.b16 %v3197, %v3190
    %v3450 = vpack.c.b16 %v3198, %v3191
    %v3451 = vpack.c.b16 %v3199, %v3192
    %v3452 = vpack.c.b16 %v3200, %v3193
    %v3453 = vpack.c.b16 %v3201, %v3194
    %v3454 = vpack.c.b16 %v3202, %v3195
    %v3455 = vpack.c.b16 %v3210, %v3203
    %v3456 = vpack.c.b16 %v3211, %v3204
    %v3457 = vpack.c.b16 %v3212, %v3205
    %v3458 = vpack.c.b16 %v3213, %v3206
    %v3459 = vpack.c.b16 %v3214, %v3207
    %v3460 = vpack.c.b16 %v3215, %v3208
    %v3461 = vpack.c.b16 %v3216, %v3209
    %v3462 = vpack.c.b16 %v3224, %v3217
    %v3463 = vpack.c.b16 %v3225, %v3218
    %v3464 = vpack.c.b16 %v3226, %v3219
    %v3465 = vpack.c.b16 %v3227, %v3220
    %v3466 = vpack.c.b16 %v3228, %v3221
    %v3467 = vpack.c.b16 %v3229, %v3222
    %v3468 = vpack.c.b16 %v3230, %v3223
    %v3469 = vpack.c.b16 %v3238, %v3231
    %v3470 = vpack.c.b16 %v3239, %v3232
    %v3471 = vpack.c.b16 %v3240, %v3233
    %v3472 = vpack.c.b16 %v3241, %v3234
    %v3473 = vpack.c.b16 %v3242, %v3235
    %v3474 = vpack.c.b16 %v3243, %v3236
    %v3475 = vpack.c.b16 %v3244, %v3237
    %v3476 = vpack.c.b16 %v3252, %v3245
    %v3477 = vpack.c.b16 %v3253, %v3246
    %v3478 = vpack.c.b16 %v3254, %v3247
    %v3479 = vpack.c.b16 %v3255, %v3248
    %v3480 = vpack.c.b16 %v3256, %v3249
    %v3481 = vpack.c.b16 %v3257, %v3250
    %v3482 = vpack.c.b16 %v3258, %v3251
    %3707 = vmatprep.subr.bf16.mxu0 %v3260
    %3708 = vmatpush1.bf16.msra.mxu0 %v3259
    %3709 = vmatprep.subr.bf16.mxu0 %v3267
    %3710 = vmatpush1.bf16.msra.mxu0 %v3266
    %3711 = vmatprep.subr.bf16.mxu0 %v3274
    %3712 = vmatpush1.bf16.msra.mxu0 %v3273
    %3713 = vmatprep.subr.bf16.mxu0 %v3281
    %3714 = vmatpush1.bf16.msra.mxu0 %v3280
    %3715 = vmatprep.subr.bf16.mxu0 %v3288
    %3716 = vmatpush1.bf16.msra.mxu0 %v3287
    %3717 = vmatprep.subr.bf16.mxu0 %v3295
    %3718 = vmatpush1.bf16.msra.mxu0 %v3294
    %3719 = vmatprep.subr.bf16.mxu0 %v3302
    %3720 = vmatpush1.bf16.msra.mxu0 %v3301
    %3721 = vmatprep.subr.bf16.mxu0 %v3309
    %3722 = vmatpush1.bf16.msra.mxu0 %v3308
    %3723 = vmatprep.subr.bf16.mxu0 %v3316
    %3724 = vmatpush1.bf16.msra.mxu0 %v3315
    %3725 = vmatprep.subr.bf16.mxu0 %v3323
    %3726 = vmatpush1.bf16.msra.mxu0 %v3322
    %3727 = vmatprep.subr.bf16.mxu0 %v3330
    %3728 = vmatpush1.bf16.msra.mxu0 %v3329
    %3729 = vmatprep.subr.bf16.mxu0 %v3337
    %3730 = vmatpush1.bf16.msra.mxu0 %v3336
    %3731 = vmatprep.subr.bf16.mxu0 %v3344
    %3732 = vmatpush1.bf16.msra.mxu0 %v3343
    %3733 = vmatprep.subr.bf16.mxu0 %v3351
    %3734 = vmatpush1.bf16.msra.mxu0 %v3350
    %3735 = vmatprep.subr.bf16.mxu0 %v3358
    %3736 = vmatpush1.bf16.msra.mxu0 %v3357
    %3737 = vmatprep.subr.bf16.mxu0 %v3365
    %3738 = vmatpush1.bf16.msra.mxu0 %v3364
    %3739 = vmatprep.mubr.bf16.mxu0 %v2259
    %3740 = vmatmul.mubr.bf16.gmra.mrb[0].mxu0 %v2258
    %v3741 = vpop.f32.mrb[0].mxu0
    %v3742 = vadd.f32 %v2523, %v3741
    %v3743 = vpop.f32.mrb[0].mxu0
    %v3744 = vadd.f32 %v2527, %v3743
    %v3745 = vpop.f32.mrb[0].mxu0
    %v3746 = vpop.f32.mrb[0].mxu0
    %3747 = vdwg.mxu0
    %3748 = vmatprep.subr.bf16.mxu0 %v3372
    %3749 = vmatpush1.bf16.msra.mxu0 %v3371
    %3750 = vmatprep.subr.bf16.mxu0 %v3379
    %3751 = vmatpush1.bf16.msra.mxu0 %v3378
    %3752 = vmatprep.subr.bf16.mxu0 %v3386
    %3753 = vmatpush1.bf16.msra.mxu0 %v3385
    %3754 = vmatprep.subr.bf16.mxu0 %v3393
    %3755 = vmatpush1.bf16.msra.mxu0 %v3392
    %3756 = vmatprep.subr.bf16.mxu0 %v3400
    %3757 = vmatpush1.bf16.msra.mxu0 %v3399
    %3758 = vmatprep.subr.bf16.mxu0 %v3407
    %3759 = vmatpush1.bf16.msra.mxu0 %v3406
    %3760 = vmatprep.subr.bf16.mxu0 %v3414
    %3761 = vmatpush1.bf16.msra.mxu0 %v3413
    %3762 = vmatprep.subr.bf16.mxu0 %v3421
    %3763 = vmatpush1.bf16.msra.mxu0 %v3420
    %3764 = vmatprep.subr.bf16.mxu0 %v3428
    %3765 = vmatpush1.bf16.msra.mxu0 %v3427
    %3766 = vmatprep.subr.bf16.mxu0 %v3435
    %3767 = vmatpush1.bf16.msra.mxu0 %v3434
    %3768 = vmatprep.subr.bf16.mxu0 %v3442
    %3769 = vmatpush1.bf16.msra.mxu0 %v3441
    %3770 = vmatprep.subr.bf16.mxu0 %v3449
    %3771 = vmatpush1.bf16.msra.mxu0 %v3448
    %3772 = vmatprep.subr.bf16.mxu0 %v3456
    %3773 = vmatpush1.bf16.msra.mxu0 %v3455
    %3774 = vmatprep.subr.bf16.mxu0 %v3463
    %3775 = vmatpush1.bf16.msra.mxu0 %v3462
    %3776 = vmatprep.subr.bf16.mxu0 %v3470
    %3777 = vmatpush1.bf16.msra.mxu0 %v3469
    %3778 = vmatprep.subr.bf16.mxu0 %v3477
    %3779 = vmatpush1.bf16.msra.mxu0 %v3476
    %3780 = vmatprep.mubr.bf16.mxu0 %v2261
    %3781 = vmatmul.mubr.bf16.gmra.mrb[0].mxu0 %v2260
    %v3782 = vpop.f32.mrb[0].mxu0
    %v3783 = vadd.f32 %v3742, %v3782
    %v3784 = vpop.f32.mrb[0].mxu0
    %v3785 = vadd.f32 %v3744, %v3784
    %v3786 = vpop.f32.mrb[0].mxu0
    %v3787 = vpop.f32.mrb[0].mxu0
    %3788 = vdwg.mxu0
    %3789 = vmatprep.subr.bf16.mxu0 %v3262
    %3790 = vmatpush1.bf16.msra.mxu0 %v3261
    %3791 = vmatprep.subr.bf16.mxu0 %v3269
    %3792 = vmatpush1.bf16.msra.mxu0 %v3268
    %3793 = vmatprep.subr.bf16.mxu0 %v3276
    %3794 = vmatpush1.bf16.msra.mxu0 %v3275
    %3795 = vmatprep.subr.bf16.mxu0 %v3283
    %3796 = vmatpush1.bf16.msra.mxu0 %v3282
    %3797 = vmatprep.subr.bf16.mxu0 %v3290
    %3798 = vmatpush1.bf16.msra.mxu0 %v3289
    %3799 = vmatprep.subr.bf16.mxu0 %v3297
    %3800 = vmatpush1.bf16.msra.mxu0 %v3296
    %3801 = vmatprep.subr.bf16.mxu0 %v3304
    %3802 = vmatpush1.bf16.msra.mxu0 %v3303
    %3803 = vmatprep.subr.bf16.mxu0 %v3311
    %3804 = vmatpush1.bf16.msra.mxu0 %v3310
    %3805 = vmatprep.subr.bf16.mxu0 %v3318
    %3806 = vmatpush1.bf16.msra.mxu0 %v3317
    %3807 = vmatprep.subr.bf16.mxu0 %v3325
    %3808 = vmatpush1.bf16.msra.mxu0 %v3324
    %3809 = vmatprep.subr.bf16.mxu0 %v3332
    %3810 = vmatpush1.bf16.msra.mxu0 %v3331
    %3811 = vmatprep.subr.bf16.mxu0 %v3339
    %3812 = vmatpush1.bf16.msra.mxu0 %v3338
    %3813 = vmatprep.subr.bf16.mxu0 %v3346
    %3814 = vmatpush1.bf16.msra.mxu0 %v3345
    %3815 = vmatprep.subr.bf16.mxu0 %v3353
    %3816 = vmatpush1.bf16.msra.mxu0 %v3352
    %3817 = vmatprep.subr.bf16.mxu0 %v3360
    %3818 = vmatpush1.bf16.msra.mxu0 %v3359
    %3819 = vmatprep.subr.bf16.mxu0 %v3367
    %3820 = vmatpush1.bf16.msra.mxu0 %v3366
    %3821 = vmatprep.mubr.bf16.mxu0 %v2259
    %3822 = vmatmul.mubr.bf16.gmra.mrb[0].mxu0 %v2258
    %v3823 = vpop.f32.mrb[0].mxu0
    %v3824 = vadd.f32 %v2531, %v3823
    %v3825 = vpop.f32.mrb[0].mxu0
    %v3826 = vadd.f32 %v2535, %v3825
    %v3827 = vpop.f32.mrb[0].mxu0
    %v3828 = vpop.f32.mrb[0].mxu0
    %3829 = vdwg.mxu0
    %3830 = vmatprep.subr.bf16.mxu0 %v3374
    %3831 = vmatpush1.bf16.msra.mxu0 %v3373
    %3832 = vmatprep.subr.bf16.mxu0 %v3381
    %3833 = vmatpush1.bf16.msra.mxu0 %v3380
    %3834 = vmatprep.subr.bf16.mxu0 %v3388
    %3835 = vmatpush1.bf16.msra.mxu0 %v3387
    %3836 = vmatprep.subr.bf16.mxu0 %v3395
    %3837 = vmatpush1.bf16.msra.mxu0 %v3394
    %3838 = vmatprep.subr.bf16.mxu0 %v3402
    %3839 = vmatpush1.bf16.msra.mxu0 %v3401
    %3840 = vmatprep.subr.bf16.mxu0 %v3409
    %3841 = vmatpush1.bf16.msra.mxu0 %v3408
    %3842 = vmatprep.subr.bf16.mxu0 %v3416
    %3843 = vmatpush1.bf16.msra.mxu0 %v3415
    %3844 = vmatprep.subr.bf16.mxu0 %v3423
    %3845 = vmatpush1.bf16.msra.mxu0 %v3422
    %3846 = vmatprep.subr.bf16.mxu0 %v3430
    %3847 = vmatpush1.bf16.msra.mxu0 %v3429
    %3848 = vmatprep.subr.bf16.mxu0 %v3437
    %3849 = vmatpush1.bf16.msra.mxu0 %v3436
    %3850 = vmatprep.subr.bf16.mxu0 %v3444
    %3851 = vmatpush1.bf16.msra.mxu0 %v3443
    %3852 = vmatprep.subr.bf16.mxu0 %v3451
    %3853 = vmatpush1.bf16.msra.mxu0 %v3450
    %3854 = vmatprep.subr.bf16.mxu0 %v3458
    %3855 = vmatpush1.bf16.msra.mxu0 %v3457
    %3856 = vmatprep.subr.bf16.mxu0 %v3465
    %3857 = vmatpush1.bf16.msra.mxu0 %v3464
    %3858 = vmatprep.subr.bf16.mxu0 %v3472
    %3859 = vmatpush1.bf16.msra.mxu0 %v3471
    %3860 = vmatprep.subr.bf16.mxu0 %v3479
    %3861 = vmatpush1.bf16.msra.mxu0 %v3478
    %3862 = vmatprep.mubr.bf16.mxu0 %v2261
    %3863 = vmatmul.mubr.bf16.gmra.mrb[0].mxu0 %v2260
    %v3864 = vpop.f32.mrb[0].mxu0
    %v3865 = vadd.f32 %v3824, %v3864
    %v3866 = vpop.f32.mrb[0].mxu0
    %v3867 = vadd.f32 %v3826, %v3866
    %v3868 = vpop.f32.mrb[0].mxu0
    %v3869 = vpop.f32.mrb[0].mxu0
    %3870 = vdwg.mxu0
    %3871 = vmatprep.subr.bf16.mxu0 %v3264
    %3872 = vmatpush1.bf16.msra.mxu0 %v3263
    %3873 = vmatprep.subr.bf16.mxu0 %v3271
    %3874 = vmatpush1.bf16.msra.mxu0 %v3270
    %3875 = vmatprep.subr.bf16.mxu0 %v3278
    %3876 = vmatpush1.bf16.msra.mxu0 %v3277
    %3877 = vmatprep.subr.bf16.mxu0 %v3285
    %3878 = vmatpush1.bf16.msra.mxu0 %v3284
    %3879 = vmatprep.subr.bf16.mxu0 %v3292
    %3880 = vmatpush1.bf16.msra.mxu0 %v3291
    %3881 = vmatprep.subr.bf16.mxu0 %v3299
    %3882 = vmatpush1.bf16.msra.mxu0 %v3298
    %3883 = vmatprep.subr.bf16.mxu0 %v3306
    %3884 = vmatpush1.bf16.msra.mxu0 %v3305
    %3885 = vmatprep.subr.bf16.mxu0 %v3313
    %3886 = vmatpush1.bf16.msra.mxu0 %v3312
    %3887 = vmatprep.subr.bf16.mxu0 %v3320
    %3888 = vmatpush1.bf16.msra.mxu0 %v3319
    %3889 = vmatprep.subr.bf16.mxu0 %v3327
    %3890 = vmatpush1.bf16.msra.mxu0 %v3326
    %3891 = vmatprep.subr.bf16.mxu0 %v3334
    %3892 = vmatpush1.bf16.msra.mxu0 %v3333
    %3893 = vmatprep.subr.bf16.mxu0 %v3341
    %3894 = vmatpush1.bf16.msra.mxu0 %v3340
    %3895 = vmatprep.subr.bf16.mxu0 %v3348
    %3896 = vmatpush1.bf16.msra.mxu0 %v3347
    %3897 = vmatprep.subr.bf16.mxu0 %v3355
    %3898 = vmatpush1.bf16.msra.mxu0 %v3354
    %3899 = vmatprep.subr.bf16.mxu0 %v3362
    %3900 = vmatpush1.bf16.msra.mxu0 %v3361
    %3901 = vmatprep.subr.bf16.mxu0 %v3369
    %3902 = vmatpush1.bf16.msra.mxu0 %v3368
    %3903 = vmatprep.mubr.bf16.mxu0 %v2259
    %3904 = vmatmul.mubr.bf16.gmra.mrb[0].mxu0 %v2258
    %v3905 = vpop.f32.mrb[0].mxu0
    %v3906 = vadd.f32 %v2539, %v3905
    %v3907 = vpop.f32.mrb[0].mxu0
    %v3908 = vadd.f32 %v2543, %v3907
    %v3909 = vpop.f32.mrb[0].mxu0
    %v3910 = vpop.f32.mrb[0].mxu0
    %3911 = vdwg.mxu0
    %3912 = vmatprep.subr.bf16.mxu0 %v3376
    %3913 = vmatpush1.bf16.msra.mxu0 %v3375
    %3914 = vmatprep.subr.bf16.mxu0 %v3383
    %3915 = vmatpush1.bf16.msra.mxu0 %v3382
    %3916 = vmatprep.subr.bf16.mxu0 %v3390
    %3917 = vmatpush1.bf16.msra.mxu0 %v3389
    %3918 = vmatprep.subr.bf16.mxu0 %v3397
    %3919 = vmatpush1.bf16.msra.mxu0 %v3396
    %3920 = vmatprep.subr.bf16.mxu0 %v3404
    %3921 = vmatpush1.bf16.msra.mxu0 %v3403
    %3922 = vmatprep.subr.bf16.mxu0 %v3411
    %3923 = vmatpush1.bf16.msra.mxu0 %v3410
    %3924 = vmatprep.subr.bf16.mxu0 %v3418
    %3925 = vmatpush1.bf16.msra.mxu0 %v3417
    %3926 = vmatprep.subr.bf16.mxu0 %v3425
    %3927 = vmatpush1.bf16.msra.mxu0 %v3424
    %3928 = vmatprep.subr.bf16.mxu0 %v3432
    %3929 = vmatpush1.bf16.msra.mxu0 %v3431
    %3930 = vmatprep.subr.bf16.mxu0 %v3439
    %3931 = vmatpush1.bf16.msra.mxu0 %v3438
    %3932 = vmatprep.subr.bf16.mxu0 %v3446
    %3933 = vmatpush1.bf16.msra.mxu0 %v3445
    %3934 = vmatprep.subr.bf16.mxu0 %v3453
    %3935 = vmatpush1.bf16.msra.mxu0 %v3452
    %3936 = vmatprep.subr.bf16.mxu0 %v3460
    %3937 = vmatpush1.bf16.msra.mxu0 %v3459
    %3938 = vmatprep.subr.bf16.mxu0 %v3467
    %3939 = vmatpush1.bf16.msra.mxu0 %v3466
    %3940 = vmatprep.subr.bf16.mxu0 %v3474
    %3941 = vmatpush1.bf16.msra.mxu0 %v3473
    %3942 = vmatprep.subr.bf16.mxu0 %v3481
    %3943 = vmatpush1.bf16.msra.mxu0 %v3480
    %3944 = vmatprep.mubr.bf16.mxu0 %v2261
    %3945 = vmatmul.mubr.bf16.gmra.mrb[0].mxu0 %v2260
    %v3946 = vpop.f32.mrb[0].mxu0
    %v3947 = vadd.f32 %v3906, %v3946
    %v3948 = vpop.f32.mrb[0].mxu0
    %v3949 = vadd.f32 %v3908, %v3948
    %v3950 = vpop.f32.mrb[0].mxu0
    %v3951 = vpop.f32.mrb[0].mxu0
    %3952 = vdwg.mxu0
    %3953 = vmatprep.subr.bf16.mxu0 0
    %3954 = vmatpush1.bf16.msra.mxu0 %v3265
    %3955 = vmatprep.subr.bf16.mxu0 0
    %3956 = vmatpush1.bf16.msra.mxu0 %v3272
    %3957 = vmatprep.subr.bf16.mxu0 0
    %3958 = vmatpush1.bf16.msra.mxu0 %v3279
    %3959 = vmatprep.subr.bf16.mxu0 0
    %3960 = vmatpush1.bf16.msra.mxu0 %v3286
    %3961 = vmatprep.subr.bf16.mxu0 0
    %3962 = vmatpush1.bf16.msra.mxu0 %v3293
    %3963 = vmatprep.subr.bf16.mxu0 0
    %3964 = vmatpush1.bf16.msra.mxu0 %v3300
    %3965 = vmatprep.subr.bf16.mxu0 0
    %3966 = vmatpush1.bf16.msra.mxu0 %v3307
    %3967 = vmatprep.subr.bf16.mxu0 0
    %3968 = vmatpush1.bf16.msra.mxu0 %v3314
    %3969 = vmatprep.subr.bf16.mxu0 0
    %3970 = vmatpush1.bf16.msra.mxu0 %v3321
    %3971 = vmatprep.subr.bf16.mxu0 0
    %3972 = vmatpush1.bf16.msra.mxu0 %v3328
    %3973 = vmatprep.subr.bf16.mxu0 0
    %3974 = vmatpush1.bf16.msra.mxu0 %v3335
    %3975 = vmatprep.subr.bf16.mxu0 0
    %3976 = vmatpush1.bf16.msra.mxu0 %v3342
    %3977 = vmatprep.subr.bf16.mxu0 0
    %3978 = vmatpush1.bf16.msra.mxu0 %v3349
    %3979 = vmatprep.subr.bf16.mxu0 0
    %3980 = vmatpush1.bf16.msra.mxu0 %v3356
    %3981 = vmatprep.subr.bf16.mxu0 0
    %3982 = vmatpush1.bf16.msra.mxu0 %v3363
    %3983 = vmatprep.subr.bf16.mxu0 0
    %3984 = vmatpush1.bf16.msra.mxu0 %v3370
    %3985 = vmatprep.mubr.bf16.mxu0 %v2259
    %3986 = vmatmul.mubr.bf16.gmra.mrb[0].mxu0 %v2258
    %v3987 = vpop.f32.mrb[0].mxu0
    %v3988 = vadd.f32 %v2547, %v3987
    %v3989 = vpop.f32.mrb[0].mxu0
    %v3990 = vpop.f32.mrb[0].mxu0
    %v3991 = vpop.f32.mrb[0].mxu0
    %3992 = vdwg.mxu0
    %3993 = vmatprep.subr.bf16.mxu0 0
    %3994 = vmatpush1.bf16.msra.mxu0 %v3377
    %3995 = vmatprep.subr.bf16.mxu0 0
    %3996 = vmatpush1.bf16.msra.mxu0 %v3384
    %3997 = vmatprep.subr.bf16.mxu0 0
    %3998 = vmatpush1.bf16.msra.mxu0 %v3391
    %3999 = vmatprep.subr.bf16.mxu0 0
    %4000 = vmatpush1.bf16.msra.mxu0 %v3398
    %4001 = vmatprep.subr.bf16.mxu0 0
    %4002 = vmatpush1.bf16.msra.mxu0 %v3405
    %4003 = vmatprep.subr.bf16.mxu0 0
    %4004 = vmatpush1.bf16.msra.mxu0 %v3412
    %4005 = vmatprep.subr.bf16.mxu0 0
    %4006 = vmatpush1.bf16.msra.mxu0 %v3419
    %4007 = vmatprep.subr.bf16.mxu0 0
    %4008 = vmatpush1.bf16.msra.mxu0 %v3426
    %4009 = vmatprep.subr.bf16.mxu0 0
    %4010 = vmatpush1.bf16.msra.mxu0 %v3433
    %4011 = vmatprep.subr.bf16.mxu0 0
    %4012 = vmatpush1.bf16.msra.mxu0 %v3440
    %4013 = vmatprep.subr.bf16.mxu0 0
    %4014 = vmatpush1.bf16.msra.mxu0 %v3447
    %4015 = vmatprep.subr.bf16.mxu0 0
    %4016 = vmatpush1.bf16.msra.mxu0 %v3454
    %4017 = vmatprep.subr.bf16.mxu0 0
    %4018 = vmatpush1.bf16.msra.mxu0 %v3461
    %4019 = vmatprep.subr.bf16.mxu0 0
    %4020 = vmatpush1.bf16.msra.mxu0 %v3468
    %4021 = vmatprep.subr.bf16.mxu0 0
    %4022 = vmatpush1.bf16.msra.mxu0 %v3475
    %4023 = vmatprep.subr.bf16.mxu0 0
    %4024 = vmatpush1.bf16.msra.mxu0 %v3482
    %4025 = vmatprep.mubr.bf16.mxu0 %v2261
    %4026 = vmatmul.mubr.bf16.gmra.mrb[0].mxu0 %v2260
    %v4027 = vpop.f32.mrb[0].mxu0
    %v4028 = vadd.f32 %v3988, %v4027
    %v4029 = vpop.f32.mrb[0].mxu0
    %v4030 = vpop.f32.mrb[0].mxu0
    %v4031 = vpop.f32.mrb[0].mxu0
    %4032 = vdwg.mxu0
    %4033 = vst [vmem:[#allocation11] sm:$0xff] %v3783
    %4034 = vst [vmem:[#allocation11 + $0x8] sm:$0xff] %v3785
    %4035 = vst [vmem:[#allocation11 + $0x10] sm:$0xff] %v3865
    %4036 = vst [vmem:[#allocation11 + $0x18] sm:$0xff] %v3867
    %4037 = vst [vmem:[#allocation11 + $0x20] sm:$0xff] %v3947
    %4038 = vst [vmem:[#allocation11 + $0x28] sm:$0xff] %v3949
    %4039 = vst [vmem:[#allocation11 + $0x30] sm:$0xff] %v4028
    // Predicated region
    $region58: #{tpu_custom_call.1} parent=1 // pred_check
      _
    $region59: #{tpu_custom_call.1} parent=1 // pred_check_branch
      %4041 = sbr.rel (0) target = $region61
    $region60: #{tpu_custom_call.1} parent=1 // pred_region
      %s4043 = ssub.s32 896, 896
      %4044 = vsyncadd [#allocation4], %s4043
      %s4046 = sshll.u32 [#allocation11], 4
      %s4047 = int_to_ptr.vmem [resolvable:$true] %s4046
      %4049 = dma.vmem_to_hbm [thread:$0]  %s4047, 896, %s9, [#allocation4]
    $region61: #{tpu_custom_call.1} parent=1 // pred_fallthru
      _
    // Predicated region
    $region62: #{tpu_custom_call.1} parent=1 // pred_check
      _
    $region63: #{tpu_custom_call.1} parent=1 // pred_check_branch
      %4051 = sbr.rel (0) target = $region65
    $region64: #{tpu_custom_call.1} parent=1 // pred_region
      %4052 = dma.done [#allocation4], 896
    $region65: #{tpu_custom_call.1} parent=1 // pred_fallthru
      _
    %4053 = vsyncpa [#allocation3], 1
    %4054 = vsyncpa [#allocation6], 1
    %4055 = vsyncpa [#allocation9], 1
    %4056 = vsyncpa [#allocation4], 1

</llo_original>
